<compile_context>
chip_gen: v6e
topology: v6e:2x2x1
jax: 0.10.0
libtpu: 0.0.40
codegen_flags: <defaults>
</compile_context>

<pallas_src>
import functools
import numpy as np
import jax
import jax.numpy as jnp
from jax.experimental import pallas as pl
from jax.experimental.pallas import tpu as pltpu

NEG_SLOPE = 0.2
LANE = 128


def _round_up(x, m):
    return (x + m - 1) // m * m


def _pick_tile(total, target):
    t = min(total, target)
    while total % t:
        t -= 1
    return t


# ----------------------------- Pallas kernels ------------------------------

def _conv3x3_kernel(x_ref, w_ref, b_ref, o_ref, *, bt, wp):
    """3x3 conv on flattened padded rows: 9 shifted bf16 matmuls, f32 accumulate,
    bias + LeakyReLU epilogue.

    x_ref: (1, L, Cin)    bf16  flattened zero-padded image (full image resident)
    w_ref: (9, Cin, Cop)  bf16  pre-scaled, lane-padded weight
    b_ref: (1, Cop)       f32   lane-padded bias
    o_ref: (1, bt, Cop)          output row tile (lane-dense)
    """
    t = pl.program_id(1)
    base = pl.multiple_of(t * bt, 8)
    halo = 2 * wp + 2
    # One aligned dynamic slice of the input window; the 9 taps below are
    # static slices of this value (stay in VMEM/vregs).
    xw = x_ref[0, pl.ds(base, bt + halo), :]                    # (bt+halo, Cin)

    acc = jnp.zeros((bt, o_ref.shape[-1]), jnp.float32)
    for ki in range(3):
        for kj in range(3):
            k = ki * 3 + kj
            off = ki * wp + kj
            acc = acc + jnp.dot(xw[off:off + bt, :], w_ref[k],
                                preferred_element_type=jnp.float32)
    y = acc + b_ref[...]
    o_ref[0] = jnp.where(y >= 0.0, y, NEG_SLOPE * y).astype(o_ref.dtype)


def _avgpool2_kernel(x_ref, o_ref):
    """2x2 average pool.

    x_ref: (tr, 2, W/2, 2*C)  -- row pairs on dim 1, column pairs split on lanes
    o_ref: (tr, W/2, C)
    """
    c = o_ref.shape[-1]
    s = x_ref[:, 0, :, :] + x_ref[:, 1, :, :]                   # row-pair sum
    o_ref[...] = (s[:, :, :c] + s[:, :, c:]) * 0.25             # col-pair mean


# ------------------------------- wrappers -----------------------------------

def _conv3x3_lrelu(x_nhwc, w9, bias2d, out_dtype, row_tile=1024):
    """3x3 same conv + bias + LeakyReLU via the flat-row Pallas kernel.

    x_nhwc : (N, H, W, Cin) bf16
    w9     : (9, Cin, Cop)  bf16 (pre-scaled, Cop = lane-padded Cout)
    bias2d : (1, Cop)       f32
    returns: (N, H, W, Cop) out_dtype  (pad lanes are exact zeros)
    """
    n, h, w, ci = x_nhwc.shape
    nine, ci_w, cop = w9.shape
    assert nine == 9 and ci_w == ci

    wp = w + 2                       # padded row width
    r = h * wp                       # flat output rows we must compute
    bt = min(row_tile, _round_up(r, 8))
    t_tiles = -(-r // bt)            # cdiv
    halo = 2 * wp + 2
    l_rows = t_tiles * bt + halo     # flat input rows needed (incl. tail slack)

    xp = jnp.pad(x_nhwc, ((0, 0), (1, 1), (1, 1), (0, 0)))      # (N, H+2, W+2, Cin)
    xflat = xp.reshape(n, (h + 2) * wp, ci)
    xflat = jnp.pad(xflat, ((0, 0), (0, l_rows - (h + 2) * wp), (0, 0)))

    kernel = functools.partial(_conv3x3_kernel, bt=bt, wp=wp)
    out_flat = pl.pallas_call(
        kernel,
        out_shape=jax.ShapeDtypeStruct((n, t_tiles * bt, cop), out_dtype),
        grid=(n, t_tiles),
        in_specs=[
            pl.BlockSpec((1, l_rows, ci), lambda i, t: (i, 0, 0)),   # whole image resident
            pl.BlockSpec((9, ci, cop), lambda i, t: (0, 0, 0)),      # resident weight
            pl.BlockSpec((1, cop), lambda i, t: (0, 0)),             # resident bias
        ],
        out_specs=pl.BlockSpec((1, bt, cop), lambda i, t: (i, t, 0)),
        compiler_params=pltpu.CompilerParams(
            dimension_semantics=("parallel", "parallel")),
    )(xflat, w9, bias2d)
    # TODO(synk): for very large H*W, bound VMEM by fetching only the halo'd
    # row tile (manual make_async_copy) instead of the whole padded image.

    # Drop the tail rows and the two garbage "seam" columns of each image row.
    out = out_flat[:, :r, :].reshape(n, h, wp, cop)[:, :, :w, :]
    return out


def _avgpool2(y_nhwc):
    """2x2 mean pool with a gridded, lane-dense Pallas kernel."""
    n, h, w, c = y_nhwc.shape
    # TODO(synk): odd H/W (AvgPool2d floors) not handled; ProGAN sizes are even.
    assert h % 2 == 0 and w % 2 == 0
    m = n * (h // 2)
    wh = w // 2
    xr = y_nhwc.reshape(m, 2, wh, 2 * c)          # free reshape (contiguous)
    tr = _pick_tile(m, 256)
    out = pl.pallas_call(
        _avgpool2_kernel,
        out_shape=jax.ShapeDtypeStruct((m, wh, c), y_nhwc.dtype),
        grid=(m // tr,),
        in_specs=[pl.BlockSpec((tr, 2, wh, 2 * c), lambda i: (i, 0, 0, 0))],
        out_specs=pl.BlockSpec((tr, wh, c), lambda i: (i, 0, 0)),
        compiler_params=pltpu.CompilerParams(dimension_semantics=("parallel",)),
    )(xr)
    return out.reshape(n, h // 2, wh, c)


# --------------------------------- module ------------------------------------

class ProGANDiscriminatorBlockPallas:
    """Forward pass of ProGANDiscriminatorBlock (final=False, rgb=True)."""

    def __init__(self, in_channels, out_channels, key,
                 final=False, rgb=True, num_semantics=3, aspect_ratio=1):
        # TODO(synk): final=True branch (4x4 valid conv + EqualizedLinear) not implemented.
        assert not final
        self.in_channels = in_channels
        self.out_channels = out_channels

        k1, k2, k3, k4 = jax.random.split(key, 4)
        # PyTorch EqualizedConv2d weight shape: (Cout, Cin, kH, kW), N(0,1) init.
        self.w1 = jax.random.normal(k1, (in_channels, in_channels, 3, 3), jnp.float32)
        self.w2 = jax.random.normal(k2, (out_channels, in_channels, 3, 3), jnp.float32)
        # The module zero-inits biases; use small nonzero values so the bias
        # path is exercised in the numerical check.
        self.b1 = 0.1 * jax.random.normal(k3, (in_channels,), jnp.float32)
        self.b2 = 0.1 * jax.random.normal(k4, (out_channels,), jnp.float32)
        # equalized-lr runtime scale: sqrt(gain / fan_in), gain = 2 (default)
        fan_in = in_channels * 3 * 3
        self.scale1 = float(np.sqrt(2.0 / fan_in))
        self.scale2 = float(np.sqrt(2.0 / fan_in))

        # Pre-pack weights once (transpose/reshape/scale/pad/cast), not per call.
        cop1 = _round_up(in_channels, LANE)       # conv1 lane-padded Cout
        cop2 = _round_up(out_channels, LANE)      # conv2 lane-padded Cout
        self._cop2 = cop2
        self.w1k = self._pack_weight(self.w1, self.scale1, cin_pad=in_channels, cout_pad=cop1)
        self.w2k = self._pack_weight(self.w2, self.scale2, cin_pad=cop1, cout_pad=cop2)
        self.b1k = jnp.pad(self.b1, (0, cop1 - in_channels)).reshape(1, cop1)
        self.b2k = jnp.pad(self.b2, (0, cop2 - out_channels)).reshape(1, cop2)

    @staticmethod
    def _pack_weight(w_oihw, scale, cin_pad, cout_pad):
        co, ci = w_oihw.shape[0], w_oihw.shape[1]
        # (Cout, Cin, kH, kW) -> (kH, kW, Cin, Cout) -> (9, Cin, Cout), pre-scaled,
        # zero-padded on both channel dims, bf16 for the MXU.
        wm = jnp.transpose(w_oihw, (2, 3, 1, 0)).reshape(9, ci, co) * scale
        wm = jnp.pad(wm, ((0, 0), (0, cin_pad - ci), (0, cout_pad - co)))
        return wm.astype(jnp.bfloat16)

    def __call__(self, x_nchw):
        x = jnp.transpose(x_nchw, (0, 2, 3, 1)).astype(jnp.bfloat16)     # NCHW -> NHWC bf16
        # conv1 -> LReLU (bf16 output feeds conv2; pad lanes are exact zeros)
        h = _conv3x3_lrelu(x, self.w1k, self.b1k, out_dtype=jnp.bfloat16)
        # conv2 -> LReLU (f32 output for the pool / final result)
        h = _conv3x3_lrelu(h, self.w2k, self.b2k, out_dtype=jnp.float32)
        # fused-ish 2x2 mean pool (gridded, lane-dense)
        h = _avgpool2(h)
        h = h[:, :, :, : self.out_channels]                              # drop lane padding
        return jnp.transpose(h, (0, 3, 1, 2)).astype(jnp.float32)        # NHWC -> NCHW


# ------------------------------ reference -----------------------------------

def _reference(x_nchw, blk):
    """Pure-XLA reference mimicking the kernel's bf16-input / f32-accumulate policy."""
    def q(a):
        return a.astype(jnp.bfloat16).astype(jnp.float32)

    def conv(x, w, b, scale):
        y = jax.lax.conv_general_dilated(
            x, q(w * scale), window_strides=(1, 1), padding=((1, 1), (1, 1)),
            dimension_numbers=("NCHW", "OIHW", "NCHW"))
        y = y + b[None, :, None, None]
        return jnp.where(y >= 0.0, y, NEG_SLOPE * y)

    h = conv(q(x_nchw), blk.w1, blk.b1, blk.scale1)
    h = conv(q(h), blk.w2, blk.b2, blk.scale2)
    h = jax.lax.reduce_window(h, 0.0, jax.lax.add,
                              (1, 1, 2, 2), (1, 1, 2, 2), "VALID") * 0.25
    return h


# --------------------------------- main --------------------------------------

if __name__ == "__main__":
    key = jax.random.PRNGKey(0)
    kx, kp = jax.random.split(key)

    N, Cin, Cout, H, W = 2, 4, 8, 16, 16
    x = jax.random.normal(kx, (N, Cin, H, W), jnp.float32)   # NCHW, like PyTorch

    block = ProGANDiscriminatorBlockPallas(Cin, Cout, kp, final=False, rgb=True)

    out = jax.block_until_ready(block(x))
    ref = jax.block_until_ready(_reference(x, block))

    assert out.shape == (N, Cout, H // 2, W // 2), out.shape
    # bf16 MXU inputs with f32 accumulation: compare against a reference using the
    # same bf16 rounding points; tolerance absorbs accumulation-order differences.
    np.testing.assert_allclose(np.asarray(out), np.asarray(ref), rtol=1e-2, atol=1e-2)

    print("KERNEL_OK")
</pallas_src>

<mosaic_0001>
module attributes {stable_mosaic.version = 11 : i64} {
  func.func @_conv3x3_kernel(%arg0: i32, %arg1: i32, %arg2: memref<1x326x4xbf16, #tpu.memory_space<vmem>>, %arg3: memref<9x4x128xbf16, #tpu.memory_space<vmem>>, %arg4: memref<1x128xf32, #tpu.memory_space<vmem>>, %arg5: memref<1x288x128xbf16, #tpu.memory_space<vmem>>) attributes {dimension_semantics = [#tpu.dimension_semantics<parallel>, #tpu.dimension_semantics<parallel>], iteration_bounds = array<i64: 2, 1>, scalar_prefetch = 0 : i64, scratch_operands = 0 : i64, tpu.core_type = #tpu.core_type<tc>, window_params = [{transform_indices = @transform_0, window_bounds = array<i64: 1, 326, 4>}, {pipeline_mode = #tpu.pipeline_mode<synchronous>, transform_indices = @transform_1, window_bounds = array<i64: 9, 4, 128>}, {pipeline_mode = #tpu.pipeline_mode<synchronous>, transform_indices = @transform_2, window_bounds = array<i64: 1, 128>}, {transform_indices = @transform_3, window_bounds = array<i64: 1, 288, 128>}]} {
    %c288_i32 = arith.constant 288 : i32
    %0 = arith.muli %arg1, %c288_i32 : i32
    %1 = tpu.assume_multiple %0, 8 : i32
    %c0 = arith.constant 0 : index
    %2 = arith.index_cast %1 : i32 to index
    %c0_0 = arith.constant 0 : index
    %3 = vector.load %arg2[%c0, %2, %c0_0] : memref<1x326x4xbf16, #tpu.memory_space<vmem>>, vector<1x326x4xbf16>
    %4 = vector.shape_cast %3 : vector<1x326x4xbf16> to vector<326x4xbf16>
    %cst = arith.constant 0.000000e+00 : f32
    %5 = vector.broadcast %cst : f32 to vector<288x128xf32>
    %6 = vector.extract_strided_slice %4 {offsets = [0, 0], sizes = [288, 4], strides = [1, 1]} : vector<326x4xbf16> to vector<288x4xbf16>
    %c0_1 = arith.constant 0 : index
    %c0_2 = arith.constant 0 : index
    %c0_3 = arith.constant 0 : index
    %7 = vector.load %arg3[%c0_1, %c0_2, %c0_3] : memref<9x4x128xbf16, #tpu.memory_space<vmem>>, vector<1x4x128xbf16>
    %8 = vector.shape_cast %7 : vector<1x4x128xbf16> to vector<4x128xbf16>
    %cst_4 = arith.constant dense<0.000000e+00> : vector<288x128xf32>
    %9 = tpu.matmul %6, %8, %cst_4 {dimension_numbers = #tpu.dot_dimension_numbers<[1], [0], [0], [1], [0, 0, 1, 1], [], []>} : vector<288x4xbf16>, vector<4x128xbf16>, vector<288x128xf32> -> vector<288x128xf32>
    %10 = arith.addf %5, %9 : vector<288x128xf32>
    %11 = vector.extract_strided_slice %4 {offsets = [1, 0], sizes = [288, 4], strides = [1, 1]} : vector<326x4xbf16> to vector<288x4xbf16>
    %c1 = arith.constant 1 : index
    %c0_5 = arith.constant 0 : index
    %c0_6 = arith.constant 0 : index
    %12 = vector.load %arg3[%c1, %c0_5, %c0_6] : memref<9x4x128xbf16, #tpu.memory_space<vmem>>, vector<1x4x128xbf16>
    %13 = vector.shape_cast %12 : vector<1x4x128xbf16> to vector<4x128xbf16>
    %cst_7 = arith.constant dense<0.000000e+00> : vector<288x128xf32>
    %14 = tpu.matmul %11, %13, %cst_7 {dimension_numbers = #tpu.dot_dimension_numbers<[1], [0], [0], [1], [0, 0, 1, 1], [], []>} : vector<288x4xbf16>, vector<4x128xbf16>, vector<288x128xf32> -> vector<288x128xf32>
    %15 = arith.addf %10, %14 : vector<288x128xf32>
    %16 = vector.extract_strided_slice %4 {offsets = [2, 0], sizes = [288, 4], strides = [1, 1]} : vector<326x4xbf16> to vector<288x4xbf16>
    %c2 = arith.constant 2 : index
    %c0_8 = arith.constant 0 : index
    %c0_9 = arith.constant 0 : index
    %17 = vector.load %arg3[%c2, %c0_8, %c0_9] : memref<9x4x128xbf16, #tpu.memory_space<vmem>>, vector<1x4x128xbf16>
    %18 = vector.shape_cast %17 : vector<1x4x128xbf16> to vector<4x128xbf16>
    %cst_10 = arith.constant dense<0.000000e+00> : vector<288x128xf32>
    %19 = tpu.matmul %16, %18, %cst_10 {dimension_numbers = #tpu.dot_dimension_numbers<[1], [0], [0], [1], [0, 0, 1, 1], [], []>} : vector<288x4xbf16>, vector<4x128xbf16>, vector<288x128xf32> -> vector<288x128xf32>
    %20 = arith.addf %15, %19 : vector<288x128xf32>
    %21 = vector.extract_strided_slice %4 {offsets = [18, 0], sizes = [288, 4], strides = [1, 1]} : vector<326x4xbf16> to vector<288x4xbf16>
    %c3 = arith.constant 3 : index
    %c0_11 = arith.constant 0 : index
    %c0_12 = arith.constant 0 : index
    %22 = vector.load %arg3[%c3, %c0_11, %c0_12] : memref<9x4x128xbf16, #tpu.memory_space<vmem>>, vector<1x4x128xbf16>
    %23 = vector.shape_cast %22 : vector<1x4x128xbf16> to vector<4x128xbf16>
    %cst_13 = arith.constant dense<0.000000e+00> : vector<288x128xf32>
    %24 = tpu.matmul %21, %23, %cst_13 {dimension_numbers = #tpu.dot_dimension_numbers<[1], [0], [0], [1], [0, 0, 1, 1], [], []>} : vector<288x4xbf16>, vector<4x128xbf16>, vector<288x128xf32> -> vector<288x128xf32>
    %25 = arith.addf %20, %24 : vector<288x128xf32>
    %26 = vector.extract_strided_slice %4 {offsets = [19, 0], sizes = [288, 4], strides = [1, 1]} : vector<326x4xbf16> to vector<288x4xbf16>
    %c4 = arith.constant 4 : index
    %c0_14 = arith.constant 0 : index
    %c0_15 = arith.constant 0 : index
    %27 = vector.load %arg3[%c4, %c0_14, %c0_15] : memref<9x4x128xbf16, #tpu.memory_space<vmem>>, vector<1x4x128xbf16>
    %28 = vector.shape_cast %27 : vector<1x4x128xbf16> to vector<4x128xbf16>
    %cst_16 = arith.constant dense<0.000000e+00> : vector<288x128xf32>
    %29 = tpu.matmul %26, %28, %cst_16 {dimension_numbers = #tpu.dot_dimension_numbers<[1], [0], [0], [1], [0, 0, 1, 1], [], []>} : vector<288x4xbf16>, vector<4x128xbf16>, vector<288x128xf32> -> vector<288x128xf32>
    %30 = arith.addf %25, %29 : vector<288x128xf32>
    %31 = vector.extract_strided_slice %4 {offsets = [20, 0], sizes = [288, 4], strides = [1, 1]} : vector<326x4xbf16> to vector<288x4xbf16>
    %c5 = arith.constant 5 : index
    %c0_17 = arith.constant 0 : index
    %c0_18 = arith.constant 0 : index
    %32 = vector.load %arg3[%c5, %c0_17, %c0_18] : memref<9x4x128xbf16, #tpu.memory_space<vmem>>, vector<1x4x128xbf16>
    %33 = vector.shape_cast %32 : vector<1x4x128xbf16> to vector<4x128xbf16>
    %cst_19 = arith.constant dense<0.000000e+00> : vector<288x128xf32>
    %34 = tpu.matmul %31, %33, %cst_19 {dimension_numbers = #tpu.dot_dimension_numbers<[1], [0], [0], [1], [0, 0, 1, 1], [], []>} : vector<288x4xbf16>, vector<4x128xbf16>, vector<288x128xf32> -> vector<288x128xf32>
    %35 = arith.addf %30, %34 : vector<288x128xf32>
    %36 = vector.extract_strided_slice %4 {offsets = [36, 0], sizes = [288, 4], strides = [1, 1]} : vector<326x4xbf16> to vector<288x4xbf16>
    %c6 = arith.constant 6 : index
    %c0_20 = arith.constant 0 : index
    %c0_21 = arith.constant 0 : index
    %37 = vector.load %arg3[%c6, %c0_20, %c0_21] : memref<9x4x128xbf16, #tpu.memory_space<vmem>>, vector<1x4x128xbf16>
    %38 = vector.shape_cast %37 : vector<1x4x128xbf16> to vector<4x128xbf16>
    %cst_22 = arith.constant dense<0.000000e+00> : vector<288x128xf32>
    %39 = tpu.matmul %36, %38, %cst_22 {dimension_numbers = #tpu.dot_dimension_numbers<[1], [0], [0], [1], [0, 0, 1, 1], [], []>} : vector<288x4xbf16>, vector<4x128xbf16>, vector<288x128xf32> -> vector<288x128xf32>
    %40 = arith.addf %35, %39 : vector<288x128xf32>
    %41 = vector.extract_strided_slice %4 {offsets = [37, 0], sizes = [288, 4], strides = [1, 1]} : vector<326x4xbf16> to vector<288x4xbf16>
    %c7 = arith.constant 7 : index
    %c0_23 = arith.constant 0 : index
    %c0_24 = arith.constant 0 : index
    %42 = vector.load %arg3[%c7, %c0_23, %c0_24] : memref<9x4x128xbf16, #tpu.memory_space<vmem>>, vector<1x4x128xbf16>
    %43 = vector.shape_cast %42 : vector<1x4x128xbf16> to vector<4x128xbf16>
    %cst_25 = arith.constant dense<0.000000e+00> : vector<288x128xf32>
    %44 = tpu.matmul %41, %43, %cst_25 {dimension_numbers = #tpu.dot_dimension_numbers<[1], [0], [0], [1], [0, 0, 1, 1], [], []>} : vector<288x4xbf16>, vector<4x128xbf16>, vector<288x128xf32> -> vector<288x128xf32>
    %45 = arith.addf %40, %44 : vector<288x128xf32>
    %46 = vector.extract_strided_slice %4 {offsets = [38, 0], sizes = [288, 4], strides = [1, 1]} : vector<326x4xbf16> to vector<288x4xbf16>
    %c8 = arith.constant 8 : index
    %c0_26 = arith.constant 0 : index
    %c0_27 = arith.constant 0 : index
    %47 = vector.load %arg3[%c8, %c0_26, %c0_27] : memref<9x4x128xbf16, #tpu.memory_space<vmem>>, vector<1x4x128xbf16>
    %48 = vector.shape_cast %47 : vector<1x4x128xbf16> to vector<4x128xbf16>
    %cst_28 = arith.constant dense<0.000000e+00> : vector<288x128xf32>
    %49 = tpu.matmul %46, %48, %cst_28 {dimension_numbers = #tpu.dot_dimension_numbers<[1], [0], [0], [1], [0, 0, 1, 1], [], []>} : vector<288x4xbf16>, vector<4x128xbf16>, vector<288x128xf32> -> vector<288x128xf32>
    %50 = arith.addf %45, %49 : vector<288x128xf32>
    %c0_29 = arith.constant 0 : index
    %c0_30 = arith.constant 0 : index
    %51 = vector.load %arg4[%c0_29, %c0_30] : memref<1x128xf32, #tpu.memory_space<vmem>>, vector<1x128xf32>
    %52 = vector.broadcast %51 : vector<1x128xf32> to vector<288x128xf32>
    %53 = arith.addf %50, %52 : vector<288x128xf32>
    %cst_31 = arith.constant 0.000000e+00 : f32
    %54 = vector.broadcast %cst_31 : f32 to vector<288x128xf32>
    %55 = arith.cmpf oge, %53, %54 : vector<288x128xf32>
    %cst_32 = arith.constant 2.000000e-01 : f32
    %56 = vector.broadcast %cst_32 : f32 to vector<288x128xf32>
    %57 = arith.mulf %56, %53 : vector<288x128xf32>
    %58 = arith.select %55, %53, %57 : vector<288x128xi1>, vector<288x128xf32>
    %59 = arith.truncf %58 : vector<288x128xf32> to vector<288x128xbf16>
    %c0_33 = arith.constant 0 : index
    %c0_34 = arith.constant 0 : index
    %c0_35 = arith.constant 0 : index
    %60 = vector.load %arg5[%c0_33, %c0_34, %c0_35] : memref<1x288x128xbf16, #tpu.memory_space<vmem>>, vector<1x288x128xbf16>
    %61 = vector.shape_cast %60 : vector<1x288x128xbf16> to vector<288x128xbf16>
    %62 = vector.shape_cast %59 : vector<288x128xbf16> to vector<1x288x128xbf16>
    tpu.vector_store %arg5[%c0_33, %c0_34, %c0_35], %62 {strides = array<i32>} : memref<1x288x128xbf16, #tpu.memory_space<vmem>>, vector<1x288x128xbf16>,
    return
  }
  func.func @transform_0(%arg0: i32, %arg1: i32) -> (i32, i32, i32) {
    %c0_i32 = arith.constant 0 : i32
    %c0_i32_0 = arith.constant 0 : i32
    %c0_i32_1 = arith.constant 0 : i32
    return %arg0, %c0_i32, %c0_i32_0 : i32, i32, i32
  }
  func.func @transform_1(%arg0: i32, %arg1: i32) -> (i32, i32, i32) {
    %c0_i32 = arith.constant 0 : i32
    %c0_i32_0 = arith.constant 0 : i32
    %c0_i32_1 = arith.constant 0 : i32
    %c0_i32_2 = arith.constant 0 : i32
    return %c0_i32, %c0_i32_0, %c0_i32_1 : i32, i32, i32
  }
  func.func @transform_2(%arg0: i32, %arg1: i32) -> (i32, i32) {
    %c0_i32 = arith.constant 0 : i32
    %c0_i32_0 = arith.constant 0 : i32
    %c0_i32_1 = arith.constant 0 : i32
    return %c0_i32, %c0_i32_0 : i32, i32
  }
  func.func @transform_3(%arg0: i32, %arg1: i32) -> (i32, i32, i32) {
    %c0_i32 = arith.constant 0 : i32
    %c0_i32_0 = arith.constant 0 : i32
    return %arg0, %arg1, %c0_i32 : i32, i32, i32
  }
}

</mosaic_0001>

<llo_original>
// kernel: tpu_custom_call.1
$region0: #{tpu_custom_call.1}
  #allocation0 [shape = 'u32[]', space=smem, size = 0x4, offset = 0x4, fixed_abs, tag = 'smem constant byte address 0x4 - core index']
  #allocation1 [shape = 'u32[144,128]{1,0:T(1,128)}', space=vmem, size = 0x12000, scoped, tag = 'internal scratch']
  %s0 = inlined_call_operand.vmem [shape: bf16[2,326,4], index: 0, kind: input, shape index: {}]
  %s1 = inlined_call_operand.vmem [shape: bf16[9,4,128], index: 1, kind: input, shape index: {}]
  %s2 = inlined_call_operand.vmem [shape: f32[1,128], index: 2, kind: input, shape index: {}]
  %s3 = inlined_call_operand.hbm [shape: bf16[2,288,128], index: 3, kind: output, shape index: {}]
  %s4 = sld [smem:[#allocation0]]
  $region45: #{tpu_custom_call.1} parent=0
    _
  %s6 = ssub.s32 1, %s4
  %s7 = scalar_select 0, %s6, %s4
  $region1: #{tpu_custom_call.1} parent=0
    #allocation2 [shape = 'u8[147456]{0}', space=vmem, size = 0x24000, scoped, tag = 'output window, operand 0']
    #allocation3 [shape = 's32[2]{0}', space=sflag, size = 0x8, scoped, tag = 'scoped memory for tpu_custom_call.1']
    %8 = vsyncpa [#allocation3], 0
    %s9 = scalar_lea.sflag [#allocation3], 1
    %10 = vsyncpa %s9, 0
    loop: start=0, step=1, limit=4
    $region2: #{tpu_custom_call.1} parent=1 // loop_pre_header
      _
    $region3: #{tpu_custom_call.1} parent=1 // loop_header
      %s12 = sphi 0, %s16
      %p13 = scmp.ge.s32.totalorder %s12, 4
      %s19 = sphi 0, %s31
      %s20 = sphi 0, %s27
      %s21 = sphi 0, %s19
      %s22 = sphi 0, %s20
      %s23 = sphi 0, %s21
      %s24 = sphi 0, %s22
      %s34 = sphi 0, %s36
      %s37 = sphi 0, %s34
      %s38 = sphi 0, %s37
      %s54 = sphi 0, %s38
      %s58 = sphi 0, %s58
      %s60 = sphi 0, %s58
      %s61 = sphi 0, %s60
      %s75 = sphi 0, %s61
      %s79 = sphi 0, %s79
      %s81 = sphi 0, %s79
      %s82 = sphi 0, %s81
      %s96 = sphi 0, %s82
      %s104 = sphi 0, %s106
      %s107 = sphi 0, %s104
      %s108 = sphi 0, %s107
      %s124 = sphi 0, %s108
    $region4: #{tpu_custom_call.1} parent=1 // loop_header_branch
      %15 = sbr.rel (%p13) target = $region8
    $region5: #{tpu_custom_call.1} parent=1 // loop_body
      %s17 = ssub.s32 %s12, 1
      %s18 = ssub.s32 %s12, 2
      %s25 = sadd.s32 1, %s20
      %p26 = scmp.ge.s32.totalorder %s25, 1
      %s27 = scalar_select %p26, 0, %s25
      %s28 = sadd.s32 1, %s19
      %s29 = scalar_select %p26, %s28, %s19
      %p30 = scmp.ge.s32.totalorder %s29, 2
      %s31 = scalar_select %p30, 0, %s29
      %s32 = ssub.s32 %s19, %s31
      %p33 = scmp.eq.s32.totalorder %s32, 0
      %s35 = sadd.s32 %s34, 1
      %s36 = scalar_select %p33, %s34, %s35
      %p39 = pneg %p33
      %p40 = scmp.eq.s32.totalorder %s12, 1
      %p41 = por %p39, %p40
      %p42 = scmp.ne.s32.totalorder %s34, %s37
      %p43 = scmp.eq.s32.totalorder %s12, 0
      %p44 = por %p42, %p43
      %p45 = scmp.ne.s32.totalorder %s34, %s37
      %p46 = scmp.eq.s32.totalorder %s17, 1
      %p47 = por %p45, %p46
      %p48 = scmp.ne.s32.totalorder %s37, %s38
      %p49 = scmp.eq.s32.totalorder %s17, 0
      %p50 = por %p48, %p49
      %p51 = scmp.ne.s32.totalorder %s37, %s38
      %p52 = scmp.eq.s32.totalorder %s18, 1
      %p53 = por %p51, %p52
      %p55 = scmp.ne.s32.totalorder %s38, %s54
      %p56 = scmp.eq.s32.totalorder %s18, 0
      %p57 = por %p55, %p56
      %s59 = sadd.s32 %s58, 1
      %p62 = scmp.eq.s32.totalorder %s12, 1
      %p63 = scmp.ne.s32.totalorder %s58, %s60
      %p64 = scmp.eq.s32.totalorder %s12, 0
      %p65 = por %p63, %p64
      %p66 = scmp.ne.s32.totalorder %s58, %s60
      %p67 = scmp.eq.s32.totalorder %s17, 1
      %p68 = por %p66, %p67
      %p69 = scmp.ne.s32.totalorder %s60, %s61
      %p70 = scmp.eq.s32.totalorder %s17, 0
      %p71 = por %p69, %p70
      %p72 = scmp.ne.s32.totalorder %s60, %s61
      %p73 = scmp.eq.s32.totalorder %s18, 1
      %p74 = por %p72, %p73
      %p76 = scmp.ne.s32.totalorder %s61, %s75
      %p77 = scmp.eq.s32.totalorder %s18, 0
      %p78 = por %p76, %p77
      %s80 = sadd.s32 %s79, 1
      %p83 = scmp.eq.s32.totalorder %s12, 1
      %p84 = scmp.ne.s32.totalorder %s79, %s81
      %p85 = scmp.eq.s32.totalorder %s12, 0
      %p86 = por %p84, %p85
      %p87 = scmp.ne.s32.totalorder %s79, %s81
      %p88 = scmp.eq.s32.totalorder %s17, 1
      %p89 = por %p87, %p88
      %p90 = scmp.ne.s32.totalorder %s81, %s82
      %p91 = scmp.eq.s32.totalorder %s17, 0
      %p92 = por %p90, %p91
      %p93 = scmp.ne.s32.totalorder %s81, %s82
      %p94 = scmp.eq.s32.totalorder %s18, 1
      %p95 = por %p93, %p94
      %p97 = scmp.ne.s32.totalorder %s82, %s96
      %p98 = scmp.eq.s32.totalorder %s18, 0
      %p99 = por %p97, %p98
      %s100 = ssub.s32 %s19, %s31
      %s101 = ssub.s32 %s20, %s27
      %s102 = sor.u32 %s100, %s101
      %p103 = scmp.eq.s32.totalorder %s102, 0
      %s105 = sadd.s32 %s104, 1
      %s106 = scalar_select %p103, %s104, %s105
      %p109 = pneg %p103
      %p110 = scmp.eq.s32.totalorder %s12, 1
      %p111 = por %p109, %p110
      %p112 = scmp.ne.s32.totalorder %s104, %s107
      %p113 = scmp.eq.s32.totalorder %s12, 0
      %p114 = por %p112, %p113
      %p115 = scmp.ne.s32.totalorder %s104, %s107
      %p116 = scmp.eq.s32.totalorder %s17, 1
      %p117 = por %p115, %p116
      %p118 = scmp.ne.s32.totalorder %s107, %s108
      %p119 = scmp.eq.s32.totalorder %s17, 0
      %p120 = por %p118, %p119
      %p121 = scmp.ne.s32.totalorder %s107, %s108
      %p122 = scmp.eq.s32.totalorder %s18, 1
      %p123 = por %p121, %p122
      %p125 = scmp.ne.s32.totalorder %s108, %s124
      %p126 = scmp.eq.s32.totalorder %s18, 0
      %p127 = por %p125, %p126
      %p128 = scmp.le.s32.totalorder 1, %s12
      %p129 = scmp.lt.s32.totalorder %s12, 3
      %p130 = pnand %p128, %p129
      %p131 = pneg %p130
      // Predicated region
      $region9: #{tpu_custom_call.1} parent=5 // pred_check
        _
      $region10: #{tpu_custom_call.1} parent=5 // pred_check_branch
        %133 = sbr.rel (%p130) target = $region12
      $region11: #{tpu_custom_call.1} parent=5 // pred_region
        %s134 = ssub.s32 %s12, 1
        // Predicated region
        $region13: #{tpu_custom_call.1} parent=11 // pred_check
          %p135 = pneg %p71
        $region14: #{tpu_custom_call.1} parent=11 // pred_check_branch
          %137 = sbr.rel (%p135) target = $region16
        $region15: #{tpu_custom_call.1} parent=11 // pred_region
          _
        $region16: #{tpu_custom_call.1} parent=11 // pred_fallthru
          _
        // Predicated region
        $region17: #{tpu_custom_call.1} parent=11 // pred_check
          %p138 = pneg %p92
        $region18: #{tpu_custom_call.1} parent=11 // pred_check_branch
          %140 = sbr.rel (%p138) target = $region20
        $region19: #{tpu_custom_call.1} parent=11 // pred_region
          _
        $region20: #{tpu_custom_call.1} parent=11 // pred_fallthru
          _
      $region12: #{tpu_custom_call.1} parent=5 // pred_fallthru
        _
      %p141 = scmp.lt.s32.totalorder %s12, 2
      // Predicated region
      $region21: #{tpu_custom_call.1} parent=5 // pred_check
        %p142 = pneg %p141
      $region22: #{tpu_custom_call.1} parent=5 // pred_check_branch
        %144 = sbr.rel (%p142) target = $region24
      $region23: #{tpu_custom_call.1} parent=5 // pred_region
        // Predicated region
        $region25: #{tpu_custom_call.1} parent=23 // pred_check
          %p145 = pneg %p44
        $region26: #{tpu_custom_call.1} parent=23 // pred_check_branch
          %147 = sbr.rel (%p145) target = $region28
        $region27: #{tpu_custom_call.1} parent=23 // pred_region
          %p148 = scmp.lt.s32.totalorder %s19, 1
          %s149 = scalar_select %p148, %s19, 1
          %s150 = smul.addr %s149, 41
          %s151 = smul.addr %s150, 4
          %s152 = scalar_lea.vmem %s0, %s151
        $region28: #{tpu_custom_call.1} parent=23 // pred_fallthru
          _
      $region24: #{tpu_custom_call.1} parent=5 // pred_fallthru
        _
      %p153 = scmp.le.s32.totalorder 1, %s12
      %p154 = scmp.lt.s32.totalorder %s12, 3
      %p155 = pnand %p153, %p154
      %p156 = pneg %p155
      // Predicated region
      $region29: #{tpu_custom_call.1} parent=5 // pred_check
        _
      $region30: #{tpu_custom_call.1} parent=5 // pred_check_branch
        %158 = sbr.rel (%p155) target = $region32
      $region31: #{tpu_custom_call.1} parent=5 // pred_region
        %s159 = ssub.s32 %s12, 1
        %p160 = scmp.lt.s32.totalorder %s21, 1
        %s161 = scalar_select %p160, %s21, 1
        %s162 = smul.addr %s161, 41
        %s163 = smul.addr %s162, 4
        %s164 = scalar_lea.vmem %s0, %s163
        %p165 = pneg %p50
        %p166 = pneg %p47
        %p167 = pneg %p71
        %p168 = pneg %p68
        %p169 = pneg %p92
        %p170 = pneg %p89
        %p171 = pneg %p120
        %p172 = pneg %p117
        %s173 = sand.u32 %s107, 1
        %s174 = scalar_lea.sflag [#allocation3], %s173
        %s175 = sand.u32 %s107, 1
        %s176 = smul.addr %s175, 144
        %s177 = scalar_lea.vmem [#allocation2], %s176
        %p178 = scmp.lt.s32.totalorder %s21, 1
        %s179 = scalar_select %p178, %s21, 1
        %s180 = smul.addr %s179, 41
        %s181 = smul.addr %s180, 4
        %s182 = scalar_lea.vmem %s0, %s181
        %s183 = smul.u32 36, %s22
        %s185 = smul.u32 %s22, 288
        %s186 = sshra.s32 %s185, 3
        %s187 = sand.u32 %s185, 7
        %s188 = smul.addr %s186, 4
        %s189 = scalar_lea.vmem %s182, %s188
        %v190 = vld [vmem:[%s189] sm:$0xf]
        %v191 = vld [vmem:[%s189 + $0x4] sm:$0xf]
        %v192 = vld [vmem:[%s189 + $0x8] sm:$0xf]
        %v193 = vld [vmem:[%s189 + $0xc] sm:$0xf]
        %v194 = vld [vmem:[%s189 + $0x10] sm:$0xf]
        %v195 = vld [vmem:[%s189 + $0x14] sm:$0xf]
        %v196 = vld [vmem:[%s189 + $0x18] sm:$0xf]
        %v197 = vld [vmem:[%s189 + $0x1c] sm:$0xf]
        %v198 = vld [vmem:[%s189 + $0x20] sm:$0xf]
        %v199 = vld [vmem:[%s189 + $0x24] sm:$0xf]
        %v200 = vld [vmem:[%s189 + $0x28] sm:$0xf]
        %v201 = vld [vmem:[%s189 + $0x2c] sm:$0xf]
        %v202 = vld [vmem:[%s189 + $0x30] sm:$0xf]
        %v203 = vld [vmem:[%s189 + $0x34] sm:$0xf]
        %v204 = vld [vmem:[%s189 + $0x38] sm:$0xf]
        %v205 = vld [vmem:[%s189 + $0x3c] sm:$0xf]
        %v206 = vld [vmem:[%s189 + $0x40] sm:$0xf]
        %v207 = vld [vmem:[%s189 + $0x44] sm:$0xf]
        %v208 = vld [vmem:[%s189 + $0x48] sm:$0xf]
        %v209 = vld [vmem:[%s189 + $0x4c] sm:$0xf]
        %v210 = vld [vmem:[%s189 + $0x50] sm:$0xf]
        %v211 = vld [vmem:[%s189 + $0x54] sm:$0xf]
        %v212 = vld [vmem:[%s189 + $0x58] sm:$0xf]
        %v213 = vld [vmem:[%s189 + $0x5c] sm:$0xf]
        %v214 = vld [vmem:[%s189 + $0x60] sm:$0xf]
        %v215 = vld [vmem:[%s189 + $0x64] sm:$0xf]
        %v216 = vld [vmem:[%s189 + $0x68] sm:$0xf]
        %v217 = vld [vmem:[%s189 + $0x6c] sm:$0xf]
        %v218 = vld [vmem:[%s189 + $0x70] sm:$0xf]
        %v219 = vld [vmem:[%s189 + $0x74] sm:$0xf]
        %v220 = vld [vmem:[%s189 + $0x78] sm:$0xf]
        %v221 = vld [vmem:[%s189 + $0x7c] sm:$0xf]
        %v222 = vld [vmem:[%s189 + $0x80] sm:$0xf]
        %v223 = vld [vmem:[%s189 + $0x84] sm:$0xf]
        %v224 = vld [vmem:[%s189 + $0x88] sm:$0xf]
        %v225 = vld [vmem:[%s189 + $0x8c] sm:$0xf]
        %v226 = vld [vmem:[%s189 + $0x90] sm:$0xf]
        %v227 = vld [vmem:[%s189 + $0x94] sm:$0xf]
        %v228 = vld [vmem:[%s189 + $0x98] sm:$0xf]
        %v229 = vld [vmem:[%s189 + $0x9c] sm:$0xf]
        %v230 = vld [vmem:[%s189 + $0xa0] sm:$0x7]
        %v231 = vld [vmem:[%s1] sm:$0x3]
        %s232 = scalar_lea.vmem %s1, 2
        %v233 = vld [vmem:[%s232] sm:$0x3]
        %v271 = vunpack.c.l.b16 %v190
        %v272 = vunpack.c.l.b16 %v191
        %v273 = vunpack.c.l.b16 %v192
        %v274 = vunpack.c.l.b16 %v193
        %v275 = vunpack.c.l.b16 %v194
        %v276 = vunpack.c.l.b16 %v195
        %v277 = vunpack.c.l.b16 %v196
        %v278 = vunpack.c.l.b16 %v197
        %v279 = vunpack.c.l.b16 %v198
        %v280 = vunpack.c.l.b16 %v199
        %v281 = vunpack.c.l.b16 %v200
        %v282 = vunpack.c.l.b16 %v201
        %v283 = vunpack.c.l.b16 %v202
        %v284 = vunpack.c.l.b16 %v203
        %v285 = vunpack.c.l.b16 %v204
        %v286 = vunpack.c.l.b16 %v205
        %v287 = vunpack.c.l.b16 %v206
        %v288 = vunpack.c.l.b16 %v207
        %v289 = vunpack.c.l.b16 %v208
        %v290 = vunpack.c.l.b16 %v209
        %v291 = vunpack.c.l.b16 %v210
        %v292 = vunpack.c.l.b16 %v211
        %v293 = vunpack.c.l.b16 %v212
        %v294 = vunpack.c.l.b16 %v213
        %v295 = vunpack.c.l.b16 %v214
        %v296 = vunpack.c.l.b16 %v215
        %v297 = vunpack.c.l.b16 %v216
        %v298 = vunpack.c.l.b16 %v217
        %v299 = vunpack.c.l.b16 %v218
        %v300 = vunpack.c.l.b16 %v219
        %v301 = vunpack.c.l.b16 %v220
        %v302 = vunpack.c.l.b16 %v221
        %v303 = vunpack.c.l.b16 %v222
        %v304 = vunpack.c.l.b16 %v223
        %v305 = vunpack.c.l.b16 %v224
        %v306 = vunpack.c.l.b16 %v225
        %v307 = vunpack.c.l.b16 %v226
        %v308 = vpack.c.b16 %v272, %v271
        %v309 = vpack.c.b16 %v274, %v273
        %v310 = vpack.c.b16 %v276, %v275
        %v311 = vpack.c.b16 %v278, %v277
        %v312 = vpack.c.b16 %v280, %v279
        %v313 = vpack.c.b16 %v282, %v281
        %v314 = vpack.c.b16 %v284, %v283
        %v315 = vpack.c.b16 %v286, %v285
        %v316 = vpack.c.b16 %v288, %v287
        %v317 = vpack.c.b16 %v290, %v289
        %v318 = vpack.c.b16 %v292, %v291
        %v319 = vpack.c.b16 %v294, %v293
        %v320 = vpack.c.b16 %v296, %v295
        %v321 = vpack.c.b16 %v298, %v297
        %v322 = vpack.c.b16 %v300, %v299
        %v323 = vpack.c.b16 %v302, %v301
        %v324 = vpack.c.b16 %v304, %v303
        %v325 = vpack.c.b16 %v306, %v305
        %v326 = vpack.c.b16 %v307, %v307
        %vm327 = vsmask.f32 7424
        %v329 = vshrl.u32 %v308, 16
        %v331 = vshll.u32 %v308, 16
        %v333 = vrot.slane %v331, 1
        %v334 = vor.u32 %v329, %v333
        %v336 = vshll.u32 %v309, 16
        %v338 = vrot.slane %v336, 1
        %v339 = vsel %vm327, %v334, %v338
        %v340 = vshrl.u32 %v309, 16
        %v342 = vor.u32 %v340, %v338
        %v344 = vshll.u32 %v310, 16
        %v346 = vrot.slane %v344, 1
        %v347 = vsel %vm327, %v342, %v346
        %v348 = vshrl.u32 %v310, 16
        %v350 = vor.u32 %v348, %v346
        %v352 = vshll.u32 %v311, 16
        %v354 = vrot.slane %v352, 1
        %v355 = vsel %vm327, %v350, %v354
        %v356 = vshrl.u32 %v311, 16
        %v358 = vor.u32 %v356, %v354
        %v360 = vshll.u32 %v312, 16
        %v362 = vrot.slane %v360, 1
        %v363 = vsel %vm327, %v358, %v362
        %v364 = vshrl.u32 %v312, 16
        %v366 = vor.u32 %v364, %v362
        %v368 = vshll.u32 %v313, 16
        %v370 = vrot.slane %v368, 1
        %v371 = vsel %vm327, %v366, %v370
        %v372 = vshrl.u32 %v313, 16
        %v374 = vor.u32 %v372, %v370
        %v376 = vshll.u32 %v314, 16
        %v378 = vrot.slane %v376, 1
        %v379 = vsel %vm327, %v374, %v378
        %v380 = vshrl.u32 %v314, 16
        %v382 = vor.u32 %v380, %v378
        %v384 = vshll.u32 %v315, 16
        %v386 = vrot.slane %v384, 1
        %v387 = vsel %vm327, %v382, %v386
        %v388 = vshrl.u32 %v315, 16
        %v390 = vor.u32 %v388, %v386
        %v392 = vshll.u32 %v316, 16
        %v394 = vrot.slane %v392, 1
        %v395 = vsel %vm327, %v390, %v394
        %v396 = vshrl.u32 %v316, 16
        %v398 = vor.u32 %v396, %v394
        %v400 = vshll.u32 %v317, 16
        %v402 = vrot.slane %v400, 1
        %v403 = vsel %vm327, %v398, %v402
        %v404 = vshrl.u32 %v317, 16
        %v406 = vor.u32 %v404, %v402
        %v408 = vshll.u32 %v318, 16
        %v410 = vrot.slane %v408, 1
        %v411 = vsel %vm327, %v406, %v410
        %v412 = vshrl.u32 %v318, 16
        %v414 = vor.u32 %v412, %v410
        %v416 = vshll.u32 %v319, 16
        %v418 = vrot.slane %v416, 1
        %v419 = vsel %vm327, %v414, %v418
        %v420 = vshrl.u32 %v319, 16
        %v422 = vor.u32 %v420, %v418
        %v424 = vshll.u32 %v320, 16
        %v426 = vrot.slane %v424, 1
        %v427 = vsel %vm327, %v422, %v426
        %v428 = vshrl.u32 %v320, 16
        %v430 = vor.u32 %v428, %v426
        %v432 = vshll.u32 %v321, 16
        %v434 = vrot.slane %v432, 1
        %v435 = vsel %vm327, %v430, %v434
        %v436 = vshrl.u32 %v321, 16
        %v438 = vor.u32 %v436, %v434
        %v440 = vshll.u32 %v322, 16
        %v442 = vrot.slane %v440, 1
        %v443 = vsel %vm327, %v438, %v442
        %v444 = vshrl.u32 %v322, 16
        %v446 = vor.u32 %v444, %v442
        %v448 = vshll.u32 %v323, 16
        %v450 = vrot.slane %v448, 1
        %v451 = vsel %vm327, %v446, %v450
        %v452 = vshrl.u32 %v323, 16
        %v454 = vor.u32 %v452, %v450
        %v456 = vshll.u32 %v324, 16
        %v458 = vrot.slane %v456, 1
        %v459 = vsel %vm327, %v454, %v458
        %v460 = vshrl.u32 %v324, 16
        %v462 = vor.u32 %v460, %v458
        %v464 = vshll.u32 %v325, 16
        %v466 = vrot.slane %v464, 1
        %v467 = vsel %vm327, %v462, %v466
        %v468 = vshrl.u32 %v325, 16
        %v470 = vor.u32 %v468, %v466
        %v472 = vshll.u32 %v326, 16
        %v474 = vrot.slane %v472, 1
        %v475 = vsel %vm327, %v470, %v474
        %vm476 = vcmask 31744
        %v478 = vsel %vm476, %v339, 0
        %v481 = vsel %vm476, %v347, 0
        %v484 = vsel %vm476, %v355, 0
        %v487 = vsel %vm476, %v363, 0
        %v490 = vsel %vm476, %v371, 0
        %v493 = vsel %vm476, %v379, 0
        %v496 = vsel %vm476, %v387, 0
        %v499 = vsel %vm476, %v395, 0
        %v502 = vsel %vm476, %v403, 0
        %v505 = vsel %vm476, %v411, 0
        %v508 = vsel %vm476, %v419, 0
        %v511 = vsel %vm476, %v427, 0
        %v514 = vsel %vm476, %v435, 0
        %v517 = vsel %vm476, %v443, 0
        %v520 = vsel %vm476, %v451, 0
        %v523 = vsel %vm476, %v459, 0
        %v526 = vsel %vm476, %v467, 0
        %v529 = vsel %vm476, %v475, 0
        %vm531 = vcmask 1041408
        %v533 = vsel %vm531, %v233, 0
        %535 = vmatprep.subr.bf16.mxu0 0
        %536 = vmatpush1.bf16.msra.mxu0 0
        %537 = vmatprep.subr.bf16.mxu0 0
        %538 = vmatpush1.bf16.msra.mxu0 0
        %539 = vmatprep.subr.bf16.mxu0 0
        %540 = vmatpush1.bf16.msra.mxu0 0
        %541 = vmatprep.subr.bf16.mxu0 0
        %542 = vmatpush1.bf16.msra.mxu0 0
        %543 = vmatprep.subr.bf16.mxu0 0
        %544 = vmatpush1.bf16.msra.mxu0 0
        %545 = vmatprep.subr.bf16.mxu0 0
        %546 = vmatpush1.bf16.msra.mxu0 0
        %547 = vmatprep.subr.bf16.mxu0 0
        %548 = vmatpush1.bf16.msra.mxu0 0
        %549 = vmatprep.subr.bf16.mxu0 0
        %550 = vmatpush1.bf16.msra.mxu0 %v533
        %551 = vmatprep.subr.bf16.mxu0 0
        %552 = vmatpush2.bf16.msra.mxu0 0
        %553 = vmatprep.subr.bf16.mxu0 0
        %554 = vmatpush2.bf16.msra.mxu0 0
        %555 = vmatprep.subr.bf16.mxu0 0
        %556 = vmatpush2.bf16.msra.mxu0 0
        %557 = vmatprep.subr.bf16.mxu0 0
        %558 = vmatpush2.bf16.msra.mxu0 0
        %559 = vmatprep.subr.bf16.mxu0 0
        %560 = vmatpush2.bf16.msra.mxu0 0
        %561 = vmatprep.subr.bf16.mxu0 0
        %562 = vmatpush2.bf16.msra.mxu0 0
        %563 = vmatprep.subr.bf16.mxu0 0
        %564 = vmatpush2.bf16.msra.mxu0 0
        %565 = vmatprep.subr.bf16.mxu0 0
        %566 = vmatpush2.bf16.msra.mxu0 0
        %567 = vmatprep.mubr.bf16.mxu0 0
        %568 = vmatmul.mubr.bf16.gmra.mxu0 %v478
        %v569 = vpop.f32.mrf.mxu0
        %v570 = vadd.f32 0.0, %v569
        %v571 = vpop.f32.mrf.mxu0
        %v572 = vpop.f32.mrf.mxu0
        %v573 = vadd.f32 0.0, %v572
        %v574 = vpop.f32.mrf.mxu0
        %575 = vmatprep.mubr.bf16.mxu0 0
        %576 = vmatmul.mubr.bf16.gmra.mxu0 %v481
        %v577 = vpop.f32.mrf.mxu0
        %v578 = vadd.f32 0.0, %v577
        %v579 = vpop.f32.mrf.mxu0
        %v580 = vpop.f32.mrf.mxu0
        %v581 = vadd.f32 0.0, %v580
        %v582 = vpop.f32.mrf.mxu0
        %583 = vmatprep.mubr.bf16.mxu0 0
        %584 = vmatmul.mubr.bf16.gmra.mxu0 %v484
        %v585 = vpop.f32.mrf.mxu0
        %v586 = vadd.f32 0.0, %v585
        %v587 = vpop.f32.mrf.mxu0
        %v588 = vpop.f32.mrf.mxu0
        %v589 = vadd.f32 0.0, %v588
        %v590 = vpop.f32.mrf.mxu0
        %591 = vmatprep.mubr.bf16.mxu0 0
        %592 = vmatmul.mubr.bf16.gmra.mxu0 %v487
        %v593 = vpop.f32.mrf.mxu0
        %v594 = vadd.f32 0.0, %v593
        %v595 = vpop.f32.mrf.mxu0
        %v596 = vpop.f32.mrf.mxu0
        %v597 = vadd.f32 0.0, %v596
        %v598 = vpop.f32.mrf.mxu0
        %599 = vmatprep.mubr.bf16.mxu0 0
        %600 = vmatmul.mubr.bf16.gmra.mxu0 %v490
        %v601 = vpop.f32.mrf.mxu0
        %v602 = vadd.f32 0.0, %v601
        %v603 = vpop.f32.mrf.mxu0
        %v604 = vpop.f32.mrf.mxu0
        %v605 = vadd.f32 0.0, %v604
        %v606 = vpop.f32.mrf.mxu0
        %607 = vmatprep.mubr.bf16.mxu0 0
        %608 = vmatmul.mubr.bf16.gmra.mxu0 %v493
        %v609 = vpop.f32.mrf.mxu0
        %v610 = vadd.f32 0.0, %v609
        %v611 = vpop.f32.mrf.mxu0
        %v612 = vpop.f32.mrf.mxu0
        %v613 = vadd.f32 0.0, %v612
        %v614 = vpop.f32.mrf.mxu0
        %615 = vmatprep.mubr.bf16.mxu0 0
        %616 = vmatmul.mubr.bf16.gmra.mxu0 %v496
        %v617 = vpop.f32.mrf.mxu0
        %v618 = vadd.f32 0.0, %v617
        %v619 = vpop.f32.mrf.mxu0
        %v620 = vpop.f32.mrf.mxu0
        %v621 = vadd.f32 0.0, %v620
        %v622 = vpop.f32.mrf.mxu0
        %623 = vmatprep.mubr.bf16.mxu0 0
        %624 = vmatmul.mubr.bf16.gmra.mxu0 %v499
        %v625 = vpop.f32.mrf.mxu0
        %v626 = vadd.f32 0.0, %v625
        %v627 = vpop.f32.mrf.mxu0
        %v628 = vpop.f32.mrf.mxu0
        %v629 = vadd.f32 0.0, %v628
        %v630 = vpop.f32.mrf.mxu0
        %631 = vmatprep.mubr.bf16.mxu0 0
        %632 = vmatmul.mubr.bf16.gmra.mxu0 %v502
        %v633 = vpop.f32.mrf.mxu0
        %v634 = vadd.f32 0.0, %v633
        %v635 = vpop.f32.mrf.mxu0
        %v636 = vpop.f32.mrf.mxu0
        %v637 = vadd.f32 0.0, %v636
        %v638 = vpop.f32.mrf.mxu0
        %639 = vmatprep.mubr.bf16.mxu0 0
        %640 = vmatmul.mubr.bf16.gmra.mxu0 %v505
        %v641 = vpop.f32.mrf.mxu0
        %v642 = vadd.f32 0.0, %v641
        %v643 = vpop.f32.mrf.mxu0
        %v644 = vpop.f32.mrf.mxu0
        %v645 = vadd.f32 0.0, %v644
        %v646 = vpop.f32.mrf.mxu0
        %647 = vmatprep.mubr.bf16.mxu0 0
        %648 = vmatmul.mubr.bf16.gmra.mxu0 %v508
        %v649 = vpop.f32.mrf.mxu0
        %v650 = vadd.f32 0.0, %v649
        %v651 = vpop.f32.mrf.mxu0
        %v652 = vpop.f32.mrf.mxu0
        %v653 = vadd.f32 0.0, %v652
        %v654 = vpop.f32.mrf.mxu0
        %655 = vmatprep.mubr.bf16.mxu0 0
        %656 = vmatmul.mubr.bf16.gmra.mxu0 %v511
        %v657 = vpop.f32.mrf.mxu0
        %v658 = vadd.f32 0.0, %v657
        %v659 = vpop.f32.mrf.mxu0
        %v660 = vpop.f32.mrf.mxu0
        %v661 = vadd.f32 0.0, %v660
        %v662 = vpop.f32.mrf.mxu0
        %663 = vmatprep.mubr.bf16.mxu0 0
        %664 = vmatmul.mubr.bf16.gmra.mxu0 %v514
        %v665 = vpop.f32.mrf.mxu0
        %v666 = vadd.f32 0.0, %v665
        %v667 = vpop.f32.mrf.mxu0
        %v668 = vpop.f32.mrf.mxu0
        %v669 = vadd.f32 0.0, %v668
        %v670 = vpop.f32.mrf.mxu0
        %671 = vmatprep.mubr.bf16.mxu0 0
        %672 = vmatmul.mubr.bf16.gmra.mxu0 %v517
        %v673 = vpop.f32.mrf.mxu0
        %v674 = vadd.f32 0.0, %v673
        %v675 = vpop.f32.mrf.mxu0
        %v676 = vpop.f32.mrf.mxu0
        %v677 = vadd.f32 0.0, %v676
        %v678 = vpop.f32.mrf.mxu0
        %679 = vmatprep.mubr.bf16.mxu0 0
        %680 = vmatmul.mubr.bf16.gmra.mxu0 %v520
        %v681 = vpop.f32.mrf.mxu0
        %v682 = vadd.f32 0.0, %v681
        %v683 = vpop.f32.mrf.mxu0
        %v684 = vpop.f32.mrf.mxu0
        %v685 = vadd.f32 0.0, %v684
        %v686 = vpop.f32.mrf.mxu0
        %687 = vmatprep.mubr.bf16.mxu0 0
        %688 = vmatmul.mubr.bf16.gmra.mxu0 %v523
        %v689 = vpop.f32.mrf.mxu0
        %v690 = vadd.f32 0.0, %v689
        %v691 = vpop.f32.mrf.mxu0
        %v692 = vpop.f32.mrf.mxu0
        %v693 = vadd.f32 0.0, %v692
        %v694 = vpop.f32.mrf.mxu0
        %695 = vmatprep.mubr.bf16.mxu0 0
        %696 = vmatmul.mubr.bf16.gmra.mxu0 %v526
        %v697 = vpop.f32.mrf.mxu0
        %v698 = vadd.f32 0.0, %v697
        %v699 = vpop.f32.mrf.mxu0
        %v700 = vpop.f32.mrf.mxu0
        %v701 = vadd.f32 0.0, %v700
        %v702 = vpop.f32.mrf.mxu0
        %703 = vmatprep.mubr.bf16.mxu0 0
        %704 = vmatmul.mubr.bf16.gmra.mxu0 %v529
        %v705 = vpop.f32.mrf.mxu0
        %v706 = vadd.f32 0.0, %v705
        %v707 = vpop.f32.mrf.mxu0
        %v708 = vpop.f32.mrf.mxu0
        %v709 = vadd.f32 0.0, %v708
        %v710 = vpop.f32.mrf.mxu0
        %711 = vdwg.mxu0
        %v712 = vsel %vm476, %v308, 0
        %v714 = vsel %vm476, %v309, 0
        %v716 = vsel %vm476, %v310, 0
        %v718 = vsel %vm476, %v311, 0
        %v720 = vsel %vm476, %v312, 0
        %v722 = vsel %vm476, %v313, 0
        %v724 = vsel %vm476, %v314, 0
        %v726 = vsel %vm476, %v315, 0
        %v728 = vsel %vm476, %v316, 0
        %v730 = vsel %vm476, %v317, 0
        %v732 = vsel %vm476, %v318, 0
        %v734 = vsel %vm476, %v319, 0
        %v736 = vsel %vm476, %v320, 0
        %v738 = vsel %vm476, %v321, 0
        %v740 = vsel %vm476, %v322, 0
        %v742 = vsel %vm476, %v323, 0
        %v744 = vsel %vm476, %v324, 0
        %v746 = vsel %vm476, %v325, 0
        %v749 = vsel %vm531, %v231, 0
        %751 = vmatprep.subr.bf16.mxu0 0
        %752 = vmatpush1.bf16.msra.mxu0 0
        %753 = vmatprep.subr.bf16.mxu0 0
        %754 = vmatpush1.bf16.msra.mxu0 0
        %755 = vmatprep.subr.bf16.mxu0 0
        %756 = vmatpush1.bf16.msra.mxu0 0
        %757 = vmatprep.subr.bf16.mxu0 0
        %758 = vmatpush1.bf16.msra.mxu0 0
        %759 = vmatprep.subr.bf16.mxu0 0
        %760 = vmatpush1.bf16.msra.mxu0 0
        %761 = vmatprep.subr.bf16.mxu0 0
        %762 = vmatpush1.bf16.msra.mxu0 0
        %763 = vmatprep.subr.bf16.mxu0 0
        %764 = vmatpush1.bf16.msra.mxu0 0
        %765 = vmatprep.subr.bf16.mxu0 0
        %766 = vmatpush1.bf16.msra.mxu0 %v749
        %767 = vmatprep.subr.bf16.mxu0 0
        %768 = vmatpush2.bf16.msra.mxu0 0
        %769 = vmatprep.subr.bf16.mxu0 0
        %770 = vmatpush2.bf16.msra.mxu0 0
        %771 = vmatprep.subr.bf16.mxu0 0
        %772 = vmatpush2.bf16.msra.mxu0 0
        %773 = vmatprep.subr.bf16.mxu0 0
        %774 = vmatpush2.bf16.msra.mxu0 0
        %775 = vmatprep.subr.bf16.mxu0 0
        %776 = vmatpush2.bf16.msra.mxu0 0
        %777 = vmatprep.subr.bf16.mxu0 0
        %778 = vmatpush2.bf16.msra.mxu0 0
        %779 = vmatprep.subr.bf16.mxu0 0
        %780 = vmatpush2.bf16.msra.mxu0 0
        %781 = vmatprep.subr.bf16.mxu0 0
        %782 = vmatpush2.bf16.msra.mxu0 0
        %783 = vmatprep.mubr.bf16.mxu0 0
        %784 = vmatmul.mubr.bf16.gmra.mxu0 %v712
        %v785 = vpop.f32.mrf.mxu0
        %v786 = vadd.f32 %v570, %v785
        %v787 = vpop.f32.mrf.mxu0
        %v788 = vpop.f32.mrf.mxu0
        %v789 = vadd.f32 %v573, %v788
        %v790 = vpop.f32.mrf.mxu0
        %791 = vmatprep.mubr.bf16.mxu0 0
        %792 = vmatmul.mubr.bf16.gmra.mxu0 %v714
        %v793 = vpop.f32.mrf.mxu0
        %v794 = vadd.f32 %v578, %v793
        %v795 = vpop.f32.mrf.mxu0
        %v796 = vpop.f32.mrf.mxu0
        %v797 = vadd.f32 %v581, %v796
        %v798 = vpop.f32.mrf.mxu0
        %799 = vmatprep.mubr.bf16.mxu0 0
        %800 = vmatmul.mubr.bf16.gmra.mxu0 %v716
        %v801 = vpop.f32.mrf.mxu0
        %v802 = vadd.f32 %v586, %v801
        %v803 = vpop.f32.mrf.mxu0
        %v804 = vpop.f32.mrf.mxu0
        %v805 = vadd.f32 %v589, %v804
        %v806 = vpop.f32.mrf.mxu0
        %807 = vmatprep.mubr.bf16.mxu0 0
        %808 = vmatmul.mubr.bf16.gmra.mxu0 %v718
        %v809 = vpop.f32.mrf.mxu0
        %v810 = vadd.f32 %v594, %v809
        %v811 = vpop.f32.mrf.mxu0
        %v812 = vpop.f32.mrf.mxu0
        %v813 = vadd.f32 %v597, %v812
        %v814 = vpop.f32.mrf.mxu0
        %815 = vmatprep.mubr.bf16.mxu0 0
        %816 = vmatmul.mubr.bf16.gmra.mxu0 %v720
        %v817 = vpop.f32.mrf.mxu0
        %v818 = vadd.f32 %v602, %v817
        %v819 = vpop.f32.mrf.mxu0
        %v820 = vpop.f32.mrf.mxu0
        %v821 = vadd.f32 %v605, %v820
        %v822 = vpop.f32.mrf.mxu0
        %823 = vmatprep.mubr.bf16.mxu0 0
        %824 = vmatmul.mubr.bf16.gmra.mxu0 %v722
        %v825 = vpop.f32.mrf.mxu0
        %v826 = vadd.f32 %v610, %v825
        %v827 = vpop.f32.mrf.mxu0
        %v828 = vpop.f32.mrf.mxu0
        %v829 = vadd.f32 %v613, %v828
        %v830 = vpop.f32.mrf.mxu0
        %831 = vmatprep.mubr.bf16.mxu0 0
        %832 = vmatmul.mubr.bf16.gmra.mxu0 %v724
        %v833 = vpop.f32.mrf.mxu0
        %v834 = vadd.f32 %v618, %v833
        %v835 = vpop.f32.mrf.mxu0
        %v836 = vpop.f32.mrf.mxu0
        %v837 = vadd.f32 %v621, %v836
        %v838 = vpop.f32.mrf.mxu0
        %839 = vmatprep.mubr.bf16.mxu0 0
        %840 = vmatmul.mubr.bf16.gmra.mxu0 %v726
        %v841 = vpop.f32.mrf.mxu0
        %v842 = vadd.f32 %v626, %v841
        %v843 = vpop.f32.mrf.mxu0
        %v844 = vpop.f32.mrf.mxu0
        %v845 = vadd.f32 %v629, %v844
        %v846 = vpop.f32.mrf.mxu0
        %847 = vmatprep.mubr.bf16.mxu0 0
        %848 = vmatmul.mubr.bf16.gmra.mxu0 %v728
        %v849 = vpop.f32.mrf.mxu0
        %v850 = vadd.f32 %v634, %v849
        %v851 = vpop.f32.mrf.mxu0
        %v852 = vpop.f32.mrf.mxu0
        %v853 = vadd.f32 %v637, %v852
        %v854 = vpop.f32.mrf.mxu0
        %855 = vmatprep.mubr.bf16.mxu0 0
        %856 = vmatmul.mubr.bf16.gmra.mxu0 %v730
        %v857 = vpop.f32.mrf.mxu0
        %v858 = vadd.f32 %v642, %v857
        %v859 = vpop.f32.mrf.mxu0
        %v860 = vpop.f32.mrf.mxu0
        %v861 = vadd.f32 %v645, %v860
        %v862 = vpop.f32.mrf.mxu0
        %863 = vmatprep.mubr.bf16.mxu0 0
        %864 = vmatmul.mubr.bf16.gmra.mxu0 %v732
        %v865 = vpop.f32.mrf.mxu0
        %v866 = vadd.f32 %v650, %v865
        %v867 = vpop.f32.mrf.mxu0
        %v868 = vpop.f32.mrf.mxu0
        %v869 = vadd.f32 %v653, %v868
        %v870 = vpop.f32.mrf.mxu0
        %871 = vmatprep.mubr.bf16.mxu0 0
        %872 = vmatmul.mubr.bf16.gmra.mxu0 %v734
        %v873 = vpop.f32.mrf.mxu0
        %v874 = vadd.f32 %v658, %v873
        %v875 = vpop.f32.mrf.mxu0
        %v876 = vpop.f32.mrf.mxu0
        %v877 = vadd.f32 %v661, %v876
        %v878 = vpop.f32.mrf.mxu0
        %879 = vmatprep.mubr.bf16.mxu0 0
        %880 = vmatmul.mubr.bf16.gmra.mxu0 %v736
        %v881 = vpop.f32.mrf.mxu0
        %v882 = vadd.f32 %v666, %v881
        %v883 = vpop.f32.mrf.mxu0
        %v884 = vpop.f32.mrf.mxu0
        %v885 = vadd.f32 %v669, %v884
        %v886 = vpop.f32.mrf.mxu0
        %887 = vmatprep.mubr.bf16.mxu0 0
        %888 = vmatmul.mubr.bf16.gmra.mxu0 %v738
        %v889 = vpop.f32.mrf.mxu0
        %v890 = vadd.f32 %v674, %v889
        %v891 = vpop.f32.mrf.mxu0
        %v892 = vpop.f32.mrf.mxu0
        %v893 = vadd.f32 %v677, %v892
        %v894 = vpop.f32.mrf.mxu0
        %895 = vmatprep.mubr.bf16.mxu0 0
        %896 = vmatmul.mubr.bf16.gmra.mxu0 %v740
        %v897 = vpop.f32.mrf.mxu0
        %v898 = vadd.f32 %v682, %v897
        %v899 = vpop.f32.mrf.mxu0
        %v900 = vpop.f32.mrf.mxu0
        %v901 = vadd.f32 %v685, %v900
        %v902 = vpop.f32.mrf.mxu0
        %903 = vmatprep.mubr.bf16.mxu0 0
        %904 = vmatmul.mubr.bf16.gmra.mxu0 %v742
        %v905 = vpop.f32.mrf.mxu0
        %v906 = vadd.f32 %v690, %v905
        %v907 = vpop.f32.mrf.mxu0
        %v908 = vpop.f32.mrf.mxu0
        %v909 = vadd.f32 %v693, %v908
        %v910 = vpop.f32.mrf.mxu0
        %911 = vmatprep.mubr.bf16.mxu0 0
        %912 = vmatmul.mubr.bf16.gmra.mxu0 %v744
        %v913 = vpop.f32.mrf.mxu0
        %v914 = vadd.f32 %v698, %v913
        %v915 = vpop.f32.mrf.mxu0
        %v916 = vpop.f32.mrf.mxu0
        %v917 = vadd.f32 %v701, %v916
        %v918 = vpop.f32.mrf.mxu0
        %919 = vmatprep.mubr.bf16.mxu0 0
        %920 = vmatmul.mubr.bf16.gmra.mxu0 %v746
        %v921 = vpop.f32.mrf.mxu0
        %v922 = vadd.f32 %v706, %v921
        %v923 = vpop.f32.mrf.mxu0
        %v924 = vpop.f32.mrf.mxu0
        %v925 = vadd.f32 %v709, %v924
        %v926 = vpop.f32.mrf.mxu0
        %927 = vdwg.mxu0
        %s928 = scalar_lea.vmem %s1, 4
        %v929 = vld [vmem:[%s928] sm:$0x3]
        %vm930 = vcmask 1046528
        %v931 = vrot.slane %v308, 1
        %v932 = vrot.slane %v309, 1
        %v933 = vsel %vm930, %v931, %v932
        %v934 = vrot.slane %v310, 1
        %v935 = vsel %vm930, %v932, %v934
        %v936 = vrot.slane %v311, 1
        %v937 = vsel %vm930, %v934, %v936
        %v938 = vrot.slane %v312, 1
        %v939 = vsel %vm930, %v936, %v938
        %v940 = vrot.slane %v313, 1
        %v941 = vsel %vm930, %v938, %v940
        %v942 = vrot.slane %v314, 1
        %v943 = vsel %vm930, %v940, %v942
        %v944 = vrot.slane %v315, 1
        %v945 = vsel %vm930, %v942, %v944
        %v946 = vrot.slane %v316, 1
        %v947 = vsel %vm930, %v944, %v946
        %v948 = vrot.slane %v317, 1
        %v949 = vsel %vm930, %v946, %v948
        %v950 = vrot.slane %v318, 1
        %v951 = vsel %vm930, %v948, %v950
        %v952 = vrot.slane %v319, 1
        %v953 = vsel %vm930, %v950, %v952
        %v954 = vrot.slane %v320, 1
        %v955 = vsel %vm930, %v952, %v954
        %v956 = vrot.slane %v321, 1
        %v957 = vsel %vm930, %v954, %v956
        %v958 = vrot.slane %v322, 1
        %v959 = vsel %vm930, %v956, %v958
        %v960 = vrot.slane %v323, 1
        %v961 = vsel %vm930, %v958, %v960
        %v962 = vrot.slane %v324, 1
        %v963 = vsel %vm930, %v960, %v962
        %v964 = vrot.slane %v325, 1
        %v965 = vsel %vm930, %v962, %v964
        %v966 = vrot.slane %v326, 1
        %v967 = vsel %vm930, %v964, %v966
        %v969 = vsel %vm476, %v933, 0
        %v972 = vsel %vm476, %v935, 0
        %v975 = vsel %vm476, %v937, 0
        %v978 = vsel %vm476, %v939, 0
        %v981 = vsel %vm476, %v941, 0
        %v984 = vsel %vm476, %v943, 0
        %v987 = vsel %vm476, %v945, 0
        %v990 = vsel %vm476, %v947, 0
        %v993 = vsel %vm476, %v949, 0
        %v996 = vsel %vm476, %v951, 0
        %v999 = vsel %vm476, %v953, 0
        %v1002 = vsel %vm476, %v955, 0
        %v1005 = vsel %vm476, %v957, 0
        %v1008 = vsel %vm476, %v959, 0
        %v1011 = vsel %vm476, %v961, 0
        %v1014 = vsel %vm476, %v963, 0
        %v1017 = vsel %vm476, %v965, 0
        %v1020 = vsel %vm476, %v967, 0
        %v1023 = vsel %vm531, %v929, 0
        %1025 = vmatprep.subr.bf16.mxu0 0
        %1026 = vmatpush1.bf16.msra.mxu0 0
        %1027 = vmatprep.subr.bf16.mxu0 0
        %1028 = vmatpush1.bf16.msra.mxu0 0
        %1029 = vmatprep.subr.bf16.mxu0 0
        %1030 = vmatpush1.bf16.msra.mxu0 0
        %1031 = vmatprep.subr.bf16.mxu0 0
        %1032 = vmatpush1.bf16.msra.mxu0 0
        %1033 = vmatprep.subr.bf16.mxu0 0
        %1034 = vmatpush1.bf16.msra.mxu0 0
        %1035 = vmatprep.subr.bf16.mxu0 0
        %1036 = vmatpush1.bf16.msra.mxu0 0
        %1037 = vmatprep.subr.bf16.mxu0 0
        %1038 = vmatpush1.bf16.msra.mxu0 0
        %1039 = vmatprep.subr.bf16.mxu0 0
        %1040 = vmatpush1.bf16.msra.mxu0 %v1023
        %1041 = vmatprep.subr.bf16.mxu0 0
        %1042 = vmatpush2.bf16.msra.mxu0 0
        %1043 = vmatprep.subr.bf16.mxu0 0
        %1044 = vmatpush2.bf16.msra.mxu0 0
        %1045 = vmatprep.subr.bf16.mxu0 0
        %1046 = vmatpush2.bf16.msra.mxu0 0
        %1047 = vmatprep.subr.bf16.mxu0 0
        %1048 = vmatpush2.bf16.msra.mxu0 0
        %1049 = vmatprep.subr.bf16.mxu0 0
        %1050 = vmatpush2.bf16.msra.mxu0 0
        %1051 = vmatprep.subr.bf16.mxu0 0
        %1052 = vmatpush2.bf16.msra.mxu0 0
        %1053 = vmatprep.subr.bf16.mxu0 0
        %1054 = vmatpush2.bf16.msra.mxu0 0
        %1055 = vmatprep.subr.bf16.mxu0 0
        %1056 = vmatpush2.bf16.msra.mxu0 0
        %1057 = vmatprep.mubr.bf16.mxu0 0
        %1058 = vmatmul.mubr.bf16.gmra.mxu0 %v969
        %v1059 = vpop.f32.mrf.mxu0
        %v1060 = vadd.f32 0.0, %v1059
        %v1061 = vpop.f32.mrf.mxu0
        %v1062 = vpop.f32.mrf.mxu0
        %v1063 = vadd.f32 0.0, %v1062
        %v1064 = vpop.f32.mrf.mxu0
        %1065 = vmatprep.mubr.bf16.mxu0 0
        %1066 = vmatmul.mubr.bf16.gmra.mxu0 %v972
        %v1067 = vpop.f32.mrf.mxu0
        %v1068 = vadd.f32 0.0, %v1067
        %v1069 = vpop.f32.mrf.mxu0
        %v1070 = vpop.f32.mrf.mxu0
        %v1071 = vadd.f32 0.0, %v1070
        %v1072 = vpop.f32.mrf.mxu0
        %1073 = vmatprep.mubr.bf16.mxu0 0
        %1074 = vmatmul.mubr.bf16.gmra.mxu0 %v975
        %v1075 = vpop.f32.mrf.mxu0
        %v1076 = vadd.f32 0.0, %v1075
        %v1077 = vpop.f32.mrf.mxu0
        %v1078 = vpop.f32.mrf.mxu0
        %v1079 = vadd.f32 0.0, %v1078
        %v1080 = vpop.f32.mrf.mxu0
        %1081 = vmatprep.mubr.bf16.mxu0 0
        %1082 = vmatmul.mubr.bf16.gmra.mxu0 %v978
        %v1083 = vpop.f32.mrf.mxu0
        %v1084 = vadd.f32 0.0, %v1083
        %v1085 = vpop.f32.mrf.mxu0
        %v1086 = vpop.f32.mrf.mxu0
        %v1087 = vadd.f32 0.0, %v1086
        %v1088 = vpop.f32.mrf.mxu0
        %1089 = vmatprep.mubr.bf16.mxu0 0
        %1090 = vmatmul.mubr.bf16.gmra.mxu0 %v981
        %v1091 = vpop.f32.mrf.mxu0
        %v1092 = vadd.f32 0.0, %v1091
        %v1093 = vpop.f32.mrf.mxu0
        %v1094 = vpop.f32.mrf.mxu0
        %v1095 = vadd.f32 0.0, %v1094
        %v1096 = vpop.f32.mrf.mxu0
        %1097 = vmatprep.mubr.bf16.mxu0 0
        %1098 = vmatmul.mubr.bf16.gmra.mxu0 %v984
        %v1099 = vpop.f32.mrf.mxu0
        %v1100 = vadd.f32 0.0, %v1099
        %v1101 = vpop.f32.mrf.mxu0
        %v1102 = vpop.f32.mrf.mxu0
        %v1103 = vadd.f32 0.0, %v1102
        %v1104 = vpop.f32.mrf.mxu0
        %1105 = vmatprep.mubr.bf16.mxu0 0
        %1106 = vmatmul.mubr.bf16.gmra.mxu0 %v987
        %v1107 = vpop.f32.mrf.mxu0
        %v1108 = vadd.f32 0.0, %v1107
        %v1109 = vpop.f32.mrf.mxu0
        %v1110 = vpop.f32.mrf.mxu0
        %v1111 = vadd.f32 0.0, %v1110
        %v1112 = vpop.f32.mrf.mxu0
        %1113 = vmatprep.mubr.bf16.mxu0 0
        %1114 = vmatmul.mubr.bf16.gmra.mxu0 %v990
        %v1115 = vpop.f32.mrf.mxu0
        %v1116 = vadd.f32 0.0, %v1115
        %v1117 = vpop.f32.mrf.mxu0
        %v1118 = vpop.f32.mrf.mxu0
        %v1119 = vadd.f32 0.0, %v1118
        %v1120 = vpop.f32.mrf.mxu0
        %1121 = vmatprep.mubr.bf16.mxu0 0
        %1122 = vmatmul.mubr.bf16.gmra.mxu0 %v993
        %v1123 = vpop.f32.mrf.mxu0
        %v1124 = vadd.f32 0.0, %v1123
        %v1125 = vpop.f32.mrf.mxu0
        %v1126 = vpop.f32.mrf.mxu0
        %v1127 = vadd.f32 0.0, %v1126
        %v1128 = vpop.f32.mrf.mxu0
        %1129 = vmatprep.mubr.bf16.mxu0 0
        %1130 = vmatmul.mubr.bf16.gmra.mxu0 %v996
        %v1131 = vpop.f32.mrf.mxu0
        %v1132 = vadd.f32 0.0, %v1131
        %v1133 = vpop.f32.mrf.mxu0
        %v1134 = vpop.f32.mrf.mxu0
        %v1135 = vadd.f32 0.0, %v1134
        %v1136 = vpop.f32.mrf.mxu0
        %1137 = vmatprep.mubr.bf16.mxu0 0
        %1138 = vmatmul.mubr.bf16.gmra.mxu0 %v999
        %v1139 = vpop.f32.mrf.mxu0
        %v1140 = vadd.f32 0.0, %v1139
        %v1141 = vpop.f32.mrf.mxu0
        %v1142 = vpop.f32.mrf.mxu0
        %v1143 = vadd.f32 0.0, %v1142
        %v1144 = vpop.f32.mrf.mxu0
        %1145 = vmatprep.mubr.bf16.mxu0 0
        %1146 = vmatmul.mubr.bf16.gmra.mxu0 %v1002
        %v1147 = vpop.f32.mrf.mxu0
        %v1148 = vadd.f32 0.0, %v1147
        %v1149 = vpop.f32.mrf.mxu0
        %v1150 = vpop.f32.mrf.mxu0
        %v1151 = vadd.f32 0.0, %v1150
        %v1152 = vpop.f32.mrf.mxu0
        %1153 = vmatprep.mubr.bf16.mxu0 0
        %1154 = vmatmul.mubr.bf16.gmra.mxu0 %v1005
        %v1155 = vpop.f32.mrf.mxu0
        %v1156 = vadd.f32 0.0, %v1155
        %v1157 = vpop.f32.mrf.mxu0
        %v1158 = vpop.f32.mrf.mxu0
        %v1159 = vadd.f32 0.0, %v1158
        %v1160 = vpop.f32.mrf.mxu0
        %1161 = vmatprep.mubr.bf16.mxu0 0
        %1162 = vmatmul.mubr.bf16.gmra.mxu0 %v1008
        %v1163 = vpop.f32.mrf.mxu0
        %v1164 = vadd.f32 0.0, %v1163
        %v1165 = vpop.f32.mrf.mxu0
        %v1166 = vpop.f32.mrf.mxu0
        %v1167 = vadd.f32 0.0, %v1166
        %v1168 = vpop.f32.mrf.mxu0
        %1169 = vmatprep.mubr.bf16.mxu0 0
        %1170 = vmatmul.mubr.bf16.gmra.mxu0 %v1011
        %v1171 = vpop.f32.mrf.mxu0
        %v1172 = vadd.f32 0.0, %v1171
        %v1173 = vpop.f32.mrf.mxu0
        %v1174 = vpop.f32.mrf.mxu0
        %v1175 = vadd.f32 0.0, %v1174
        %v1176 = vpop.f32.mrf.mxu0
        %1177 = vmatprep.mubr.bf16.mxu0 0
        %1178 = vmatmul.mubr.bf16.gmra.mxu0 %v1014
        %v1179 = vpop.f32.mrf.mxu0
        %v1180 = vadd.f32 0.0, %v1179
        %v1181 = vpop.f32.mrf.mxu0
        %v1182 = vpop.f32.mrf.mxu0
        %v1183 = vadd.f32 0.0, %v1182
        %v1184 = vpop.f32.mrf.mxu0
        %1185 = vmatprep.mubr.bf16.mxu0 0
        %1186 = vmatmul.mubr.bf16.gmra.mxu0 %v1017
        %v1187 = vpop.f32.mrf.mxu0
        %v1188 = vadd.f32 0.0, %v1187
        %v1189 = vpop.f32.mrf.mxu0
        %v1190 = vpop.f32.mrf.mxu0
        %v1191 = vadd.f32 0.0, %v1190
        %v1192 = vpop.f32.mrf.mxu0
        %1193 = vmatprep.mubr.bf16.mxu0 0
        %1194 = vmatmul.mubr.bf16.gmra.mxu0 %v1020
        %v1195 = vpop.f32.mrf.mxu0
        %v1196 = vadd.f32 0.0, %v1195
        %v1197 = vpop.f32.mrf.mxu0
        %v1198 = vpop.f32.mrf.mxu0
        %v1199 = vadd.f32 0.0, %v1198
        %v1200 = vpop.f32.mrf.mxu0
        %1201 = vdwg.mxu0
        %v1202 = vadd.f32 %v786, %v1060
        %v1203 = vadd.f32 %v789, %v1063
        %v1204 = vadd.f32 %v794, %v1068
        %v1205 = vadd.f32 %v797, %v1071
        %v1206 = vadd.f32 %v802, %v1076
        %v1207 = vadd.f32 %v805, %v1079
        %v1208 = vadd.f32 %v810, %v1084
        %v1209 = vadd.f32 %v813, %v1087
        %v1210 = vadd.f32 %v818, %v1092
        %v1211 = vadd.f32 %v821, %v1095
        %v1212 = vadd.f32 %v826, %v1100
        %v1213 = vadd.f32 %v829, %v1103
        %v1214 = vadd.f32 %v834, %v1108
        %v1215 = vadd.f32 %v837, %v1111
        %v1216 = vadd.f32 %v842, %v1116
        %v1217 = vadd.f32 %v845, %v1119
        %v1218 = vadd.f32 %v850, %v1124
        %v1219 = vadd.f32 %v853, %v1127
        %v1220 = vadd.f32 %v858, %v1132
        %v1221 = vadd.f32 %v861, %v1135
        %v1222 = vadd.f32 %v866, %v1140
        %v1223 = vadd.f32 %v869, %v1143
        %v1224 = vadd.f32 %v874, %v1148
        %v1225 = vadd.f32 %v877, %v1151
        %v1226 = vadd.f32 %v882, %v1156
        %v1227 = vadd.f32 %v885, %v1159
        %v1228 = vadd.f32 %v890, %v1164
        %v1229 = vadd.f32 %v893, %v1167
        %v1230 = vadd.f32 %v898, %v1172
        %v1231 = vadd.f32 %v901, %v1175
        %v1232 = vadd.f32 %v906, %v1180
        %v1233 = vadd.f32 %v909, %v1183
        %v1234 = vadd.f32 %v914, %v1188
        %v1235 = vadd.f32 %v917, %v1191
        %v1236 = vadd.f32 %v922, %v1196
        %v1237 = vadd.f32 %v925, %v1199
        %s1238 = scalar_lea.vmem %s1, 6
        %v1239 = vld [vmem:[%s1238] sm:$0x3]
        %v1242 = vunpack.c.l.b16 %v227
        %v1243 = vunpack.c.l.b16 %v228
        %v1244 = vpack.c.b16 %v1242, %v307
        %v1245 = vpack.c.b16 %v1243, %v1243
        %v1246 = vrot.slane %v1244, 1
        %v1247 = vsel %vm930, %v964, %v1246
        %v1248 = vrot.slane %v1245, 1
        %v1249 = vsel %vm930, %v1246, %v1248
        %v1251 = vsel %vm476, %v1247, 0
        %v1254 = vsel %vm476, %v1249, 0
        %v1257 = vsel %vm531, %v1239, 0
        %1259 = vmatprep.subr.bf16.mxu0 0
        %1260 = vmatpush1.bf16.msra.mxu0 0
        %1261 = vmatprep.subr.bf16.mxu0 0
        %1262 = vmatpush1.bf16.msra.mxu0 0
        %1263 = vmatprep.subr.bf16.mxu0 0
        %1264 = vmatpush1.bf16.msra.mxu0 0
        %1265 = vmatprep.subr.bf16.mxu0 0
        %1266 = vmatpush1.bf16.msra.mxu0 0
        %1267 = vmatprep.subr.bf16.mxu0 0
        %1268 = vmatpush1.bf16.msra.mxu0 0
        %1269 = vmatprep.subr.bf16.mxu0 0
        %1270 = vmatpush1.bf16.msra.mxu0 0
        %1271 = vmatprep.subr.bf16.mxu0 0
        %1272 = vmatpush1.bf16.msra.mxu0 0
        %1273 = vmatprep.subr.bf16.mxu0 0
        %1274 = vmatpush1.bf16.msra.mxu0 %v1257
        %1275 = vmatprep.subr.bf16.mxu0 0
        %1276 = vmatpush2.bf16.msra.mxu0 0
        %1277 = vmatprep.subr.bf16.mxu0 0
        %1278 = vmatpush2.bf16.msra.mxu0 0
        %1279 = vmatprep.subr.bf16.mxu0 0
        %1280 = vmatpush2.bf16.msra.mxu0 0
        %1281 = vmatprep.subr.bf16.mxu0 0
        %1282 = vmatpush2.bf16.msra.mxu0 0
        %1283 = vmatprep.subr.bf16.mxu0 0
        %1284 = vmatpush2.bf16.msra.mxu0 0
        %1285 = vmatprep.subr.bf16.mxu0 0
        %1286 = vmatpush2.bf16.msra.mxu0 0
        %1287 = vmatprep.subr.bf16.mxu0 0
        %1288 = vmatpush2.bf16.msra.mxu0 0
        %1289 = vmatprep.subr.bf16.mxu0 0
        %1290 = vmatpush2.bf16.msra.mxu0 0
        %1291 = vmatprep.mubr.bf16.mxu0 0
        %1292 = vmatmul.mubr.bf16.gmra.mxu0 %v972
        %v1293 = vpop.f32.mrf.mxu0
        %v1294 = vadd.f32 0.0, %v1293
        %v1295 = vpop.f32.mrf.mxu0
        %v1296 = vpop.f32.mrf.mxu0
        %v1297 = vadd.f32 0.0, %v1296
        %v1298 = vpop.f32.mrf.mxu0
        %1299 = vmatprep.mubr.bf16.mxu0 0
        %1300 = vmatmul.mubr.bf16.gmra.mxu0 %v975
        %v1301 = vpop.f32.mrf.mxu0
        %v1302 = vadd.f32 0.0, %v1301
        %v1303 = vpop.f32.mrf.mxu0
        %v1304 = vpop.f32.mrf.mxu0
        %v1305 = vadd.f32 0.0, %v1304
        %v1306 = vpop.f32.mrf.mxu0
        %1307 = vmatprep.mubr.bf16.mxu0 0
        %1308 = vmatmul.mubr.bf16.gmra.mxu0 %v978
        %v1309 = vpop.f32.mrf.mxu0
        %v1310 = vadd.f32 0.0, %v1309
        %v1311 = vpop.f32.mrf.mxu0
        %v1312 = vpop.f32.mrf.mxu0
        %v1313 = vadd.f32 0.0, %v1312
        %v1314 = vpop.f32.mrf.mxu0
        %1315 = vmatprep.mubr.bf16.mxu0 0
        %1316 = vmatmul.mubr.bf16.gmra.mxu0 %v981
        %v1317 = vpop.f32.mrf.mxu0
        %v1318 = vadd.f32 0.0, %v1317
        %v1319 = vpop.f32.mrf.mxu0
        %v1320 = vpop.f32.mrf.mxu0
        %v1321 = vadd.f32 0.0, %v1320
        %v1322 = vpop.f32.mrf.mxu0
        %1323 = vmatprep.mubr.bf16.mxu0 0
        %1324 = vmatmul.mubr.bf16.gmra.mxu0 %v984
        %v1325 = vpop.f32.mrf.mxu0
        %v1326 = vadd.f32 0.0, %v1325
        %v1327 = vpop.f32.mrf.mxu0
        %v1328 = vpop.f32.mrf.mxu0
        %v1329 = vadd.f32 0.0, %v1328
        %v1330 = vpop.f32.mrf.mxu0
        %1331 = vmatprep.mubr.bf16.mxu0 0
        %1332 = vmatmul.mubr.bf16.gmra.mxu0 %v987
        %v1333 = vpop.f32.mrf.mxu0
        %v1334 = vadd.f32 0.0, %v1333
        %v1335 = vpop.f32.mrf.mxu0
        %v1336 = vpop.f32.mrf.mxu0
        %v1337 = vadd.f32 0.0, %v1336
        %v1338 = vpop.f32.mrf.mxu0
        %1339 = vmatprep.mubr.bf16.mxu0 0
        %1340 = vmatmul.mubr.bf16.gmra.mxu0 %v990
        %v1341 = vpop.f32.mrf.mxu0
        %v1342 = vadd.f32 0.0, %v1341
        %v1343 = vpop.f32.mrf.mxu0
        %v1344 = vpop.f32.mrf.mxu0
        %v1345 = vadd.f32 0.0, %v1344
        %v1346 = vpop.f32.mrf.mxu0
        %1347 = vmatprep.mubr.bf16.mxu0 0
        %1348 = vmatmul.mubr.bf16.gmra.mxu0 %v993
        %v1349 = vpop.f32.mrf.mxu0
        %v1350 = vadd.f32 0.0, %v1349
        %v1351 = vpop.f32.mrf.mxu0
        %v1352 = vpop.f32.mrf.mxu0
        %v1353 = vadd.f32 0.0, %v1352
        %v1354 = vpop.f32.mrf.mxu0
        %1355 = vmatprep.mubr.bf16.mxu0 0
        %1356 = vmatmul.mubr.bf16.gmra.mxu0 %v996
        %v1357 = vpop.f32.mrf.mxu0
        %v1358 = vadd.f32 0.0, %v1357
        %v1359 = vpop.f32.mrf.mxu0
        %v1360 = vpop.f32.mrf.mxu0
        %v1361 = vadd.f32 0.0, %v1360
        %v1362 = vpop.f32.mrf.mxu0
        %1363 = vmatprep.mubr.bf16.mxu0 0
        %1364 = vmatmul.mubr.bf16.gmra.mxu0 %v999
        %v1365 = vpop.f32.mrf.mxu0
        %v1366 = vadd.f32 0.0, %v1365
        %v1367 = vpop.f32.mrf.mxu0
        %v1368 = vpop.f32.mrf.mxu0
        %v1369 = vadd.f32 0.0, %v1368
        %v1370 = vpop.f32.mrf.mxu0
        %1371 = vmatprep.mubr.bf16.mxu0 0
        %1372 = vmatmul.mubr.bf16.gmra.mxu0 %v1002
        %v1373 = vpop.f32.mrf.mxu0
        %v1374 = vadd.f32 0.0, %v1373
        %v1375 = vpop.f32.mrf.mxu0
        %v1376 = vpop.f32.mrf.mxu0
        %v1377 = vadd.f32 0.0, %v1376
        %v1378 = vpop.f32.mrf.mxu0
        %1379 = vmatprep.mubr.bf16.mxu0 0
        %1380 = vmatmul.mubr.bf16.gmra.mxu0 %v1005
        %v1381 = vpop.f32.mrf.mxu0
        %v1382 = vadd.f32 0.0, %v1381
        %v1383 = vpop.f32.mrf.mxu0
        %v1384 = vpop.f32.mrf.mxu0
        %v1385 = vadd.f32 0.0, %v1384
        %v1386 = vpop.f32.mrf.mxu0
        %1387 = vmatprep.mubr.bf16.mxu0 0
        %1388 = vmatmul.mubr.bf16.gmra.mxu0 %v1008
        %v1389 = vpop.f32.mrf.mxu0
        %v1390 = vadd.f32 0.0, %v1389
        %v1391 = vpop.f32.mrf.mxu0
        %v1392 = vpop.f32.mrf.mxu0
        %v1393 = vadd.f32 0.0, %v1392
        %v1394 = vpop.f32.mrf.mxu0
        %1395 = vmatprep.mubr.bf16.mxu0 0
        %1396 = vmatmul.mubr.bf16.gmra.mxu0 %v1011
        %v1397 = vpop.f32.mrf.mxu0
        %v1398 = vadd.f32 0.0, %v1397
        %v1399 = vpop.f32.mrf.mxu0
        %v1400 = vpop.f32.mrf.mxu0
        %v1401 = vadd.f32 0.0, %v1400
        %v1402 = vpop.f32.mrf.mxu0
        %1403 = vmatprep.mubr.bf16.mxu0 0
        %1404 = vmatmul.mubr.bf16.gmra.mxu0 %v1014
        %v1405 = vpop.f32.mrf.mxu0
        %v1406 = vadd.f32 0.0, %v1405
        %v1407 = vpop.f32.mrf.mxu0
        %v1408 = vpop.f32.mrf.mxu0
        %v1409 = vadd.f32 0.0, %v1408
        %v1410 = vpop.f32.mrf.mxu0
        %1411 = vmatprep.mubr.bf16.mxu0 0
        %1412 = vmatmul.mubr.bf16.gmra.mxu0 %v1017
        %v1413 = vpop.f32.mrf.mxu0
        %v1414 = vadd.f32 0.0, %v1413
        %v1415 = vpop.f32.mrf.mxu0
        %v1416 = vpop.f32.mrf.mxu0
        %v1417 = vadd.f32 0.0, %v1416
        %v1418 = vpop.f32.mrf.mxu0
        %1419 = vmatprep.mubr.bf16.mxu0 0
        %1420 = vmatmul.mubr.bf16.gmra.mxu0 %v1251
        %v1421 = vpop.f32.mrf.mxu0
        %v1422 = vadd.f32 0.0, %v1421
        %v1423 = vpop.f32.mrf.mxu0
        %v1424 = vpop.f32.mrf.mxu0
        %v1425 = vadd.f32 0.0, %v1424
        %v1426 = vpop.f32.mrf.mxu0
        %1427 = vmatprep.mubr.bf16.mxu0 0
        %1428 = vmatmul.mubr.bf16.gmra.mxu0 %v1254
        %v1429 = vpop.f32.mrf.mxu0
        %v1430 = vadd.f32 0.0, %v1429
        %v1431 = vpop.f32.mrf.mxu0
        %v1432 = vpop.f32.mrf.mxu0
        %v1433 = vadd.f32 0.0, %v1432
        %v1434 = vpop.f32.mrf.mxu0
        %1435 = vdwg.mxu0
        %v1436 = vadd.f32 %v1202, %v1294
        %v1437 = vadd.f32 %v1203, %v1297
        %v1438 = vadd.f32 %v1204, %v1302
        %v1439 = vadd.f32 %v1205, %v1305
        %v1440 = vadd.f32 %v1206, %v1310
        %v1441 = vadd.f32 %v1207, %v1313
        %v1442 = vadd.f32 %v1208, %v1318
        %v1443 = vadd.f32 %v1209, %v1321
        %v1444 = vadd.f32 %v1210, %v1326
        %v1445 = vadd.f32 %v1211, %v1329
        %v1446 = vadd.f32 %v1212, %v1334
        %v1447 = vadd.f32 %v1213, %v1337
        %v1448 = vadd.f32 %v1214, %v1342
        %v1449 = vadd.f32 %v1215, %v1345
        %v1450 = vadd.f32 %v1216, %v1350
        %v1451 = vadd.f32 %v1217, %v1353
        %v1452 = vadd.f32 %v1218, %v1358
        %v1453 = vadd.f32 %v1219, %v1361
        %v1454 = vadd.f32 %v1220, %v1366
        %v1455 = vadd.f32 %v1221, %v1369
        %v1456 = vadd.f32 %v1222, %v1374
        %v1457 = vadd.f32 %v1223, %v1377
        %v1458 = vadd.f32 %v1224, %v1382
        %v1459 = vadd.f32 %v1225, %v1385
        %v1460 = vadd.f32 %v1226, %v1390
        %v1461 = vadd.f32 %v1227, %v1393
        %v1462 = vadd.f32 %v1228, %v1398
        %v1463 = vadd.f32 %v1229, %v1401
        %v1464 = vadd.f32 %v1230, %v1406
        %v1465 = vadd.f32 %v1231, %v1409
        %v1466 = vadd.f32 %v1232, %v1414
        %v1467 = vadd.f32 %v1233, %v1417
        %v1468 = vadd.f32 %v1234, %v1422
        %v1469 = vadd.f32 %v1235, %v1425
        %v1470 = vadd.f32 %v1236, %v1430
        %v1471 = vadd.f32 %v1237, %v1433
        %s1472 = scalar_lea.vmem %s1, 8
        %v1473 = vld [vmem:[%s1472] sm:$0x3]
        %vm1474 = vsmask.f32 6400
        %v1475 = vrot.slane %v340, 1
        %v1476 = vrot.slane %v336, 2
        %v1477 = vor.u32 %v1475, %v1476
        %v1478 = vrot.slane %v348, 1
        %v1479 = vrot.slane %v344, 2
        %v1480 = vor.u32 %v1478, %v1479
        %v1481 = vsel %vm1474, %v1477, %v1480
        %v1482 = vrot.slane %v356, 1
        %v1483 = vrot.slane %v352, 2
        %v1484 = vor.u32 %v1482, %v1483
        %v1485 = vsel %vm1474, %v1480, %v1484
        %v1486 = vrot.slane %v364, 1
        %v1487 = vrot.slane %v360, 2
        %v1488 = vor.u32 %v1486, %v1487
        %v1489 = vsel %vm1474, %v1484, %v1488
        %v1490 = vrot.slane %v372, 1
        %v1491 = vrot.slane %v368, 2
        %v1492 = vor.u32 %v1490, %v1491
        %v1493 = vsel %vm1474, %v1488, %v1492
        %v1494 = vrot.slane %v380, 1
        %v1495 = vrot.slane %v376, 2
        %v1496 = vor.u32 %v1494, %v1495
        %v1497 = vsel %vm1474, %v1492, %v1496
        %v1498 = vrot.slane %v388, 1
        %v1499 = vrot.slane %v384, 2
        %v1500 = vor.u32 %v1498, %v1499
        %v1501 = vsel %vm1474, %v1496, %v1500
        %v1502 = vrot.slane %v396, 1
        %v1503 = vrot.slane %v392, 2
        %v1504 = vor.u32 %v1502, %v1503
        %v1505 = vsel %vm1474, %v1500, %v1504
        %v1506 = vrot.slane %v404, 1
        %v1507 = vrot.slane %v400, 2
        %v1508 = vor.u32 %v1506, %v1507
        %v1509 = vsel %vm1474, %v1504, %v1508
        %v1510 = vrot.slane %v412, 1
        %v1511 = vrot.slane %v408, 2
        %v1512 = vor.u32 %v1510, %v1511
        %v1513 = vsel %vm1474, %v1508, %v1512
        %v1514 = vrot.slane %v420, 1
        %v1515 = vrot.slane %v416, 2
        %v1516 = vor.u32 %v1514, %v1515
        %v1517 = vsel %vm1474, %v1512, %v1516
        %v1518 = vrot.slane %v428, 1
        %v1519 = vrot.slane %v424, 2
        %v1520 = vor.u32 %v1518, %v1519
        %v1521 = vsel %vm1474, %v1516, %v1520
        %v1522 = vrot.slane %v436, 1
        %v1523 = vrot.slane %v432, 2
        %v1524 = vor.u32 %v1522, %v1523
        %v1525 = vsel %vm1474, %v1520, %v1524
        %v1526 = vrot.slane %v444, 1
        %v1527 = vrot.slane %v440, 2
        %v1528 = vor.u32 %v1526, %v1527
        %v1529 = vsel %vm1474, %v1524, %v1528
        %v1530 = vrot.slane %v452, 1
        %v1531 = vrot.slane %v448, 2
        %v1532 = vor.u32 %v1530, %v1531
        %v1533 = vsel %vm1474, %v1528, %v1532
        %v1534 = vrot.slane %v460, 1
        %v1535 = vrot.slane %v456, 2
        %v1536 = vor.u32 %v1534, %v1535
        %v1537 = vsel %vm1474, %v1532, %v1536
        %v1538 = vrot.slane %v468, 1
        %v1539 = vrot.slane %v464, 2
        %v1540 = vor.u32 %v1538, %v1539
        %v1541 = vsel %vm1474, %v1536, %v1540
        %v1543 = vshrl.u32 %v1244, 16
        %v1545 = vrot.slane %v1543, 1
        %v1546 = vshll.u32 %v1244, 16
        %v1548 = vrot.slane %v1546, 2
        %v1549 = vor.u32 %v1545, %v1548
        %v1550 = vsel %vm1474, %v1540, %v1549
        %v1552 = vshrl.u32 %v1245, 16
        %v1554 = vrot.slane %v1552, 1
        %v1555 = vshll.u32 %v1245, 16
        %v1557 = vrot.slane %v1555, 2
        %v1558 = vor.u32 %v1554, %v1557
        %v1559 = vsel %vm1474, %v1549, %v1558
        %v1561 = vsel %vm476, %v1481, 0
        %v1564 = vsel %vm476, %v1485, 0
        %v1567 = vsel %vm476, %v1489, 0
        %v1570 = vsel %vm476, %v1493, 0
        %v1573 = vsel %vm476, %v1497, 0
        %v1576 = vsel %vm476, %v1501, 0
        %v1579 = vsel %vm476, %v1505, 0
        %v1582 = vsel %vm476, %v1509, 0
        %v1585 = vsel %vm476, %v1513, 0
        %v1588 = vsel %vm476, %v1517, 0
        %v1591 = vsel %vm476, %v1521, 0
        %v1594 = vsel %vm476, %v1525, 0
        %v1597 = vsel %vm476, %v1529, 0
        %v1600 = vsel %vm476, %v1533, 0
        %v1603 = vsel %vm476, %v1537, 0
        %v1606 = vsel %vm476, %v1541, 0
        %v1609 = vsel %vm476, %v1550, 0
        %v1612 = vsel %vm476, %v1559, 0
        %v1615 = vsel %vm531, %v1473, 0
        %1617 = vmatprep.subr.bf16.mxu0 0
        %1618 = vmatpush1.bf16.msra.mxu0 0
        %1619 = vmatprep.subr.bf16.mxu0 0
        %1620 = vmatpush1.bf16.msra.mxu0 0
        %1621 = vmatprep.subr.bf16.mxu0 0
        %1622 = vmatpush1.bf16.msra.mxu0 0
        %1623 = vmatprep.subr.bf16.mxu0 0
        %1624 = vmatpush1.bf16.msra.mxu0 0
        %1625 = vmatprep.subr.bf16.mxu0 0
        %1626 = vmatpush1.bf16.msra.mxu0 0
        %1627 = vmatprep.subr.bf16.mxu0 0
        %1628 = vmatpush1.bf16.msra.mxu0 0
        %1629 = vmatprep.subr.bf16.mxu0 0
        %1630 = vmatpush1.bf16.msra.mxu0 0
        %1631 = vmatprep.subr.bf16.mxu0 0
        %1632 = vmatpush1.bf16.msra.mxu0 %v1615
        %1633 = vmatprep.subr.bf16.mxu0 0
        %1634 = vmatpush2.bf16.msra.mxu0 0
        %1635 = vmatprep.subr.bf16.mxu0 0
        %1636 = vmatpush2.bf16.msra.mxu0 0
        %1637 = vmatprep.subr.bf16.mxu0 0
        %1638 = vmatpush2.bf16.msra.mxu0 0
        %1639 = vmatprep.subr.bf16.mxu0 0
        %1640 = vmatpush2.bf16.msra.mxu0 0
        %1641 = vmatprep.subr.bf16.mxu0 0
        %1642 = vmatpush2.bf16.msra.mxu0 0
        %1643 = vmatprep.subr.bf16.mxu0 0
        %1644 = vmatpush2.bf16.msra.mxu0 0
        %1645 = vmatprep.subr.bf16.mxu0 0
        %1646 = vmatpush2.bf16.msra.mxu0 0
        %1647 = vmatprep.subr.bf16.mxu0 0
        %1648 = vmatpush2.bf16.msra.mxu0 0
        %1649 = vmatprep.mubr.bf16.mxu0 0
        %1650 = vmatmul.mubr.bf16.gmra.mxu0 %v1561
        %v1651 = vpop.f32.mrf.mxu0
        %v1652 = vadd.f32 0.0, %v1651
        %v1653 = vpop.f32.mrf.mxu0
        %v1654 = vpop.f32.mrf.mxu0
        %v1655 = vadd.f32 0.0, %v1654
        %v1656 = vpop.f32.mrf.mxu0
        %1657 = vmatprep.mubr.bf16.mxu0 0
        %1658 = vmatmul.mubr.bf16.gmra.mxu0 %v1564
        %v1659 = vpop.f32.mrf.mxu0
        %v1660 = vadd.f32 0.0, %v1659
        %v1661 = vpop.f32.mrf.mxu0
        %v1662 = vpop.f32.mrf.mxu0
        %v1663 = vadd.f32 0.0, %v1662
        %v1664 = vpop.f32.mrf.mxu0
        %1665 = vmatprep.mubr.bf16.mxu0 0
        %1666 = vmatmul.mubr.bf16.gmra.mxu0 %v1567
        %v1667 = vpop.f32.mrf.mxu0
        %v1668 = vadd.f32 0.0, %v1667
        %v1669 = vpop.f32.mrf.mxu0
        %v1670 = vpop.f32.mrf.mxu0
        %v1671 = vadd.f32 0.0, %v1670
        %v1672 = vpop.f32.mrf.mxu0
        %1673 = vmatprep.mubr.bf16.mxu0 0
        %1674 = vmatmul.mubr.bf16.gmra.mxu0 %v1570
        %v1675 = vpop.f32.mrf.mxu0
        %v1676 = vadd.f32 0.0, %v1675
        %v1677 = vpop.f32.mrf.mxu0
        %v1678 = vpop.f32.mrf.mxu0
        %v1679 = vadd.f32 0.0, %v1678
        %v1680 = vpop.f32.mrf.mxu0
        %1681 = vmatprep.mubr.bf16.mxu0 0
        %1682 = vmatmul.mubr.bf16.gmra.mxu0 %v1573
        %v1683 = vpop.f32.mrf.mxu0
        %v1684 = vadd.f32 0.0, %v1683
        %v1685 = vpop.f32.mrf.mxu0
        %v1686 = vpop.f32.mrf.mxu0
        %v1687 = vadd.f32 0.0, %v1686
        %v1688 = vpop.f32.mrf.mxu0
        %1689 = vmatprep.mubr.bf16.mxu0 0
        %1690 = vmatmul.mubr.bf16.gmra.mxu0 %v1576
        %v1691 = vpop.f32.mrf.mxu0
        %v1692 = vadd.f32 0.0, %v1691
        %v1693 = vpop.f32.mrf.mxu0
        %v1694 = vpop.f32.mrf.mxu0
        %v1695 = vadd.f32 0.0, %v1694
        %v1696 = vpop.f32.mrf.mxu0
        %1697 = vmatprep.mubr.bf16.mxu0 0
        %1698 = vmatmul.mubr.bf16.gmra.mxu0 %v1579
        %v1699 = vpop.f32.mrf.mxu0
        %v1700 = vadd.f32 0.0, %v1699
        %v1701 = vpop.f32.mrf.mxu0
        %v1702 = vpop.f32.mrf.mxu0
        %v1703 = vadd.f32 0.0, %v1702
        %v1704 = vpop.f32.mrf.mxu0
        %1705 = vmatprep.mubr.bf16.mxu0 0
        %1706 = vmatmul.mubr.bf16.gmra.mxu0 %v1582
        %v1707 = vpop.f32.mrf.mxu0
        %v1708 = vadd.f32 0.0, %v1707
        %v1709 = vpop.f32.mrf.mxu0
        %v1710 = vpop.f32.mrf.mxu0
        %v1711 = vadd.f32 0.0, %v1710
        %v1712 = vpop.f32.mrf.mxu0
        %1713 = vmatprep.mubr.bf16.mxu0 0
        %1714 = vmatmul.mubr.bf16.gmra.mxu0 %v1585
        %v1715 = vpop.f32.mrf.mxu0
        %v1716 = vadd.f32 0.0, %v1715
        %v1717 = vpop.f32.mrf.mxu0
        %v1718 = vpop.f32.mrf.mxu0
        %v1719 = vadd.f32 0.0, %v1718
        %v1720 = vpop.f32.mrf.mxu0
        %1721 = vmatprep.mubr.bf16.mxu0 0
        %1722 = vmatmul.mubr.bf16.gmra.mxu0 %v1588
        %v1723 = vpop.f32.mrf.mxu0
        %v1724 = vadd.f32 0.0, %v1723
        %v1725 = vpop.f32.mrf.mxu0
        %v1726 = vpop.f32.mrf.mxu0
        %v1727 = vadd.f32 0.0, %v1726
        %v1728 = vpop.f32.mrf.mxu0
        %1729 = vmatprep.mubr.bf16.mxu0 0
        %1730 = vmatmul.mubr.bf16.gmra.mxu0 %v1591
        %v1731 = vpop.f32.mrf.mxu0
        %v1732 = vadd.f32 0.0, %v1731
        %v1733 = vpop.f32.mrf.mxu0
        %v1734 = vpop.f32.mrf.mxu0
        %v1735 = vadd.f32 0.0, %v1734
        %v1736 = vpop.f32.mrf.mxu0
        %1737 = vmatprep.mubr.bf16.mxu0 0
        %1738 = vmatmul.mubr.bf16.gmra.mxu0 %v1594
        %v1739 = vpop.f32.mrf.mxu0
        %v1740 = vadd.f32 0.0, %v1739
        %v1741 = vpop.f32.mrf.mxu0
        %v1742 = vpop.f32.mrf.mxu0
        %v1743 = vadd.f32 0.0, %v1742
        %v1744 = vpop.f32.mrf.mxu0
        %1745 = vmatprep.mubr.bf16.mxu0 0
        %1746 = vmatmul.mubr.bf16.gmra.mxu0 %v1597
        %v1747 = vpop.f32.mrf.mxu0
        %v1748 = vadd.f32 0.0, %v1747
        %v1749 = vpop.f32.mrf.mxu0
        %v1750 = vpop.f32.mrf.mxu0
        %v1751 = vadd.f32 0.0, %v1750
        %v1752 = vpop.f32.mrf.mxu0
        %1753 = vmatprep.mubr.bf16.mxu0 0
        %1754 = vmatmul.mubr.bf16.gmra.mxu0 %v1600
        %v1755 = vpop.f32.mrf.mxu0
        %v1756 = vadd.f32 0.0, %v1755
        %v1757 = vpop.f32.mrf.mxu0
        %v1758 = vpop.f32.mrf.mxu0
        %v1759 = vadd.f32 0.0, %v1758
        %v1760 = vpop.f32.mrf.mxu0
        %1761 = vmatprep.mubr.bf16.mxu0 0
        %1762 = vmatmul.mubr.bf16.gmra.mxu0 %v1603
        %v1763 = vpop.f32.mrf.mxu0
        %v1764 = vadd.f32 0.0, %v1763
        %v1765 = vpop.f32.mrf.mxu0
        %v1766 = vpop.f32.mrf.mxu0
        %v1767 = vadd.f32 0.0, %v1766
        %v1768 = vpop.f32.mrf.mxu0
        %1769 = vmatprep.mubr.bf16.mxu0 0
        %1770 = vmatmul.mubr.bf16.gmra.mxu0 %v1606
        %v1771 = vpop.f32.mrf.mxu0
        %v1772 = vadd.f32 0.0, %v1771
        %v1773 = vpop.f32.mrf.mxu0
        %v1774 = vpop.f32.mrf.mxu0
        %v1775 = vadd.f32 0.0, %v1774
        %v1776 = vpop.f32.mrf.mxu0
        %1777 = vmatprep.mubr.bf16.mxu0 0
        %1778 = vmatmul.mubr.bf16.gmra.mxu0 %v1609
        %v1779 = vpop.f32.mrf.mxu0
        %v1780 = vadd.f32 0.0, %v1779
        %v1781 = vpop.f32.mrf.mxu0
        %v1782 = vpop.f32.mrf.mxu0
        %v1783 = vadd.f32 0.0, %v1782
        %v1784 = vpop.f32.mrf.mxu0
        %1785 = vmatprep.mubr.bf16.mxu0 0
        %1786 = vmatmul.mubr.bf16.gmra.mxu0 %v1612
        %v1787 = vpop.f32.mrf.mxu0
        %v1788 = vadd.f32 0.0, %v1787
        %v1789 = vpop.f32.mrf.mxu0
        %v1790 = vpop.f32.mrf.mxu0
        %v1791 = vadd.f32 0.0, %v1790
        %v1792 = vpop.f32.mrf.mxu0
        %1793 = vdwg.mxu0
        %v1794 = vadd.f32 %v1436, %v1652
        %v1795 = vadd.f32 %v1437, %v1655
        %v1796 = vadd.f32 %v1438, %v1660
        %v1797 = vadd.f32 %v1439, %v1663
        %v1798 = vadd.f32 %v1440, %v1668
        %v1799 = vadd.f32 %v1441, %v1671
        %v1800 = vadd.f32 %v1442, %v1676
        %v1801 = vadd.f32 %v1443, %v1679
        %v1802 = vadd.f32 %v1444, %v1684
        %v1803 = vadd.f32 %v1445, %v1687
        %v1804 = vadd.f32 %v1446, %v1692
        %v1805 = vadd.f32 %v1447, %v1695
        %v1806 = vadd.f32 %v1448, %v1700
        %v1807 = vadd.f32 %v1449, %v1703
        %v1808 = vadd.f32 %v1450, %v1708
        %v1809 = vadd.f32 %v1451, %v1711
        %v1810 = vadd.f32 %v1452, %v1716
        %v1811 = vadd.f32 %v1453, %v1719
        %v1812 = vadd.f32 %v1454, %v1724
        %v1813 = vadd.f32 %v1455, %v1727
        %v1814 = vadd.f32 %v1456, %v1732
        %v1815 = vadd.f32 %v1457, %v1735
        %v1816 = vadd.f32 %v1458, %v1740
        %v1817 = vadd.f32 %v1459, %v1743
        %v1818 = vadd.f32 %v1460, %v1748
        %v1819 = vadd.f32 %v1461, %v1751
        %v1820 = vadd.f32 %v1462, %v1756
        %v1821 = vadd.f32 %v1463, %v1759
        %v1822 = vadd.f32 %v1464, %v1764
        %v1823 = vadd.f32 %v1465, %v1767
        %v1824 = vadd.f32 %v1466, %v1772
        %v1825 = vadd.f32 %v1467, %v1775
        %v1826 = vadd.f32 %v1468, %v1780
        %v1827 = vadd.f32 %v1469, %v1783
        %v1828 = vadd.f32 %v1470, %v1788
        %v1829 = vadd.f32 %v1471, %v1791
        %s1830 = scalar_lea.vmem %s1, 10
        %v1831 = vld [vmem:[%s1830] sm:$0x3]
        %vm1832 = vcmask 1045504
        %v1833 = vrot.slane %v309, 2
        %v1834 = vrot.slane %v310, 2
        %v1835 = vsel %vm1832, %v1833, %v1834
        %v1836 = vrot.slane %v311, 2
        %v1837 = vsel %vm1832, %v1834, %v1836
        %v1838 = vrot.slane %v312, 2
        %v1839 = vsel %vm1832, %v1836, %v1838
        %v1840 = vrot.slane %v313, 2
        %v1841 = vsel %vm1832, %v1838, %v1840
        %v1842 = vrot.slane %v314, 2
        %v1843 = vsel %vm1832, %v1840, %v1842
        %v1844 = vrot.slane %v315, 2
        %v1845 = vsel %vm1832, %v1842, %v1844
        %v1846 = vrot.slane %v316, 2
        %v1847 = vsel %vm1832, %v1844, %v1846
        %v1848 = vrot.slane %v317, 2
        %v1849 = vsel %vm1832, %v1846, %v1848
        %v1850 = vrot.slane %v318, 2
        %v1851 = vsel %vm1832, %v1848, %v1850
        %v1852 = vrot.slane %v319, 2
        %v1853 = vsel %vm1832, %v1850, %v1852
        %v1854 = vrot.slane %v320, 2
        %v1855 = vsel %vm1832, %v1852, %v1854
        %v1856 = vrot.slane %v321, 2
        %v1857 = vsel %vm1832, %v1854, %v1856
        %v1858 = vrot.slane %v322, 2
        %v1859 = vsel %vm1832, %v1856, %v1858
        %v1860 = vrot.slane %v323, 2
        %v1861 = vsel %vm1832, %v1858, %v1860
        %v1862 = vrot.slane %v324, 2
        %v1863 = vsel %vm1832, %v1860, %v1862
        %v1864 = vrot.slane %v325, 2
        %v1865 = vsel %vm1832, %v1862, %v1864
        %v1866 = vrot.slane %v1244, 2
        %v1867 = vsel %vm1832, %v1864, %v1866
        %v1868 = vrot.slane %v1245, 2
        %v1869 = vsel %vm1832, %v1866, %v1868
        %v1871 = vsel %vm476, %v1835, 0
        %v1874 = vsel %vm476, %v1837, 0
        %v1877 = vsel %vm476, %v1839, 0
        %v1880 = vsel %vm476, %v1841, 0
        %v1883 = vsel %vm476, %v1843, 0
        %v1886 = vsel %vm476, %v1845, 0
        %v1889 = vsel %vm476, %v1847, 0
        %v1892 = vsel %vm476, %v1849, 0
        %v1895 = vsel %vm476, %v1851, 0
        %v1898 = vsel %vm476, %v1853, 0
        %v1901 = vsel %vm476, %v1855, 0
        %v1904 = vsel %vm476, %v1857, 0
        %v1907 = vsel %vm476, %v1859, 0
        %v1910 = vsel %vm476, %v1861, 0
        %v1913 = vsel %vm476, %v1863, 0
        %v1916 = vsel %vm476, %v1865, 0
        %v1919 = vsel %vm476, %v1867, 0
        %v1922 = vsel %vm476, %v1869, 0
        %v1925 = vsel %vm531, %v1831, 0
        %1927 = vmatprep.subr.bf16.mxu0 0
        %1928 = vmatpush1.bf16.msra.mxu0 0
        %1929 = vmatprep.subr.bf16.mxu0 0
        %1930 = vmatpush1.bf16.msra.mxu0 0
        %1931 = vmatprep.subr.bf16.mxu0 0
        %1932 = vmatpush1.bf16.msra.mxu0 0
        %1933 = vmatprep.subr.bf16.mxu0 0
        %1934 = vmatpush1.bf16.msra.mxu0 0
        %1935 = vmatprep.subr.bf16.mxu0 0
        %1936 = vmatpush1.bf16.msra.mxu0 0
        %1937 = vmatprep.subr.bf16.mxu0 0
        %1938 = vmatpush1.bf16.msra.mxu0 0
        %1939 = vmatprep.subr.bf16.mxu0 0
        %1940 = vmatpush1.bf16.msra.mxu0 0
        %1941 = vmatprep.subr.bf16.mxu0 0
        %1942 = vmatpush1.bf16.msra.mxu0 %v1925
        %1943 = vmatprep.subr.bf16.mxu0 0
        %1944 = vmatpush2.bf16.msra.mxu0 0
        %1945 = vmatprep.subr.bf16.mxu0 0
        %1946 = vmatpush2.bf16.msra.mxu0 0
        %1947 = vmatprep.subr.bf16.mxu0 0
        %1948 = vmatpush2.bf16.msra.mxu0 0
        %1949 = vmatprep.subr.bf16.mxu0 0
        %1950 = vmatpush2.bf16.msra.mxu0 0
        %1951 = vmatprep.subr.bf16.mxu0 0
        %1952 = vmatpush2.bf16.msra.mxu0 0
        %1953 = vmatprep.subr.bf16.mxu0 0
        %1954 = vmatpush2.bf16.msra.mxu0 0
        %1955 = vmatprep.subr.bf16.mxu0 0
        %1956 = vmatpush2.bf16.msra.mxu0 0
        %1957 = vmatprep.subr.bf16.mxu0 0
        %1958 = vmatpush2.bf16.msra.mxu0 0
        %1959 = vmatprep.mubr.bf16.mxu0 0
        %1960 = vmatmul.mubr.bf16.gmra.mxu0 %v1871
        %v1961 = vpop.f32.mrf.mxu0
        %v1962 = vadd.f32 0.0, %v1961
        %v1963 = vpop.f32.mrf.mxu0
        %v1964 = vpop.f32.mrf.mxu0
        %v1965 = vadd.f32 0.0, %v1964
        %v1966 = vpop.f32.mrf.mxu0
        %1967 = vmatprep.mubr.bf16.mxu0 0
        %1968 = vmatmul.mubr.bf16.gmra.mxu0 %v1874
        %v1969 = vpop.f32.mrf.mxu0
        %v1970 = vadd.f32 0.0, %v1969
        %v1971 = vpop.f32.mrf.mxu0
        %v1972 = vpop.f32.mrf.mxu0
        %v1973 = vadd.f32 0.0, %v1972
        %v1974 = vpop.f32.mrf.mxu0
        %1975 = vmatprep.mubr.bf16.mxu0 0
        %1976 = vmatmul.mubr.bf16.gmra.mxu0 %v1877
        %v1977 = vpop.f32.mrf.mxu0
        %v1978 = vadd.f32 0.0, %v1977
        %v1979 = vpop.f32.mrf.mxu0
        %v1980 = vpop.f32.mrf.mxu0
        %v1981 = vadd.f32 0.0, %v1980
        %v1982 = vpop.f32.mrf.mxu0
        %1983 = vmatprep.mubr.bf16.mxu0 0
        %1984 = vmatmul.mubr.bf16.gmra.mxu0 %v1880
        %v1985 = vpop.f32.mrf.mxu0
        %v1986 = vadd.f32 0.0, %v1985
        %v1987 = vpop.f32.mrf.mxu0
        %v1988 = vpop.f32.mrf.mxu0
        %v1989 = vadd.f32 0.0, %v1988
        %v1990 = vpop.f32.mrf.mxu0
        %1991 = vmatprep.mubr.bf16.mxu0 0
        %1992 = vmatmul.mubr.bf16.gmra.mxu0 %v1883
        %v1993 = vpop.f32.mrf.mxu0
        %v1994 = vadd.f32 0.0, %v1993
        %v1995 = vpop.f32.mrf.mxu0
        %v1996 = vpop.f32.mrf.mxu0
        %v1997 = vadd.f32 0.0, %v1996
        %v1998 = vpop.f32.mrf.mxu0
        %1999 = vmatprep.mubr.bf16.mxu0 0
        %2000 = vmatmul.mubr.bf16.gmra.mxu0 %v1886
        %v2001 = vpop.f32.mrf.mxu0
        %v2002 = vadd.f32 0.0, %v2001
        %v2003 = vpop.f32.mrf.mxu0
        %v2004 = vpop.f32.mrf.mxu0
        %v2005 = vadd.f32 0.0, %v2004
        %v2006 = vpop.f32.mrf.mxu0
        %2007 = vmatprep.mubr.bf16.mxu0 0
        %2008 = vmatmul.mubr.bf16.gmra.mxu0 %v1889
        %v2009 = vpop.f32.mrf.mxu0
        %v2010 = vadd.f32 0.0, %v2009
        %v2011 = vpop.f32.mrf.mxu0
        %v2012 = vpop.f32.mrf.mxu0
        %v2013 = vadd.f32 0.0, %v2012
        %v2014 = vpop.f32.mrf.mxu0
        %2015 = vmatprep.mubr.bf16.mxu0 0
        %2016 = vmatmul.mubr.bf16.gmra.mxu0 %v1892
        %v2017 = vpop.f32.mrf.mxu0
        %v2018 = vadd.f32 0.0, %v2017
        %v2019 = vpop.f32.mrf.mxu0
        %v2020 = vpop.f32.mrf.mxu0
        %v2021 = vadd.f32 0.0, %v2020
        %v2022 = vpop.f32.mrf.mxu0
        %2023 = vmatprep.mubr.bf16.mxu0 0
        %2024 = vmatmul.mubr.bf16.gmra.mxu0 %v1895
        %v2025 = vpop.f32.mrf.mxu0
        %v2026 = vadd.f32 0.0, %v2025
        %v2027 = vpop.f32.mrf.mxu0
        %v2028 = vpop.f32.mrf.mxu0
        %v2029 = vadd.f32 0.0, %v2028
        %v2030 = vpop.f32.mrf.mxu0
        %2031 = vmatprep.mubr.bf16.mxu0 0
        %2032 = vmatmul.mubr.bf16.gmra.mxu0 %v1898
        %v2033 = vpop.f32.mrf.mxu0
        %v2034 = vadd.f32 0.0, %v2033
        %v2035 = vpop.f32.mrf.mxu0
        %v2036 = vpop.f32.mrf.mxu0
        %v2037 = vadd.f32 0.0, %v2036
        %v2038 = vpop.f32.mrf.mxu0
        %2039 = vmatprep.mubr.bf16.mxu0 0
        %2040 = vmatmul.mubr.bf16.gmra.mxu0 %v1901
        %v2041 = vpop.f32.mrf.mxu0
        %v2042 = vadd.f32 0.0, %v2041
        %v2043 = vpop.f32.mrf.mxu0
        %v2044 = vpop.f32.mrf.mxu0
        %v2045 = vadd.f32 0.0, %v2044
        %v2046 = vpop.f32.mrf.mxu0
        %2047 = vmatprep.mubr.bf16.mxu0 0
        %2048 = vmatmul.mubr.bf16.gmra.mxu0 %v1904
        %v2049 = vpop.f32.mrf.mxu0
        %v2050 = vadd.f32 0.0, %v2049
        %v2051 = vpop.f32.mrf.mxu0
        %v2052 = vpop.f32.mrf.mxu0
        %v2053 = vadd.f32 0.0, %v2052
        %v2054 = vpop.f32.mrf.mxu0
        %2055 = vmatprep.mubr.bf16.mxu0 0
        %2056 = vmatmul.mubr.bf16.gmra.mxu0 %v1907
        %v2057 = vpop.f32.mrf.mxu0
        %v2058 = vadd.f32 0.0, %v2057
        %v2059 = vpop.f32.mrf.mxu0
        %v2060 = vpop.f32.mrf.mxu0
        %v2061 = vadd.f32 0.0, %v2060
        %v2062 = vpop.f32.mrf.mxu0
        %2063 = vmatprep.mubr.bf16.mxu0 0
        %2064 = vmatmul.mubr.bf16.gmra.mxu0 %v1910
        %v2065 = vpop.f32.mrf.mxu0
        %v2066 = vadd.f32 0.0, %v2065
        %v2067 = vpop.f32.mrf.mxu0
        %v2068 = vpop.f32.mrf.mxu0
        %v2069 = vadd.f32 0.0, %v2068
        %v2070 = vpop.f32.mrf.mxu0
        %2071 = vmatprep.mubr.bf16.mxu0 0
        %2072 = vmatmul.mubr.bf16.gmra.mxu0 %v1913
        %v2073 = vpop.f32.mrf.mxu0
        %v2074 = vadd.f32 0.0, %v2073
        %v2075 = vpop.f32.mrf.mxu0
        %v2076 = vpop.f32.mrf.mxu0
        %v2077 = vadd.f32 0.0, %v2076
        %v2078 = vpop.f32.mrf.mxu0
        %2079 = vmatprep.mubr.bf16.mxu0 0
        %2080 = vmatmul.mubr.bf16.gmra.mxu0 %v1916
        %v2081 = vpop.f32.mrf.mxu0
        %v2082 = vadd.f32 0.0, %v2081
        %v2083 = vpop.f32.mrf.mxu0
        %v2084 = vpop.f32.mrf.mxu0
        %v2085 = vadd.f32 0.0, %v2084
        %v2086 = vpop.f32.mrf.mxu0
        %2087 = vmatprep.mubr.bf16.mxu0 0
        %2088 = vmatmul.mubr.bf16.gmra.mxu0 %v1919
        %v2089 = vpop.f32.mrf.mxu0
        %v2090 = vadd.f32 0.0, %v2089
        %v2091 = vpop.f32.mrf.mxu0
        %v2092 = vpop.f32.mrf.mxu0
        %v2093 = vadd.f32 0.0, %v2092
        %v2094 = vpop.f32.mrf.mxu0
        %2095 = vmatprep.mubr.bf16.mxu0 0
        %2096 = vmatmul.mubr.bf16.gmra.mxu0 %v1922
        %v2097 = vpop.f32.mrf.mxu0
        %v2098 = vadd.f32 0.0, %v2097
        %v2099 = vpop.f32.mrf.mxu0
        %v2100 = vpop.f32.mrf.mxu0
        %v2101 = vadd.f32 0.0, %v2100
        %v2102 = vpop.f32.mrf.mxu0
        %2103 = vdwg.mxu0
        %v2104 = vadd.f32 %v1794, %v1962
        %v2105 = vadd.f32 %v1795, %v1965
        %v2106 = vadd.f32 %v1796, %v1970
        %v2107 = vadd.f32 %v1797, %v1973
        %v2108 = vadd.f32 %v1798, %v1978
        %v2109 = vadd.f32 %v1799, %v1981
        %v2110 = vadd.f32 %v1800, %v1986
        %v2111 = vadd.f32 %v1801, %v1989
        %v2112 = vadd.f32 %v1802, %v1994
        %v2113 = vadd.f32 %v1803, %v1997
        %v2114 = vadd.f32 %v1804, %v2002
        %v2115 = vadd.f32 %v1805, %v2005
        %v2116 = vadd.f32 %v1806, %v2010
        %v2117 = vadd.f32 %v1807, %v2013
        %v2118 = vadd.f32 %v1808, %v2018
        %v2119 = vadd.f32 %v1809, %v2021
        %v2120 = vadd.f32 %v1810, %v2026
        %v2121 = vadd.f32 %v1811, %v2029
        %v2122 = vadd.f32 %v1812, %v2034
        %v2123 = vadd.f32 %v1813, %v2037
        %v2124 = vadd.f32 %v1814, %v2042
        %v2125 = vadd.f32 %v1815, %v2045
        %v2126 = vadd.f32 %v1816, %v2050
        %v2127 = vadd.f32 %v1817, %v2053
        %v2128 = vadd.f32 %v1818, %v2058
        %v2129 = vadd.f32 %v1819, %v2061
        %v2130 = vadd.f32 %v1820, %v2066
        %v2131 = vadd.f32 %v1821, %v2069
        %v2132 = vadd.f32 %v1822, %v2074
        %v2133 = vadd.f32 %v1823, %v2077
        %v2134 = vadd.f32 %v1824, %v2082
        %v2135 = vadd.f32 %v1825, %v2085
        %v2136 = vadd.f32 %v1826, %v2090
        %v2137 = vadd.f32 %v1827, %v2093
        %v2138 = vadd.f32 %v1828, %v2098
        %v2139 = vadd.f32 %v1829, %v2101
        %s2140 = scalar_lea.vmem %s1, 12
        %v2141 = vld [vmem:[%s2140] sm:$0x3]
        %v2144 = vunpack.c.l.b16 %v229
        %v2145 = vunpack.c.l.b16 %v230
        %v2146 = vpack.c.b16 %v2144, %v1243
        %v2147 = vpack.c.b16 %v2145, %v2145
        %v2148 = vrot.slane %v2146, 2
        %v2149 = vsel %vm1832, %v1866, %v2148
        %v2150 = vrot.slane %v2147, 2
        %v2151 = vsel %vm1832, %v2148, %v2150
        %v2153 = vsel %vm476, %v2149, 0
        %v2156 = vsel %vm476, %v2151, 0
        %v2159 = vsel %vm531, %v2141, 0
        %2161 = vmatprep.subr.bf16.mxu0 0
        %2162 = vmatpush1.bf16.msra.mxu0 0
        %2163 = vmatprep.subr.bf16.mxu0 0
        %2164 = vmatpush1.bf16.msra.mxu0 0
        %2165 = vmatprep.subr.bf16.mxu0 0
        %2166 = vmatpush1.bf16.msra.mxu0 0
        %2167 = vmatprep.subr.bf16.mxu0 0
        %2168 = vmatpush1.bf16.msra.mxu0 0
        %2169 = vmatprep.subr.bf16.mxu0 0
        %2170 = vmatpush1.bf16.msra.mxu0 0
        %2171 = vmatprep.subr.bf16.mxu0 0
        %2172 = vmatpush1.bf16.msra.mxu0 0
        %2173 = vmatprep.subr.bf16.mxu0 0
        %2174 = vmatpush1.bf16.msra.mxu0 0
        %2175 = vmatprep.subr.bf16.mxu0 0
        %2176 = vmatpush1.bf16.msra.mxu0 %v2159
        %2177 = vmatprep.subr.bf16.mxu0 0
        %2178 = vmatpush2.bf16.msra.mxu0 0
        %2179 = vmatprep.subr.bf16.mxu0 0
        %2180 = vmatpush2.bf16.msra.mxu0 0
        %2181 = vmatprep.subr.bf16.mxu0 0
        %2182 = vmatpush2.bf16.msra.mxu0 0
        %2183 = vmatprep.subr.bf16.mxu0 0
        %2184 = vmatpush2.bf16.msra.mxu0 0
        %2185 = vmatprep.subr.bf16.mxu0 0
        %2186 = vmatpush2.bf16.msra.mxu0 0
        %2187 = vmatprep.subr.bf16.mxu0 0
        %2188 = vmatpush2.bf16.msra.mxu0 0
        %2189 = vmatprep.subr.bf16.mxu0 0
        %2190 = vmatpush2.bf16.msra.mxu0 0
        %2191 = vmatprep.subr.bf16.mxu0 0
        %2192 = vmatpush2.bf16.msra.mxu0 0
        %2193 = vmatprep.mubr.bf16.mxu0 0
        %2194 = vmatmul.mubr.bf16.gmra.mxu0 %v1874
        %v2195 = vpop.f32.mrf.mxu0
        %v2196 = vadd.f32 0.0, %v2195
        %v2197 = vpop.f32.mrf.mxu0
        %v2198 = vpop.f32.mrf.mxu0
        %v2199 = vadd.f32 0.0, %v2198
        %v2200 = vpop.f32.mrf.mxu0
        %2201 = vmatprep.mubr.bf16.mxu0 0
        %2202 = vmatmul.mubr.bf16.gmra.mxu0 %v1877
        %v2203 = vpop.f32.mrf.mxu0
        %v2204 = vadd.f32 0.0, %v2203
        %v2205 = vpop.f32.mrf.mxu0
        %v2206 = vpop.f32.mrf.mxu0
        %v2207 = vadd.f32 0.0, %v2206
        %v2208 = vpop.f32.mrf.mxu0
        %2209 = vmatprep.mubr.bf16.mxu0 0
        %2210 = vmatmul.mubr.bf16.gmra.mxu0 %v1880
        %v2211 = vpop.f32.mrf.mxu0
        %v2212 = vadd.f32 0.0, %v2211
        %v2213 = vpop.f32.mrf.mxu0
        %v2214 = vpop.f32.mrf.mxu0
        %v2215 = vadd.f32 0.0, %v2214
        %v2216 = vpop.f32.mrf.mxu0
        %2217 = vmatprep.mubr.bf16.mxu0 0
        %2218 = vmatmul.mubr.bf16.gmra.mxu0 %v1883
        %v2219 = vpop.f32.mrf.mxu0
        %v2220 = vadd.f32 0.0, %v2219
        %v2221 = vpop.f32.mrf.mxu0
        %v2222 = vpop.f32.mrf.mxu0
        %v2223 = vadd.f32 0.0, %v2222
        %v2224 = vpop.f32.mrf.mxu0
        %2225 = vmatprep.mubr.bf16.mxu0 0
        %2226 = vmatmul.mubr.bf16.gmra.mxu0 %v1886
        %v2227 = vpop.f32.mrf.mxu0
        %v2228 = vadd.f32 0.0, %v2227
        %v2229 = vpop.f32.mrf.mxu0
        %v2230 = vpop.f32.mrf.mxu0
        %v2231 = vadd.f32 0.0, %v2230
        %v2232 = vpop.f32.mrf.mxu0
        %2233 = vmatprep.mubr.bf16.mxu0 0
        %2234 = vmatmul.mubr.bf16.gmra.mxu0 %v1889
        %v2235 = vpop.f32.mrf.mxu0
        %v2236 = vadd.f32 0.0, %v2235
        %v2237 = vpop.f32.mrf.mxu0
        %v2238 = vpop.f32.mrf.mxu0
        %v2239 = vadd.f32 0.0, %v2238
        %v2240 = vpop.f32.mrf.mxu0
        %2241 = vmatprep.mubr.bf16.mxu0 0
        %2242 = vmatmul.mubr.bf16.gmra.mxu0 %v1892
        %v2243 = vpop.f32.mrf.mxu0
        %v2244 = vadd.f32 0.0, %v2243
        %v2245 = vpop.f32.mrf.mxu0
        %v2246 = vpop.f32.mrf.mxu0
        %v2247 = vadd.f32 0.0, %v2246
        %v2248 = vpop.f32.mrf.mxu0
        %2249 = vmatprep.mubr.bf16.mxu0 0
        %2250 = vmatmul.mubr.bf16.gmra.mxu0 %v1895
        %v2251 = vpop.f32.mrf.mxu0
        %v2252 = vadd.f32 0.0, %v2251
        %v2253 = vpop.f32.mrf.mxu0
        %v2254 = vpop.f32.mrf.mxu0
        %v2255 = vadd.f32 0.0, %v2254
        %v2256 = vpop.f32.mrf.mxu0
        %2257 = vmatprep.mubr.bf16.mxu0 0
        %2258 = vmatmul.mubr.bf16.gmra.mxu0 %v1898
        %v2259 = vpop.f32.mrf.mxu0
        %v2260 = vadd.f32 0.0, %v2259
        %v2261 = vpop.f32.mrf.mxu0
        %v2262 = vpop.f32.mrf.mxu0
        %v2263 = vadd.f32 0.0, %v2262
        %v2264 = vpop.f32.mrf.mxu0
        %2265 = vmatprep.mubr.bf16.mxu0 0
        %2266 = vmatmul.mubr.bf16.gmra.mxu0 %v1901
        %v2267 = vpop.f32.mrf.mxu0
        %v2268 = vadd.f32 0.0, %v2267
        %v2269 = vpop.f32.mrf.mxu0
        %v2270 = vpop.f32.mrf.mxu0
        %v2271 = vadd.f32 0.0, %v2270
        %v2272 = vpop.f32.mrf.mxu0
        %2273 = vmatprep.mubr.bf16.mxu0 0
        %2274 = vmatmul.mubr.bf16.gmra.mxu0 %v1904
        %v2275 = vpop.f32.mrf.mxu0
        %v2276 = vadd.f32 0.0, %v2275
        %v2277 = vpop.f32.mrf.mxu0
        %v2278 = vpop.f32.mrf.mxu0
        %v2279 = vadd.f32 0.0, %v2278
        %v2280 = vpop.f32.mrf.mxu0
        %2281 = vmatprep.mubr.bf16.mxu0 0
        %2282 = vmatmul.mubr.bf16.gmra.mxu0 %v1907
        %v2283 = vpop.f32.mrf.mxu0
        %v2284 = vadd.f32 0.0, %v2283
        %v2285 = vpop.f32.mrf.mxu0
        %v2286 = vpop.f32.mrf.mxu0
        %v2287 = vadd.f32 0.0, %v2286
        %v2288 = vpop.f32.mrf.mxu0
        %2289 = vmatprep.mubr.bf16.mxu0 0
        %2290 = vmatmul.mubr.bf16.gmra.mxu0 %v1910
        %v2291 = vpop.f32.mrf.mxu0
        %v2292 = vadd.f32 0.0, %v2291
        %v2293 = vpop.f32.mrf.mxu0
        %v2294 = vpop.f32.mrf.mxu0
        %v2295 = vadd.f32 0.0, %v2294
        %v2296 = vpop.f32.mrf.mxu0
        %2297 = vmatprep.mubr.bf16.mxu0 0
        %2298 = vmatmul.mubr.bf16.gmra.mxu0 %v1913
        %v2299 = vpop.f32.mrf.mxu0
        %v2300 = vadd.f32 0.0, %v2299
        %v2301 = vpop.f32.mrf.mxu0
        %v2302 = vpop.f32.mrf.mxu0
        %v2303 = vadd.f32 0.0, %v2302
        %v2304 = vpop.f32.mrf.mxu0
        %2305 = vmatprep.mubr.bf16.mxu0 0
        %2306 = vmatmul.mubr.bf16.gmra.mxu0 %v1916
        %v2307 = vpop.f32.mrf.mxu0
        %v2308 = vadd.f32 0.0, %v2307
        %v2309 = vpop.f32.mrf.mxu0
        %v2310 = vpop.f32.mrf.mxu0
        %v2311 = vadd.f32 0.0, %v2310
        %v2312 = vpop.f32.mrf.mxu0
        %2313 = vmatprep.mubr.bf16.mxu0 0
        %2314 = vmatmul.mubr.bf16.gmra.mxu0 %v1919
        %v2315 = vpop.f32.mrf.mxu0
        %v2316 = vadd.f32 0.0, %v2315
        %v2317 = vpop.f32.mrf.mxu0
        %v2318 = vpop.f32.mrf.mxu0
        %v2319 = vadd.f32 0.0, %v2318
        %v2320 = vpop.f32.mrf.mxu0
        %2321 = vmatprep.mubr.bf16.mxu0 0
        %2322 = vmatmul.mubr.bf16.gmra.mxu0 %v2153
        %v2323 = vpop.f32.mrf.mxu0
        %v2324 = vadd.f32 0.0, %v2323
        %v2325 = vpop.f32.mrf.mxu0
        %v2326 = vpop.f32.mrf.mxu0
        %v2327 = vadd.f32 0.0, %v2326
        %v2328 = vpop.f32.mrf.mxu0
        %2329 = vmatprep.mubr.bf16.mxu0 0
        %2330 = vmatmul.mubr.bf16.gmra.mxu0 %v2156
        %v2331 = vpop.f32.mrf.mxu0
        %v2332 = vadd.f32 0.0, %v2331
        %v2333 = vpop.f32.mrf.mxu0
        %v2334 = vpop.f32.mrf.mxu0
        %v2335 = vadd.f32 0.0, %v2334
        %v2336 = vpop.f32.mrf.mxu0
        %2337 = vdwg.mxu0
        %v2338 = vadd.f32 %v2104, %v2196
        %v2339 = vadd.f32 %v2105, %v2199
        %v2340 = vadd.f32 %v2106, %v2204
        %v2341 = vadd.f32 %v2107, %v2207
        %v2342 = vadd.f32 %v2108, %v2212
        %v2343 = vadd.f32 %v2109, %v2215
        %v2344 = vadd.f32 %v2110, %v2220
        %v2345 = vadd.f32 %v2111, %v2223
        %v2346 = vadd.f32 %v2112, %v2228
        %v2347 = vadd.f32 %v2113, %v2231
        %v2348 = vadd.f32 %v2114, %v2236
        %v2349 = vadd.f32 %v2115, %v2239
        %v2350 = vadd.f32 %v2116, %v2244
        %v2351 = vadd.f32 %v2117, %v2247
        %v2352 = vadd.f32 %v2118, %v2252
        %v2353 = vadd.f32 %v2119, %v2255
        %v2354 = vadd.f32 %v2120, %v2260
        %v2355 = vadd.f32 %v2121, %v2263
        %v2356 = vadd.f32 %v2122, %v2268
        %v2357 = vadd.f32 %v2123, %v2271
        %v2358 = vadd.f32 %v2124, %v2276
        %v2359 = vadd.f32 %v2125, %v2279
        %v2360 = vadd.f32 %v2126, %v2284
        %v2361 = vadd.f32 %v2127, %v2287
        %v2362 = vadd.f32 %v2128, %v2292
        %v2363 = vadd.f32 %v2129, %v2295
        %v2364 = vadd.f32 %v2130, %v2300
        %v2365 = vadd.f32 %v2131, %v2303
        %v2366 = vadd.f32 %v2132, %v2308
        %v2367 = vadd.f32 %v2133, %v2311
        %v2368 = vadd.f32 %v2134, %v2316
        %v2369 = vadd.f32 %v2135, %v2319
        %v2370 = vadd.f32 %v2136, %v2324
        %v2371 = vadd.f32 %v2137, %v2327
        %v2372 = vadd.f32 %v2138, %v2332
        %v2373 = vadd.f32 %v2139, %v2335
        %s2374 = scalar_lea.vmem %s1, 14
        %v2375 = vld [vmem:[%s2374] sm:$0x3]
        %vm2376 = vsmask.f32 5376
        %v2377 = vrot.slane %v348, 2
        %v2378 = vrot.slane %v344, 3
        %v2379 = vor.u32 %v2377, %v2378
        %v2380 = vrot.slane %v356, 2
        %v2381 = vrot.slane %v352, 3
        %v2382 = vor.u32 %v2380, %v2381
        %v2383 = vsel %vm2376, %v2379, %v2382
        %v2384 = vrot.slane %v364, 2
        %v2385 = vrot.slane %v360, 3
        %v2386 = vor.u32 %v2384, %v2385
        %v2387 = vsel %vm2376, %v2382, %v2386
        %v2388 = vrot.slane %v372, 2
        %v2389 = vrot.slane %v368, 3
        %v2390 = vor.u32 %v2388, %v2389
        %v2391 = vsel %vm2376, %v2386, %v2390
        %v2392 = vrot.slane %v380, 2
        %v2393 = vrot.slane %v376, 3
        %v2394 = vor.u32 %v2392, %v2393
        %v2395 = vsel %vm2376, %v2390, %v2394
        %v2396 = vrot.slane %v388, 2
        %v2397 = vrot.slane %v384, 3
        %v2398 = vor.u32 %v2396, %v2397
        %v2399 = vsel %vm2376, %v2394, %v2398
        %v2400 = vrot.slane %v396, 2
        %v2401 = vrot.slane %v392, 3
        %v2402 = vor.u32 %v2400, %v2401
        %v2403 = vsel %vm2376, %v2398, %v2402
        %v2404 = vrot.slane %v404, 2
        %v2405 = vrot.slane %v400, 3
        %v2406 = vor.u32 %v2404, %v2405
        %v2407 = vsel %vm2376, %v2402, %v2406
        %v2408 = vrot.slane %v412, 2
        %v2409 = vrot.slane %v408, 3
        %v2410 = vor.u32 %v2408, %v2409
        %v2411 = vsel %vm2376, %v2406, %v2410
        %v2412 = vrot.slane %v420, 2
        %v2413 = vrot.slane %v416, 3
        %v2414 = vor.u32 %v2412, %v2413
        %v2415 = vsel %vm2376, %v2410, %v2414
        %v2416 = vrot.slane %v428, 2
        %v2417 = vrot.slane %v424, 3
        %v2418 = vor.u32 %v2416, %v2417
        %v2419 = vsel %vm2376, %v2414, %v2418
        %v2420 = vrot.slane %v436, 2
        %v2421 = vrot.slane %v432, 3
        %v2422 = vor.u32 %v2420, %v2421
        %v2423 = vsel %vm2376, %v2418, %v2422
        %v2424 = vrot.slane %v444, 2
        %v2425 = vrot.slane %v440, 3
        %v2426 = vor.u32 %v2424, %v2425
        %v2427 = vsel %vm2376, %v2422, %v2426
        %v2428 = vrot.slane %v452, 2
        %v2429 = vrot.slane %v448, 3
        %v2430 = vor.u32 %v2428, %v2429
        %v2431 = vsel %vm2376, %v2426, %v2430
        %v2432 = vrot.slane %v460, 2
        %v2433 = vrot.slane %v456, 3
        %v2434 = vor.u32 %v2432, %v2433
        %v2435 = vsel %vm2376, %v2430, %v2434
        %v2436 = vrot.slane %v468, 2
        %v2437 = vrot.slane %v464, 3
        %v2438 = vor.u32 %v2436, %v2437
        %v2439 = vsel %vm2376, %v2434, %v2438
        %v2440 = vrot.slane %v1543, 2
        %v2441 = vrot.slane %v1546, 3
        %v2442 = vor.u32 %v2440, %v2441
        %v2443 = vsel %vm2376, %v2438, %v2442
        %v2445 = vshrl.u32 %v2146, 16
        %v2447 = vrot.slane %v2445, 2
        %v2448 = vshll.u32 %v2146, 16
        %v2450 = vrot.slane %v2448, 3
        %v2451 = vor.u32 %v2447, %v2450
        %v2452 = vsel %vm2376, %v2442, %v2451
        %v2454 = vshrl.u32 %v2147, 16
        %v2456 = vrot.slane %v2454, 2
        %v2457 = vshll.u32 %v2147, 16
        %v2459 = vrot.slane %v2457, 3
        %v2460 = vor.u32 %v2456, %v2459
        %v2461 = vsel %vm2376, %v2451, %v2460
        %v2463 = vsel %vm476, %v2383, 0
        %v2466 = vsel %vm476, %v2387, 0
        %v2469 = vsel %vm476, %v2391, 0
        %v2472 = vsel %vm476, %v2395, 0
        %v2475 = vsel %vm476, %v2399, 0
        %v2478 = vsel %vm476, %v2403, 0
        %v2481 = vsel %vm476, %v2407, 0
        %v2484 = vsel %vm476, %v2411, 0
        %v2487 = vsel %vm476, %v2415, 0
        %v2490 = vsel %vm476, %v2419, 0
        %v2493 = vsel %vm476, %v2423, 0
        %v2496 = vsel %vm476, %v2427, 0
        %v2499 = vsel %vm476, %v2431, 0
        %v2502 = vsel %vm476, %v2435, 0
        %v2505 = vsel %vm476, %v2439, 0
        %v2508 = vsel %vm476, %v2443, 0
        %v2511 = vsel %vm476, %v2452, 0
        %v2514 = vsel %vm476, %v2461, 0
        %v2517 = vsel %vm531, %v2375, 0
        %2519 = vmatprep.subr.bf16.mxu0 0
        %2520 = vmatpush1.bf16.msra.mxu0 0
        %2521 = vmatprep.subr.bf16.mxu0 0
        %2522 = vmatpush1.bf16.msra.mxu0 0
        %2523 = vmatprep.subr.bf16.mxu0 0
        %2524 = vmatpush1.bf16.msra.mxu0 0
        %2525 = vmatprep.subr.bf16.mxu0 0
        %2526 = vmatpush1.bf16.msra.mxu0 0
        %2527 = vmatprep.subr.bf16.mxu0 0
        %2528 = vmatpush1.bf16.msra.mxu0 0
        %2529 = vmatprep.subr.bf16.mxu0 0
        %2530 = vmatpush1.bf16.msra.mxu0 0
        %2531 = vmatprep.subr.bf16.mxu0 0
        %2532 = vmatpush1.bf16.msra.mxu0 0
        %2533 = vmatprep.subr.bf16.mxu0 0
        %2534 = vmatpush1.bf16.msra.mxu0 %v2517
        %2535 = vmatprep.subr.bf16.mxu0 0
        %2536 = vmatpush2.bf16.msra.mxu0 0
        %2537 = vmatprep.subr.bf16.mxu0 0
        %2538 = vmatpush2.bf16.msra.mxu0 0
        %2539 = vmatprep.subr.bf16.mxu0 0
        %2540 = vmatpush2.bf16.msra.mxu0 0
        %2541 = vmatprep.subr.bf16.mxu0 0
        %2542 = vmatpush2.bf16.msra.mxu0 0
        %2543 = vmatprep.subr.bf16.mxu0 0
        %2544 = vmatpush2.bf16.msra.mxu0 0
        %2545 = vmatprep.subr.bf16.mxu0 0
        %2546 = vmatpush2.bf16.msra.mxu0 0
        %2547 = vmatprep.subr.bf16.mxu0 0
        %2548 = vmatpush2.bf16.msra.mxu0 0
        %2549 = vmatprep.subr.bf16.mxu0 0
        %2550 = vmatpush2.bf16.msra.mxu0 0
        %2551 = vmatprep.mubr.bf16.mxu0 0
        %2552 = vmatmul.mubr.bf16.gmra.mxu0 %v2463
        %v2553 = vpop.f32.mrf.mxu0
        %v2554 = vadd.f32 0.0, %v2553
        %v2555 = vpop.f32.mrf.mxu0
        %v2556 = vpop.f32.mrf.mxu0
        %v2557 = vadd.f32 0.0, %v2556
        %v2558 = vpop.f32.mrf.mxu0
        %2559 = vmatprep.mubr.bf16.mxu0 0
        %2560 = vmatmul.mubr.bf16.gmra.mxu0 %v2466
        %v2561 = vpop.f32.mrf.mxu0
        %v2562 = vadd.f32 0.0, %v2561
        %v2563 = vpop.f32.mrf.mxu0
        %v2564 = vpop.f32.mrf.mxu0
        %v2565 = vadd.f32 0.0, %v2564
        %v2566 = vpop.f32.mrf.mxu0
        %2567 = vmatprep.mubr.bf16.mxu0 0
        %2568 = vmatmul.mubr.bf16.gmra.mxu0 %v2469
        %v2569 = vpop.f32.mrf.mxu0
        %v2570 = vadd.f32 0.0, %v2569
        %v2571 = vpop.f32.mrf.mxu0
        %v2572 = vpop.f32.mrf.mxu0
        %v2573 = vadd.f32 0.0, %v2572
        %v2574 = vpop.f32.mrf.mxu0
        %2575 = vmatprep.mubr.bf16.mxu0 0
        %2576 = vmatmul.mubr.bf16.gmra.mxu0 %v2472
        %v2577 = vpop.f32.mrf.mxu0
        %v2578 = vadd.f32 0.0, %v2577
        %v2579 = vpop.f32.mrf.mxu0
        %v2580 = vpop.f32.mrf.mxu0
        %v2581 = vadd.f32 0.0, %v2580
        %v2582 = vpop.f32.mrf.mxu0
        %2583 = vmatprep.mubr.bf16.mxu0 0
        %2584 = vmatmul.mubr.bf16.gmra.mxu0 %v2475
        %v2585 = vpop.f32.mrf.mxu0
        %v2586 = vadd.f32 0.0, %v2585
        %v2587 = vpop.f32.mrf.mxu0
        %v2588 = vpop.f32.mrf.mxu0
        %v2589 = vadd.f32 0.0, %v2588
        %v2590 = vpop.f32.mrf.mxu0
        %2591 = vmatprep.mubr.bf16.mxu0 0
        %2592 = vmatmul.mubr.bf16.gmra.mxu0 %v2478
        %v2593 = vpop.f32.mrf.mxu0
        %v2594 = vadd.f32 0.0, %v2593
        %v2595 = vpop.f32.mrf.mxu0
        %v2596 = vpop.f32.mrf.mxu0
        %v2597 = vadd.f32 0.0, %v2596
        %v2598 = vpop.f32.mrf.mxu0
        %2599 = vmatprep.mubr.bf16.mxu0 0
        %2600 = vmatmul.mubr.bf16.gmra.mxu0 %v2481
        %v2601 = vpop.f32.mrf.mxu0
        %v2602 = vadd.f32 0.0, %v2601
        %v2603 = vpop.f32.mrf.mxu0
        %v2604 = vpop.f32.mrf.mxu0
        %v2605 = vadd.f32 0.0, %v2604
        %v2606 = vpop.f32.mrf.mxu0
        %2607 = vmatprep.mubr.bf16.mxu0 0
        %2608 = vmatmul.mubr.bf16.gmra.mxu0 %v2484
        %v2609 = vpop.f32.mrf.mxu0
        %v2610 = vadd.f32 0.0, %v2609
        %v2611 = vpop.f32.mrf.mxu0
        %v2612 = vpop.f32.mrf.mxu0
        %v2613 = vadd.f32 0.0, %v2612
        %v2614 = vpop.f32.mrf.mxu0
        %2615 = vmatprep.mubr.bf16.mxu0 0
        %2616 = vmatmul.mubr.bf16.gmra.mxu0 %v2487
        %v2617 = vpop.f32.mrf.mxu0
        %v2618 = vadd.f32 0.0, %v2617
        %v2619 = vpop.f32.mrf.mxu0
        %v2620 = vpop.f32.mrf.mxu0
        %v2621 = vadd.f32 0.0, %v2620
        %v2622 = vpop.f32.mrf.mxu0
        %2623 = vmatprep.mubr.bf16.mxu0 0
        %2624 = vmatmul.mubr.bf16.gmra.mxu0 %v2490
        %v2625 = vpop.f32.mrf.mxu0
        %v2626 = vadd.f32 0.0, %v2625
        %v2627 = vpop.f32.mrf.mxu0
        %v2628 = vpop.f32.mrf.mxu0
        %v2629 = vadd.f32 0.0, %v2628
        %v2630 = vpop.f32.mrf.mxu0
        %2631 = vmatprep.mubr.bf16.mxu0 0
        %2632 = vmatmul.mubr.bf16.gmra.mxu0 %v2493
        %v2633 = vpop.f32.mrf.mxu0
        %v2634 = vadd.f32 0.0, %v2633
        %v2635 = vpop.f32.mrf.mxu0
        %v2636 = vpop.f32.mrf.mxu0
        %v2637 = vadd.f32 0.0, %v2636
        %v2638 = vpop.f32.mrf.mxu0
        %2639 = vmatprep.mubr.bf16.mxu0 0
        %2640 = vmatmul.mubr.bf16.gmra.mxu0 %v2496
        %v2641 = vpop.f32.mrf.mxu0
        %v2642 = vadd.f32 0.0, %v2641
        %v2643 = vpop.f32.mrf.mxu0
        %v2644 = vpop.f32.mrf.mxu0
        %v2645 = vadd.f32 0.0, %v2644
        %v2646 = vpop.f32.mrf.mxu0
        %2647 = vmatprep.mubr.bf16.mxu0 0
        %2648 = vmatmul.mubr.bf16.gmra.mxu0 %v2499
        %v2649 = vpop.f32.mrf.mxu0
        %v2650 = vadd.f32 0.0, %v2649
        %v2651 = vpop.f32.mrf.mxu0
        %v2652 = vpop.f32.mrf.mxu0
        %v2653 = vadd.f32 0.0, %v2652
        %v2654 = vpop.f32.mrf.mxu0
        %2655 = vmatprep.mubr.bf16.mxu0 0
        %2656 = vmatmul.mubr.bf16.gmra.mxu0 %v2502
        %v2657 = vpop.f32.mrf.mxu0
        %v2658 = vadd.f32 0.0, %v2657
        %v2659 = vpop.f32.mrf.mxu0
        %v2660 = vpop.f32.mrf.mxu0
        %v2661 = vadd.f32 0.0, %v2660
        %v2662 = vpop.f32.mrf.mxu0
        %2663 = vmatprep.mubr.bf16.mxu0 0
        %2664 = vmatmul.mubr.bf16.gmra.mxu0 %v2505
        %v2665 = vpop.f32.mrf.mxu0
        %v2666 = vadd.f32 0.0, %v2665
        %v2667 = vpop.f32.mrf.mxu0
        %v2668 = vpop.f32.mrf.mxu0
        %v2669 = vadd.f32 0.0, %v2668
        %v2670 = vpop.f32.mrf.mxu0
        %2671 = vmatprep.mubr.bf16.mxu0 0
        %2672 = vmatmul.mubr.bf16.gmra.mxu0 %v2508
        %v2673 = vpop.f32.mrf.mxu0
        %v2674 = vadd.f32 0.0, %v2673
        %v2675 = vpop.f32.mrf.mxu0
        %v2676 = vpop.f32.mrf.mxu0
        %v2677 = vadd.f32 0.0, %v2676
        %v2678 = vpop.f32.mrf.mxu0
        %2679 = vmatprep.mubr.bf16.mxu0 0
        %2680 = vmatmul.mubr.bf16.gmra.mxu0 %v2511
        %v2681 = vpop.f32.mrf.mxu0
        %v2682 = vadd.f32 0.0, %v2681
        %v2683 = vpop.f32.mrf.mxu0
        %v2684 = vpop.f32.mrf.mxu0
        %v2685 = vadd.f32 0.0, %v2684
        %v2686 = vpop.f32.mrf.mxu0
        %2687 = vmatprep.mubr.bf16.mxu0 0
        %2688 = vmatmul.mubr.bf16.gmra.mxu0 %v2514
        %v2689 = vpop.f32.mrf.mxu0
        %v2690 = vadd.f32 0.0, %v2689
        %v2691 = vpop.f32.mrf.mxu0
        %v2692 = vpop.f32.mrf.mxu0
        %v2693 = vadd.f32 0.0, %v2692
        %v2694 = vpop.f32.mrf.mxu0
        %2695 = vdwg.mxu0
        %v2696 = vadd.f32 %v2338, %v2554
        %v2697 = vadd.f32 %v2339, %v2557
        %v2698 = vadd.f32 %v2340, %v2562
        %v2699 = vadd.f32 %v2341, %v2565
        %v2700 = vadd.f32 %v2342, %v2570
        %v2701 = vadd.f32 %v2343, %v2573
        %v2702 = vadd.f32 %v2344, %v2578
        %v2703 = vadd.f32 %v2345, %v2581
        %v2704 = vadd.f32 %v2346, %v2586
        %v2705 = vadd.f32 %v2347, %v2589
        %v2706 = vadd.f32 %v2348, %v2594
        %v2707 = vadd.f32 %v2349, %v2597
        %v2708 = vadd.f32 %v2350, %v2602
        %v2709 = vadd.f32 %v2351, %v2605
        %v2710 = vadd.f32 %v2352, %v2610
        %v2711 = vadd.f32 %v2353, %v2613
        %v2712 = vadd.f32 %v2354, %v2618
        %v2713 = vadd.f32 %v2355, %v2621
        %v2714 = vadd.f32 %v2356, %v2626
        %v2715 = vadd.f32 %v2357, %v2629
        %v2716 = vadd.f32 %v2358, %v2634
        %v2717 = vadd.f32 %v2359, %v2637
        %v2718 = vadd.f32 %v2360, %v2642
        %v2719 = vadd.f32 %v2361, %v2645
        %v2720 = vadd.f32 %v2362, %v2650
        %v2721 = vadd.f32 %v2363, %v2653
        %v2722 = vadd.f32 %v2364, %v2658
        %v2723 = vadd.f32 %v2365, %v2661
        %v2724 = vadd.f32 %v2366, %v2666
        %v2725 = vadd.f32 %v2367, %v2669
        %v2726 = vadd.f32 %v2368, %v2674
        %v2727 = vadd.f32 %v2369, %v2677
        %v2728 = vadd.f32 %v2370, %v2682
        %v2729 = vadd.f32 %v2371, %v2685
        %v2730 = vadd.f32 %v2372, %v2690
        %v2731 = vadd.f32 %v2373, %v2693
        %s2732 = scalar_lea.vmem %s1, 16
        %v2733 = vld [vmem:[%s2732] sm:$0x3]
        %vm2734 = vcmask 1044480
        %v2735 = vrot.slane %v310, 3
        %v2736 = vrot.slane %v311, 3
        %v2737 = vsel %vm2734, %v2735, %v2736
        %v2738 = vrot.slane %v312, 3
        %v2739 = vsel %vm2734, %v2736, %v2738
        %v2740 = vrot.slane %v313, 3
        %v2741 = vsel %vm2734, %v2738, %v2740
        %v2742 = vrot.slane %v314, 3
        %v2743 = vsel %vm2734, %v2740, %v2742
        %v2744 = vrot.slane %v315, 3
        %v2745 = vsel %vm2734, %v2742, %v2744
        %v2746 = vrot.slane %v316, 3
        %v2747 = vsel %vm2734, %v2744, %v2746
        %v2748 = vrot.slane %v317, 3
        %v2749 = vsel %vm2734, %v2746, %v2748
        %v2750 = vrot.slane %v318, 3
        %v2751 = vsel %vm2734, %v2748, %v2750
        %v2752 = vrot.slane %v319, 3
        %v2753 = vsel %vm2734, %v2750, %v2752
        %v2754 = vrot.slane %v320, 3
        %v2755 = vsel %vm2734, %v2752, %v2754
        %v2756 = vrot.slane %v321, 3
        %v2757 = vsel %vm2734, %v2754, %v2756
        %v2758 = vrot.slane %v322, 3
        %v2759 = vsel %vm2734, %v2756, %v2758
        %v2760 = vrot.slane %v323, 3
        %v2761 = vsel %vm2734, %v2758, %v2760
        %v2762 = vrot.slane %v324, 3
        %v2763 = vsel %vm2734, %v2760, %v2762
        %v2764 = vrot.slane %v325, 3
        %v2765 = vsel %vm2734, %v2762, %v2764
        %v2766 = vrot.slane %v1244, 3
        %v2767 = vsel %vm2734, %v2764, %v2766
        %v2768 = vrot.slane %v2146, 3
        %v2769 = vsel %vm2734, %v2766, %v2768
        %v2770 = vrot.slane %v2147, 3
        %v2771 = vsel %vm2734, %v2768, %v2770
        %v2773 = vsel %vm476, %v2737, 0
        %v2776 = vsel %vm476, %v2739, 0
        %v2779 = vsel %vm476, %v2741, 0
        %v2782 = vsel %vm476, %v2743, 0
        %v2785 = vsel %vm476, %v2745, 0
        %v2788 = vsel %vm476, %v2747, 0
        %v2791 = vsel %vm476, %v2749, 0
        %v2794 = vsel %vm476, %v2751, 0
        %v2797 = vsel %vm476, %v2753, 0
        %v2800 = vsel %vm476, %v2755, 0
        %v2803 = vsel %vm476, %v2757, 0
        %v2806 = vsel %vm476, %v2759, 0
        %v2809 = vsel %vm476, %v2761, 0
        %v2812 = vsel %vm476, %v2763, 0
        %v2815 = vsel %vm476, %v2765, 0
        %v2818 = vsel %vm476, %v2767, 0
        %v2821 = vsel %vm476, %v2769, 0
        %v2824 = vsel %vm476, %v2771, 0
        %v2827 = vsel %vm531, %v2733, 0
        %2829 = vmatprep.subr.bf16.mxu0 0
        %2830 = vmatpush1.bf16.msra.mxu0 0
        %2831 = vmatprep.subr.bf16.mxu0 0
        %2832 = vmatpush1.bf16.msra.mxu0 0
        %2833 = vmatprep.subr.bf16.mxu0 0
        %2834 = vmatpush1.bf16.msra.mxu0 0
        %2835 = vmatprep.subr.bf16.mxu0 0
        %2836 = vmatpush1.bf16.msra.mxu0 0
        %2837 = vmatprep.subr.bf16.mxu0 0
        %2838 = vmatpush1.bf16.msra.mxu0 0
        %2839 = vmatprep.subr.bf16.mxu0 0
        %2840 = vmatpush1.bf16.msra.mxu0 0
        %2841 = vmatprep.subr.bf16.mxu0 0
        %2842 = vmatpush1.bf16.msra.mxu0 0
        %2843 = vmatprep.subr.bf16.mxu0 0
        %2844 = vmatpush1.bf16.msra.mxu0 %v2827
        %2845 = vmatprep.subr.bf16.mxu0 0
        %2846 = vmatpush2.bf16.msra.mxu0 0
        %2847 = vmatprep.subr.bf16.mxu0 0
        %2848 = vmatpush2.bf16.msra.mxu0 0
        %2849 = vmatprep.subr.bf16.mxu0 0
        %2850 = vmatpush2.bf16.msra.mxu0 0
        %2851 = vmatprep.subr.bf16.mxu0 0
        %2852 = vmatpush2.bf16.msra.mxu0 0
        %2853 = vmatprep.subr.bf16.mxu0 0
        %2854 = vmatpush2.bf16.msra.mxu0 0
        %2855 = vmatprep.subr.bf16.mxu0 0
        %2856 = vmatpush2.bf16.msra.mxu0 0
        %2857 = vmatprep.subr.bf16.mxu0 0
        %2858 = vmatpush2.bf16.msra.mxu0 0
        %2859 = vmatprep.subr.bf16.mxu0 0
        %2860 = vmatpush2.bf16.msra.mxu0 0
        %2861 = vmatprep.mubr.bf16.mxu0 0
        %2862 = vmatmul.mubr.bf16.gmra.mxu0 %v2773
        %v2863 = vpop.f32.mrf.mxu0
        %v2864 = vadd.f32 0.0, %v2863
        %v2865 = vpop.f32.mrf.mxu0
        %v2866 = vpop.f32.mrf.mxu0
        %v2867 = vadd.f32 0.0, %v2866
        %v2868 = vpop.f32.mrf.mxu0
        %2869 = vmatprep.mubr.bf16.mxu0 0
        %2870 = vmatmul.mubr.bf16.gmra.mxu0 %v2776
        %v2871 = vpop.f32.mrf.mxu0
        %v2872 = vadd.f32 0.0, %v2871
        %v2873 = vpop.f32.mrf.mxu0
        %v2874 = vpop.f32.mrf.mxu0
        %v2875 = vadd.f32 0.0, %v2874
        %v2876 = vpop.f32.mrf.mxu0
        %2877 = vmatprep.mubr.bf16.mxu0 0
        %2878 = vmatmul.mubr.bf16.gmra.mxu0 %v2779
        %v2879 = vpop.f32.mrf.mxu0
        %v2880 = vadd.f32 0.0, %v2879
        %v2881 = vpop.f32.mrf.mxu0
        %v2882 = vpop.f32.mrf.mxu0
        %v2883 = vadd.f32 0.0, %v2882
        %v2884 = vpop.f32.mrf.mxu0
        %2885 = vmatprep.mubr.bf16.mxu0 0
        %2886 = vmatmul.mubr.bf16.gmra.mxu0 %v2782
        %v2887 = vpop.f32.mrf.mxu0
        %v2888 = vadd.f32 0.0, %v2887
        %v2889 = vpop.f32.mrf.mxu0
        %v2890 = vpop.f32.mrf.mxu0
        %v2891 = vadd.f32 0.0, %v2890
        %v2892 = vpop.f32.mrf.mxu0
        %2893 = vmatprep.mubr.bf16.mxu0 0
        %2894 = vmatmul.mubr.bf16.gmra.mxu0 %v2785
        %v2895 = vpop.f32.mrf.mxu0
        %v2896 = vadd.f32 0.0, %v2895
        %v2897 = vpop.f32.mrf.mxu0
        %v2898 = vpop.f32.mrf.mxu0
        %v2899 = vadd.f32 0.0, %v2898
        %v2900 = vpop.f32.mrf.mxu0
        %2901 = vmatprep.mubr.bf16.mxu0 0
        %2902 = vmatmul.mubr.bf16.gmra.mxu0 %v2788
        %v2903 = vpop.f32.mrf.mxu0
        %v2904 = vadd.f32 0.0, %v2903
        %v2905 = vpop.f32.mrf.mxu0
        %v2906 = vpop.f32.mrf.mxu0
        %v2907 = vadd.f32 0.0, %v2906
        %v2908 = vpop.f32.mrf.mxu0
        %2909 = vmatprep.mubr.bf16.mxu0 0
        %2910 = vmatmul.mubr.bf16.gmra.mxu0 %v2791
        %v2911 = vpop.f32.mrf.mxu0
        %v2912 = vadd.f32 0.0, %v2911
        %v2913 = vpop.f32.mrf.mxu0
        %v2914 = vpop.f32.mrf.mxu0
        %v2915 = vadd.f32 0.0, %v2914
        %v2916 = vpop.f32.mrf.mxu0
        %2917 = vmatprep.mubr.bf16.mxu0 0
        %2918 = vmatmul.mubr.bf16.gmra.mxu0 %v2794
        %v2919 = vpop.f32.mrf.mxu0
        %v2920 = vadd.f32 0.0, %v2919
        %v2921 = vpop.f32.mrf.mxu0
        %v2922 = vpop.f32.mrf.mxu0
        %v2923 = vadd.f32 0.0, %v2922
        %v2924 = vpop.f32.mrf.mxu0
        %2925 = vmatprep.mubr.bf16.mxu0 0
        %2926 = vmatmul.mubr.bf16.gmra.mxu0 %v2797
        %v2927 = vpop.f32.mrf.mxu0
        %v2928 = vadd.f32 0.0, %v2927
        %v2929 = vpop.f32.mrf.mxu0
        %v2930 = vpop.f32.mrf.mxu0
        %v2931 = vadd.f32 0.0, %v2930
        %v2932 = vpop.f32.mrf.mxu0
        %2933 = vmatprep.mubr.bf16.mxu0 0
        %2934 = vmatmul.mubr.bf16.gmra.mxu0 %v2800
        %v2935 = vpop.f32.mrf.mxu0
        %v2936 = vadd.f32 0.0, %v2935
        %v2937 = vpop.f32.mrf.mxu0
        %v2938 = vpop.f32.mrf.mxu0
        %v2939 = vadd.f32 0.0, %v2938
        %v2940 = vpop.f32.mrf.mxu0
        %2941 = vmatprep.mubr.bf16.mxu0 0
        %2942 = vmatmul.mubr.bf16.gmra.mxu0 %v2803
        %v2943 = vpop.f32.mrf.mxu0
        %v2944 = vadd.f32 0.0, %v2943
        %v2945 = vpop.f32.mrf.mxu0
        %v2946 = vpop.f32.mrf.mxu0
        %v2947 = vadd.f32 0.0, %v2946
        %v2948 = vpop.f32.mrf.mxu0
        %2949 = vmatprep.mubr.bf16.mxu0 0
        %2950 = vmatmul.mubr.bf16.gmra.mxu0 %v2806
        %v2951 = vpop.f32.mrf.mxu0
        %v2952 = vadd.f32 0.0, %v2951
        %v2953 = vpop.f32.mrf.mxu0
        %v2954 = vpop.f32.mrf.mxu0
        %v2955 = vadd.f32 0.0, %v2954
        %v2956 = vpop.f32.mrf.mxu0
        %2957 = vmatprep.mubr.bf16.mxu0 0
        %2958 = vmatmul.mubr.bf16.gmra.mxu0 %v2809
        %v2959 = vpop.f32.mrf.mxu0
        %v2960 = vadd.f32 0.0, %v2959
        %v2961 = vpop.f32.mrf.mxu0
        %v2962 = vpop.f32.mrf.mxu0
        %v2963 = vadd.f32 0.0, %v2962
        %v2964 = vpop.f32.mrf.mxu0
        %2965 = vmatprep.mubr.bf16.mxu0 0
        %2966 = vmatmul.mubr.bf16.gmra.mxu0 %v2812
        %v2967 = vpop.f32.mrf.mxu0
        %v2968 = vadd.f32 0.0, %v2967
        %v2969 = vpop.f32.mrf.mxu0
        %v2970 = vpop.f32.mrf.mxu0
        %v2971 = vadd.f32 0.0, %v2970
        %v2972 = vpop.f32.mrf.mxu0
        %2973 = vmatprep.mubr.bf16.mxu0 0
        %2974 = vmatmul.mubr.bf16.gmra.mxu0 %v2815
        %v2975 = vpop.f32.mrf.mxu0
        %v2976 = vadd.f32 0.0, %v2975
        %v2977 = vpop.f32.mrf.mxu0
        %v2978 = vpop.f32.mrf.mxu0
        %v2979 = vadd.f32 0.0, %v2978
        %v2980 = vpop.f32.mrf.mxu0
        %2981 = vmatprep.mubr.bf16.mxu0 0
        %2982 = vmatmul.mubr.bf16.gmra.mxu0 %v2818
        %v2983 = vpop.f32.mrf.mxu0
        %v2984 = vadd.f32 0.0, %v2983
        %v2985 = vpop.f32.mrf.mxu0
        %v2986 = vpop.f32.mrf.mxu0
        %v2987 = vadd.f32 0.0, %v2986
        %v2988 = vpop.f32.mrf.mxu0
        %2989 = vmatprep.mubr.bf16.mxu0 0
        %2990 = vmatmul.mubr.bf16.gmra.mxu0 %v2821
        %v2991 = vpop.f32.mrf.mxu0
        %v2992 = vadd.f32 0.0, %v2991
        %v2993 = vpop.f32.mrf.mxu0
        %v2994 = vpop.f32.mrf.mxu0
        %v2995 = vadd.f32 0.0, %v2994
        %v2996 = vpop.f32.mrf.mxu0
        %2997 = vmatprep.mubr.bf16.mxu0 0
        %2998 = vmatmul.mubr.bf16.gmra.mxu0 %v2824
        %v2999 = vpop.f32.mrf.mxu0
        %v3000 = vadd.f32 0.0, %v2999
        %v3001 = vpop.f32.mrf.mxu0
        %v3002 = vpop.f32.mrf.mxu0
        %v3003 = vadd.f32 0.0, %v3002
        %v3004 = vpop.f32.mrf.mxu0
        %3005 = vdwg.mxu0
        %v3006 = vadd.f32 %v2696, %v2864
        %v3007 = vadd.f32 %v2697, %v2867
        %v3008 = vadd.f32 %v2698, %v2872
        %v3009 = vadd.f32 %v2699, %v2875
        %v3010 = vadd.f32 %v2700, %v2880
        %v3011 = vadd.f32 %v2701, %v2883
        %v3012 = vadd.f32 %v2702, %v2888
        %v3013 = vadd.f32 %v2703, %v2891
        %v3014 = vadd.f32 %v2704, %v2896
        %v3015 = vadd.f32 %v2705, %v2899
        %v3016 = vadd.f32 %v2706, %v2904
        %v3017 = vadd.f32 %v2707, %v2907
        %v3018 = vadd.f32 %v2708, %v2912
        %v3019 = vadd.f32 %v2709, %v2915
        %v3020 = vadd.f32 %v2710, %v2920
        %v3021 = vadd.f32 %v2711, %v2923
        %v3022 = vadd.f32 %v2712, %v2928
        %v3023 = vadd.f32 %v2713, %v2931
        %v3024 = vadd.f32 %v2714, %v2936
        %v3025 = vadd.f32 %v2715, %v2939
        %v3026 = vadd.f32 %v2716, %v2944
        %v3027 = vadd.f32 %v2717, %v2947
        %v3028 = vadd.f32 %v2718, %v2952
        %v3029 = vadd.f32 %v2719, %v2955
        %v3030 = vadd.f32 %v2720, %v2960
        %v3031 = vadd.f32 %v2721, %v2963
        %v3032 = vadd.f32 %v2722, %v2968
        %v3033 = vadd.f32 %v2723, %v2971
        %v3034 = vadd.f32 %v2724, %v2976
        %v3035 = vadd.f32 %v2725, %v2979
        %v3036 = vadd.f32 %v2726, %v2984
        %v3037 = vadd.f32 %v2727, %v2987
        %v3038 = vadd.f32 %v2728, %v2992
        %v3039 = vadd.f32 %v2729, %v2995
        %v3040 = vadd.f32 %v2730, %v3000
        %v3041 = vadd.f32 %v2731, %v3003
        %v3042 = vld [vmem:[%s2] sm:$0x1]
        %v3044 = vlaneseq
        %v3045 = vshrl.u32 %v3044, 7
        %v3046 = vsub.s32 0, %v3045
        %v3047 = vrot.slane %v3042, %v3046
        %v3049 = vadd.f32 %v3006, %v3047
        %v3050 = vadd.f32 %v3007, %v3047
        %v3051 = vadd.f32 %v3008, %v3047
        %v3052 = vadd.f32 %v3009, %v3047
        %v3053 = vadd.f32 %v3010, %v3047
        %v3054 = vadd.f32 %v3011, %v3047
        %v3055 = vadd.f32 %v3012, %v3047
        %v3056 = vadd.f32 %v3013, %v3047
        %v3057 = vadd.f32 %v3014, %v3047
        %v3058 = vadd.f32 %v3015, %v3047
        %v3059 = vadd.f32 %v3016, %v3047
        %v3060 = vadd.f32 %v3017, %v3047
        %v3061 = vadd.f32 %v3018, %v3047
        %v3062 = vadd.f32 %v3019, %v3047
        %v3063 = vadd.f32 %v3020, %v3047
        %v3064 = vadd.f32 %v3021, %v3047
        %v3065 = vadd.f32 %v3022, %v3047
        %v3066 = vadd.f32 %v3023, %v3047
        %v3067 = vadd.f32 %v3024, %v3047
        %v3068 = vadd.f32 %v3025, %v3047
        %v3069 = vadd.f32 %v3026, %v3047
        %v3070 = vadd.f32 %v3027, %v3047
        %v3071 = vadd.f32 %v3028, %v3047
        %v3072 = vadd.f32 %v3029, %v3047
        %v3073 = vadd.f32 %v3030, %v3047
        %v3074 = vadd.f32 %v3031, %v3047
        %v3075 = vadd.f32 %v3032, %v3047
        %v3076 = vadd.f32 %v3033, %v3047
        %v3077 = vadd.f32 %v3034, %v3047
        %v3078 = vadd.f32 %v3035, %v3047
        %v3079 = vadd.f32 %v3036, %v3047
        %v3080 = vadd.f32 %v3037, %v3047
        %v3081 = vadd.f32 %v3038, %v3047
        %v3082 = vadd.f32 %v3039, %v3047
        %v3083 = vadd.f32 %v3040, %v3047
        %v3084 = vadd.f32 %v3041, %v3047
        %vm3085 = vcmp.ge.f32.partialorder %v3049, 0.0
        %vm3086 = vcmp.ge.f32.partialorder %v3050, 0.0
        %vm3087 = vcmp.ge.f32.partialorder %v3051, 0.0
        %vm3088 = vcmp.ge.f32.partialorder %v3052, 0.0
        %vm3089 = vcmp.ge.f32.partialorder %v3053, 0.0
        %vm3090 = vcmp.ge.f32.partialorder %v3054, 0.0
        %vm3091 = vcmp.ge.f32.partialorder %v3055, 0.0
        %vm3092 = vcmp.ge.f32.partialorder %v3056, 0.0
        %vm3093 = vcmp.ge.f32.partialorder %v3057, 0.0
        %vm3094 = vcmp.ge.f32.partialorder %v3058, 0.0
        %vm3095 = vcmp.ge.f32.partialorder %v3059, 0.0
        %vm3096 = vcmp.ge.f32.partialorder %v3060, 0.0
        %vm3097 = vcmp.ge.f32.partialorder %v3061, 0.0
        %vm3098 = vcmp.ge.f32.partialorder %v3062, 0.0
        %vm3099 = vcmp.ge.f32.partialorder %v3063, 0.0
        %vm3100 = vcmp.ge.f32.partialorder %v3064, 0.0
        %vm3101 = vcmp.ge.f32.partialorder %v3065, 0.0
        %vm3102 = vcmp.ge.f32.partialorder %v3066, 0.0
        %vm3103 = vcmp.ge.f32.partialorder %v3067, 0.0
        %vm3104 = vcmp.ge.f32.partialorder %v3068, 0.0
        %vm3105 = vcmp.ge.f32.partialorder %v3069, 0.0
        %vm3106 = vcmp.ge.f32.partialorder %v3070, 0.0
        %vm3107 = vcmp.ge.f32.partialorder %v3071, 0.0
        %vm3108 = vcmp.ge.f32.partialorder %v3072, 0.0
        %vm3109 = vcmp.ge.f32.partialorder %v3073, 0.0
        %vm3110 = vcmp.ge.f32.partialorder %v3074, 0.0
        %vm3111 = vcmp.ge.f32.partialorder %v3075, 0.0
        %vm3112 = vcmp.ge.f32.partialorder %v3076, 0.0
        %vm3113 = vcmp.ge.f32.partialorder %v3077, 0.0
        %vm3114 = vcmp.ge.f32.partialorder %v3078, 0.0
        %vm3115 = vcmp.ge.f32.partialorder %v3079, 0.0
        %vm3116 = vcmp.ge.f32.partialorder %v3080, 0.0
        %vm3117 = vcmp.ge.f32.partialorder %v3081, 0.0
        %vm3118 = vcmp.ge.f32.partialorder %v3082, 0.0
        %vm3119 = vcmp.ge.f32.partialorder %v3083, 0.0
        %vm3120 = vcmp.ge.f32.partialorder %v3084, 0.0
        %v3121 = vmul.f32 %v3049, 0.2
        %v3122 = vmul.f32 %v3050, 0.2
        %v3123 = vmul.f32 %v3051, 0.2
        %v3124 = vmul.f32 %v3052, 0.2
        %v3125 = vmul.f32 %v3053, 0.2
        %v3126 = vmul.f32 %v3054, 0.2
        %v3127 = vmul.f32 %v3055, 0.2
        %v3128 = vmul.f32 %v3056, 0.2
        %v3129 = vmul.f32 %v3057, 0.2
        %v3130 = vmul.f32 %v3058, 0.2
        %v3131 = vmul.f32 %v3059, 0.2
        %v3132 = vmul.f32 %v3060, 0.2
        %v3133 = vmul.f32 %v3061, 0.2
        %v3134 = vmul.f32 %v3062, 0.2
        %v3135 = vmul.f32 %v3063, 0.2
        %v3136 = vmul.f32 %v3064, 0.2
        %v3137 = vmul.f32 %v3065, 0.2
        %v3138 = vmul.f32 %v3066, 0.2
        %v3139 = vmul.f32 %v3067, 0.2
        %v3140 = vmul.f32 %v3068, 0.2
        %v3141 = vmul.f32 %v3069, 0.2
        %v3142 = vmul.f32 %v3070, 0.2
        %v3143 = vmul.f32 %v3071, 0.2
        %v3144 = vmul.f32 %v3072, 0.2
        %v3145 = vmul.f32 %v3073, 0.2
        %v3146 = vmul.f32 %v3074, 0.2
        %v3147 = vmul.f32 %v3075, 0.2
        %v3148 = vmul.f32 %v3076, 0.2
        %v3149 = vmul.f32 %v3077, 0.2
        %v3150 = vmul.f32 %v3078, 0.2
        %v3151 = vmul.f32 %v3079, 0.2
        %v3152 = vmul.f32 %v3080, 0.2
        %v3153 = vmul.f32 %v3081, 0.2
        %v3154 = vmul.f32 %v3082, 0.2
        %v3155 = vmul.f32 %v3083, 0.2
        %v3156 = vmul.f32 %v3084, 0.2
        %v3157 = vsel %vm3085, %v3049, %v3121
        %v3158 = vsel %vm3086, %v3050, %v3122
        %v3159 = vsel %vm3087, %v3051, %v3123
        %v3160 = vsel %vm3088, %v3052, %v3124
        %v3161 = vsel %vm3089, %v3053, %v3125
        %v3162 = vsel %vm3090, %v3054, %v3126
        %v3163 = vsel %vm3091, %v3055, %v3127
        %v3164 = vsel %vm3092, %v3056, %v3128
        %v3165 = vsel %vm3093, %v3057, %v3129
        %v3166 = vsel %vm3094, %v3058, %v3130
        %v3167 = vsel %vm3095, %v3059, %v3131
        %v3168 = vsel %vm3096, %v3060, %v3132
        %v3169 = vsel %vm3097, %v3061, %v3133
        %v3170 = vsel %vm3098, %v3062, %v3134
        %v3171 = vsel %vm3099, %v3063, %v3135
        %v3172 = vsel %vm3100, %v3064, %v3136
        %v3173 = vsel %vm3101, %v3065, %v3137
        %v3174 = vsel %vm3102, %v3066, %v3138
        %v3175 = vsel %vm3103, %v3067, %v3139
        %v3176 = vsel %vm3104, %v3068, %v3140
        %v3177 = vsel %vm3105, %v3069, %v3141
        %v3178 = vsel %vm3106, %v3070, %v3142
        %v3179 = vsel %vm3107, %v3071, %v3143
        %v3180 = vsel %vm3108, %v3072, %v3144
        %v3181 = vsel %vm3109, %v3073, %v3145
        %v3182 = vsel %vm3110, %v3074, %v3146
        %v3183 = vsel %vm3111, %v3075, %v3147
        %v3184 = vsel %vm3112, %v3076, %v3148
        %v3185 = vsel %vm3113, %v3077, %v3149
        %v3186 = vsel %vm3114, %v3078, %v3150
        %v3187 = vsel %vm3115, %v3079, %v3151
        %v3188 = vsel %vm3116, %v3080, %v3152
        %v3189 = vsel %vm3117, %v3081, %v3153
        %v3190 = vsel %vm3118, %v3082, %v3154
        %v3191 = vsel %vm3119, %v3083, %v3155
        %v3192 = vsel %vm3120, %v3084, %v3156
        %v3193 = vpack.c.bf16 %v3158, %v3157
        %v3194 = vpack.c.bf16 %v3160, %v3159
        %v3195 = vpack.c.bf16 %v3162, %v3161
        %v3196 = vpack.c.bf16 %v3164, %v3163
        %v3197 = vpack.c.bf16 %v3166, %v3165
        %v3198 = vpack.c.bf16 %v3168, %v3167
        %v3199 = vpack.c.bf16 %v3170, %v3169
        %v3200 = vpack.c.bf16 %v3172, %v3171
        %v3201 = vpack.c.bf16 %v3174, %v3173
        %v3202 = vpack.c.bf16 %v3176, %v3175
        %v3203 = vpack.c.bf16 %v3178, %v3177
        %v3204 = vpack.c.bf16 %v3180, %v3179
        %v3205 = vpack.c.bf16 %v3182, %v3181
        %v3206 = vpack.c.bf16 %v3184, %v3183
        %v3207 = vpack.c.bf16 %v3186, %v3185
        %v3208 = vpack.c.bf16 %v3188, %v3187
        %v3209 = vpack.c.bf16 %v3190, %v3189
        %v3210 = vpack.c.bf16 %v3192, %v3191
        %v3229 = vunpack.c.l.b16 %v3193
        %v3230 = vunpack.c.h.b16 %v3193
        %v3231 = vunpack.c.l.b16 %v3194
        %v3232 = vunpack.c.h.b16 %v3194
        %v3233 = vunpack.c.l.b16 %v3195
        %v3234 = vunpack.c.h.b16 %v3195
        %v3235 = vunpack.c.l.b16 %v3196
        %v3236 = vunpack.c.h.b16 %v3196
        %v3237 = vunpack.c.l.b16 %v3197
        %v3238 = vunpack.c.h.b16 %v3197
        %v3239 = vunpack.c.l.b16 %v3198
        %v3240 = vunpack.c.h.b16 %v3198
        %v3241 = vunpack.c.l.b16 %v3199
        %v3242 = vunpack.c.h.b16 %v3199
        %v3243 = vunpack.c.l.b16 %v3200
        %v3244 = vunpack.c.h.b16 %v3200
        %v3245 = vunpack.c.l.b16 %v3201
        %v3246 = vunpack.c.h.b16 %v3201
        %v3247 = vunpack.c.l.b16 %v3202
        %v3248 = vunpack.c.h.b16 %v3202
        %v3249 = vunpack.c.l.b16 %v3203
        %v3250 = vunpack.c.h.b16 %v3203
        %v3251 = vunpack.c.l.b16 %v3204
        %v3252 = vunpack.c.h.b16 %v3204
        %v3253 = vunpack.c.l.b16 %v3205
        %v3254 = vunpack.c.h.b16 %v3205
        %v3255 = vunpack.c.l.b16 %v3206
        %v3256 = vunpack.c.h.b16 %v3206
        %v3257 = vunpack.c.l.b16 %v3207
        %v3258 = vunpack.c.h.b16 %v3207
        %v3259 = vunpack.c.l.b16 %v3208
        %v3260 = vunpack.c.h.b16 %v3208
        %v3261 = vunpack.c.l.b16 %v3209
        %v3262 = vunpack.c.h.b16 %v3209
        %v3263 = vunpack.c.l.b16 %v3210
        %v3264 = vunpack.c.h.b16 %v3210
        %v3265 = vpack.c.b16 %v3229, %v3229
        %v3266 = vpack.c.b16 %v3230, %v3230
        %v3267 = vpack.c.b16 %v3231, %v3231
        %v3268 = vpack.c.b16 %v3232, %v3232
        %v3269 = vpack.c.b16 %v3233, %v3233
        %v3270 = vpack.c.b16 %v3234, %v3234
        %v3271 = vpack.c.b16 %v3235, %v3235
        %v3272 = vpack.c.b16 %v3236, %v3236
        %v3273 = vpack.c.b16 %v3237, %v3237
        %v3274 = vpack.c.b16 %v3238, %v3238
        %v3275 = vpack.c.b16 %v3239, %v3239
        %v3276 = vpack.c.b16 %v3240, %v3240
        %v3277 = vpack.c.b16 %v3241, %v3241
        %v3278 = vpack.c.b16 %v3242, %v3242
        %v3279 = vpack.c.b16 %v3243, %v3243
        %v3280 = vpack.c.b16 %v3244, %v3244
        %v3281 = vpack.c.b16 %v3245, %v3245
        %v3282 = vpack.c.b16 %v3246, %v3246
        %v3283 = vpack.c.b16 %v3247, %v3247
        %v3284 = vpack.c.b16 %v3248, %v3248
        %v3285 = vpack.c.b16 %v3249, %v3249
        %v3286 = vpack.c.b16 %v3250, %v3250
        %v3287 = vpack.c.b16 %v3251, %v3251
        %v3288 = vpack.c.b16 %v3252, %v3252
        %v3289 = vpack.c.b16 %v3253, %v3253
        %v3290 = vpack.c.b16 %v3254, %v3254
        %v3291 = vpack.c.b16 %v3255, %v3255
        %v3292 = vpack.c.b16 %v3256, %v3256
        %v3293 = vpack.c.b16 %v3257, %v3257
        %v3294 = vpack.c.b16 %v3258, %v3258
        %v3295 = vpack.c.b16 %v3259, %v3259
        %v3296 = vpack.c.b16 %v3260, %v3260
        %v3297 = vpack.c.b16 %v3261, %v3261
        %v3298 = vpack.c.b16 %v3262, %v3262
        %v3299 = vpack.c.b16 %v3263, %v3263
        %v3300 = vpack.c.b16 %v3264, %v3264
        %3337 = vst [vmem:[%s177] sm:$0xf] %v3265
        %3338 = vst [vmem:[%s177 + $0x4] sm:$0xf] %v3266
        %3339 = vst [vmem:[%s177 + $0x8] sm:$0xf] %v3267
        %3340 = vst [vmem:[%s177 + $0xc] sm:$0xf] %v3268
        %3341 = vst [vmem:[%s177 + $0x10] sm:$0xf] %v3269
        %3342 = vst [vmem:[%s177 + $0x14] sm:$0xf] %v3270
        %3343 = vst [vmem:[%s177 + $0x18] sm:$0xf] %v3271
        %3344 = vst [vmem:[%s177 + $0x1c] sm:$0xf] %v3272
        %3345 = vst [vmem:[%s177 + $0x20] sm:$0xf] %v3273
        %3346 = vst [vmem:[%s177 + $0x24] sm:$0xf] %v3274
        %3347 = vst [vmem:[%s177 + $0x28] sm:$0xf] %v3275
        %3348 = vst [vmem:[%s177 + $0x2c] sm:$0xf] %v3276
        %3349 = vst [vmem:[%s177 + $0x30] sm:$0xf] %v3277
        %3350 = vst [vmem:[%s177 + $0x34] sm:$0xf] %v3278
        %3351 = vst [vmem:[%s177 + $0x38] sm:$0xf] %v3279
        %3352 = vst [vmem:[%s177 + $0x3c] sm:$0xf] %v3280
        %3353 = vst [vmem:[%s177 + $0x40] sm:$0xf] %v3281
        %3354 = vst [vmem:[%s177 + $0x44] sm:$0xf] %v3282
        %3355 = vst [vmem:[%s177 + $0x48] sm:$0xf] %v3283
        %3356 = vst [vmem:[%s177 + $0x4c] sm:$0xf] %v3284
        %3357 = vst [vmem:[%s177 + $0x50] sm:$0xf] %v3285
        %3358 = vst [vmem:[%s177 + $0x54] sm:$0xf] %v3286
        %3359 = vst [vmem:[%s177 + $0x58] sm:$0xf] %v3287
        %3360 = vst [vmem:[%s177 + $0x5c] sm:$0xf] %v3288
        %3361 = vst [vmem:[%s177 + $0x60] sm:$0xf] %v3289
        %3362 = vst [vmem:[%s177 + $0x64] sm:$0xf] %v3290
        %3363 = vst [vmem:[%s177 + $0x68] sm:$0xf] %v3291
        %3364 = vst [vmem:[%s177 + $0x6c] sm:$0xf] %v3292
        %3365 = vst [vmem:[%s177 + $0x70] sm:$0xf] %v3293
        %3366 = vst [vmem:[%s177 + $0x74] sm:$0xf] %v3294
        %3367 = vst [vmem:[%s177 + $0x78] sm:$0xf] %v3295
        %3368 = vst [vmem:[%s177 + $0x7c] sm:$0xf] %v3296
        %3369 = vst [vmem:[%s177 + $0x80] sm:$0xf] %v3297
        %3370 = vst [vmem:[%s177 + $0x84] sm:$0xf] %v3298
        %3371 = vst [vmem:[%s177 + $0x88] sm:$0xf] %v3299
        %3372 = vst [vmem:[%s177 + $0x8c] sm:$0xf] %v3300
        %s3373 = sand.u32 %s107, 1
        %s3374 = scalar_lea.sflag [#allocation3], %s3373
        %s3375 = sand.u32 %s107, 1
        %s3376 = smul.addr %s3375, 144
        %s3377 = scalar_lea.vmem [#allocation2], %s3376
        // Predicated region
        $region33: #{tpu_custom_call.1} parent=31 // pred_check
          %p3378 = pneg %p117
        $region34: #{tpu_custom_call.1} parent=31 // pred_check_branch
          %3380 = sbr.rel (%p3378) target = $region36
        $region35: #{tpu_custom_call.1} parent=31 // pred_region
          %s3381 = smul.u32 36, %s22
          %s3383 = ssub.s32 2304, 2304
          %3384 = vsyncadd %s3374, %s3383
          %s3385 = smul.addr %s21, 36
          %s3386 = sadd.s32 %s3381, %s3385
          %s3387 = smul.addr %s3386, 64
          %s3388 = scalar_lea.hbm %s3, %s3387
          %s3389 = sshll.u32 %s3377, 4
          %s3390 = int_to_ptr.vmem [resolvable:$true] %s3389
          %3395 = dma.vmem_to_hbm [thread:$0]  %s3390, 2304, %s3388, %s3374, 64, 64, 4
        $region36: #{tpu_custom_call.1} parent=31 // pred_fallthru
          _
      $region32: #{tpu_custom_call.1} parent=5 // pred_fallthru
        _
      %p3396 = scmp.le.s32.totalorder 2, %s12
      // Predicated region
      $region37: #{tpu_custom_call.1} parent=5 // pred_check
        %p3397 = pneg %p3396
      $region38: #{tpu_custom_call.1} parent=5 // pred_check_branch
        %3399 = sbr.rel (%p3397) target = $region40
      $region39: #{tpu_custom_call.1} parent=5 // pred_region
        %s3400 = ssub.s32 %s12, 2
        // Predicated region
        $region41: #{tpu_custom_call.1} parent=39 // pred_check
          %p3401 = pneg %p123
        $region42: #{tpu_custom_call.1} parent=39 // pred_check_branch
          %3403 = sbr.rel (%p3401) target = $region44
        $region43: #{tpu_custom_call.1} parent=39 // pred_region
          %s3404 = sand.u32 %s108, 1
          %s3405 = scalar_lea.sflag [#allocation3], %s3404
          %s3406 = sand.u32 %s108, 1
          %s3407 = smul.addr %s3406, 144
          %s3408 = scalar_lea.vmem [#allocation2], %s3407
          %3409 = dma.done %s3405, 2304
        $region44: #{tpu_custom_call.1} parent=39 // pred_fallthru
          _
      $region40: #{tpu_custom_call.1} parent=5 // pred_fallthru
        _
    $region6: #{tpu_custom_call.1} parent=1 // loop_footer
      %s16 = sadd.s32 1, %s12
    $region7: #{tpu_custom_call.1} parent=1 // loop_footer_branch
      %11 = sbr.rel target = $region3
    $region8: #{tpu_custom_call.1} parent=1 // loop_exit
      _
    %3410 = vsyncpa [#allocation3], 1
    %s3411 = scalar_lea.sflag [#allocation3], 1
    %3412 = vsyncpa %s3411, 1

</llo_original>
